<compile_context>
chip_gen: v5e
topology: v5e:2x2
jax: 0.10.0
libtpu: 0.0.40
codegen_flags: <defaults>
</compile_context>

<pallas_src>
import numpy as np

import jax
import jax.numpy as jnp
from jax.experimental import pallas as pl
from jax.experimental.pallas import tpu as pltpu

_B = 8  # images per grid step (multiple of the 8-row f32 sublane tile)


# ------------------------------ fused kernel -------------------------------

def _net_kernel(x_ref, w1_ref, b1_ref, sw1_ref,
                w2_ref, b2_ref, sh2_ref, sw2_ref,
                wf1_ref, bf1_ref, wf2_ref, bf2_ref, wf3_ref, bf3_ref,
                out_ref):
    B = _B
    f32 = jnp.float32
    cdt = w1_ref.dtype                       # matmul-operand dtype (bf16 by default)

    def mm(a, b):
        return jnp.dot(a, b, preferred_element_type=f32)

    # ---- conv1: one im2row GEMM for the whole block; rows = (parity, r, b).
    y1 = mm(x_ref[...], w1_ref[...])                                  # (28B, 168) f32
    y1 = jnp.maximum(y1 + b1_ref[...], 0.0)

    # ---- pool1 rows: parity-major row ordering -> max of two contiguous halves.
    t1 = jnp.maximum(y1[:14 * B, :], y1[14 * B:, :]).astype(cdt)      # (14B, 168)
    # ---- pool1 cols: 0/1 lane-selector matmuls (batch-agnostic).
    p1 = jnp.maximum(mm(t1, sw1_ref[0]), mm(t1, sw1_ref[1])).astype(cdt)   # (14B, 84)

    # ---- conv2: 5 banded GEMMs, batch stacked along M (contiguous slices).
    y2 = mm(p1[0:10 * B, :], w2_ref[0])
    for di in range(1, 5):
        y2 = y2 + mm(p1[di * B:(di + 10) * B, :], w2_ref[di])
    y2 = jnp.maximum(y2 + b2_ref[...], 0.0).astype(cdt)               # (10B, 160)

    # ---- pool2: row pairs via tiny kron(S, I_B) selectors, then col pairs.
    t2 = jnp.maximum(mm(sh2_ref[0], y2), mm(sh2_ref[1], y2)).astype(cdt)   # (5B, 160)
    p2 = jnp.maximum(mm(t2, sw2_ref[0]), mm(t2, sw2_ref[1])).astype(cdt)   # (5B, 80)

    # ---- fc1 (400->120): 5 band GEMMs with M=B; PyTorch channel-major flatten
    #      order is folded into wf1's rows, so no in-kernel transpose/flatten.
    h = mm(p2[0:B, :], wf1_ref[0])
    for s in range(1, 5):
        h = h + mm(p2[s * B:(s + 1) * B, :], wf1_ref[s])
    h = jnp.maximum(h + bf1_ref[...], 0.0).astype(cdt)                # (B, 120)

    # ---- fc2 + ReLU, fc3 (lane-padded 10 -> 128).
    h = jnp.maximum(mm(h, wf2_ref[...]) + bf2_ref[...], 0.0).astype(cdt)   # (B, 84)
    out_ref[...] = mm(h, wf3_ref[...]) + bf3_ref[...]                 # (B, 128) f32


# ------------------------------ host wrapper --------------------------------

def net_forward(fp, x):
    """Fused forward. x: (N, 3, 32, 32) NCHW float32; returns (N, 10) float32."""
    N = x.shape[0]
    B = _B
    G = pl.cdiv(N, B)
    n_pad = G * B
    cdt = fp["w1"].dtype

    x = x.astype(jnp.float32)
    if n_pad != N:
        x = jnp.pad(x, ((0, n_pad - N), (0, 0), (0, 0), (0, 0)))

    # NCHW -> NHWC -> (Npad, 32, 96) with lane = w*3 + c.
    x2d = jnp.transpose(x, (0, 2, 3, 1)).reshape(n_pad, 32, 96)
    # im2row over the 5 kernel rows: (Npad, 28, 480), K index = di*96 + (w*3+c).
    slab = jnp.concatenate([x2d[:, di:di + 28, :] for di in range(5)], axis=2)
    # Per-block row ordering (pool-parity, pooled-row r, image b), p = 2r+parity,
    # so pool1's row-max is a contiguous-halves VPU max and conv2/fc1 band
    # slices are contiguous across the whole batch.
    slab = slab.reshape(G, B, 14, 2, 480)            # [g, b, r, parity, k]
    slab = jnp.transpose(slab, (0, 3, 2, 1, 4))      # [g, parity, r, b, k]
    slab = slab.reshape(G * 28 * B, 480).astype(cdt)

    full2 = lambda g: (0, 0)      # noqa: E731
    full3 = lambda g: (0, 0, 0)   # noqa: E731

    out = pl.pallas_call(
        _net_kernel,
        out_shape=jax.ShapeDtypeStruct((G * B, 128), jnp.float32),
        grid=(G,),
        in_specs=[
            pl.BlockSpec((28 * B, 480), lambda g: (g, 0)),   # im2row image slab
            pl.BlockSpec((480, 168), full2),                 # conv1 im2row weights
            pl.BlockSpec((1, 168), full2),                   # conv1 bias row (f32)
            pl.BlockSpec((2, 168, 84), full3),               # pool1 col selectors
            pl.BlockSpec((5, 84, 160), full3),               # conv2 banded weights
            pl.BlockSpec((1, 160), full2),                   # conv2 bias row (f32)
            pl.BlockSpec((2, 5 * B, 10 * B), full3),         # pool2 row selectors
            pl.BlockSpec((2, 160, 80), full3),               # pool2 col selectors
            pl.BlockSpec((5, 80, 120), full3),               # fc1 weights (banded)
            pl.BlockSpec((1, 120), full2),                   # fc1 bias (f32)
            pl.BlockSpec((120, 84), full2),                  # fc2 weight (K, N)
            pl.BlockSpec((1, 84), full2),                    # fc2 bias (f32)
            pl.BlockSpec((84, 128), full2),                  # fc3 weight, lane-padded
            pl.BlockSpec((1, 128), full2),                   # fc3 bias, lane-padded
        ],
        out_specs=pl.BlockSpec((B, 128), lambda g: (g, 0)),
        compiler_params=pltpu.CompilerParams(
            dimension_semantics=("parallel",),
            vmem_limit_bytes=32 * 1024 * 1024),
    )(slab, fp["w1"], fp["b1"], fp["sw1"],
      fp["w2"], fp["b2"], fp["sh2"], fp["sw2"],
      fp["wf1"], fp["bf1"], fp["wf2"], fp["bf2"], fp["wf3"], fp["bf3"])
    return out[:N, :10]


# ----------------------- one-time parameter preparation ---------------------

def prepare_params(params, dtype=jnp.bfloat16):
    """Bake PyTorch-layout params into kernel-ready constants (done once).

    Matmul operands (weights/selectors) are cast to `dtype` (bf16 by default;
    the MXU is bf16-native on v5e/v6e/v7x). Biases stay f32 and are added to
    the f32 matmul accumulators inside the kernel.
    """
    B = _B
    w1 = np.asarray(params["conv1_w"], np.float32); b1 = np.asarray(params["conv1_b"], np.float32)
    w2 = np.asarray(params["conv2_w"], np.float32); b2 = np.asarray(params["conv2_b"], np.float32)
    fc1_w = np.asarray(params["fc1_w"], np.float32); fc1_b = np.asarray(params["fc1_b"], np.float32)
    fc2_w = np.asarray(params["fc2_w"], np.float32); fc2_b = np.asarray(params["fc2_b"], np.float32)
    fc3_w = np.asarray(params["fc3_w"], np.float32); fc3_b = np.asarray(params["fc3_b"], np.float32)

    def banded(w, w_in, w_out):
        # (OC, IC, 5, 5) -> (5, w_in*IC, w_out*OC) banded-GEMM operands so that
        # conv(x)[p, c, oc] = sum_di (x2d[p+di, :] @ big[di])[c*OC + oc].
        oc_, ic_, kh, kw = w.shape
        big = np.zeros((kh, w_in * ic_, w_out * oc_), np.float32)
        for di in range(kh):
            for dj in range(kw):
                for c in range(w_out):
                    wcol = c + dj
                    big[di, wcol * ic_:(wcol + 1) * ic_, c * oc_:(c + 1) * oc_] = w[:, :, di, dj].T
        return big

    def col_selectors(w_out, ch):
        # (2, 2*w_out*ch, w_out*ch): lane-only 2x2-pool column selection.
        s = np.zeros((2, 2 * w_out * ch, w_out * ch), np.float32)
        for a in range(2):
            for c in range(w_out):
                for o in range(ch):
                    s[a, (2 * c + a) * ch + o, c * ch + o] = 1.0
        return s

    def row_selectors(h_out, batch):
        # (2, h_out*batch, 2*h_out*batch) = kron(S, I_batch) row-pair selection
        # for the (row, image) M-ordering used inside the kernel.
        s = np.zeros((2, h_out, 2 * h_out), np.float32)
        for a in range(2):
            for r in range(h_out):
                s[a, r, 2 * r + a] = 1.0
        return np.stack([np.kron(s[a], np.eye(batch, dtype=np.float32)) for a in range(2)])

    # conv1 as one im2row GEMM: concatenate the 5 row-bands along K.
    w1_full = banded(w1, 32, 28).reshape(5 * 96, 28 * 6)

    # fc1: reorder rows so the (row, col*16+oc) pooled layout contracts correctly
    # against PyTorch's channel-major (16, 5, 5) flatten.
    wf1 = np.zeros((5, 80, 120), np.float32)
    for s in range(5):
        for u in range(5):
            for oc in range(16):
                wf1[s, u * 16 + oc, :] = fc1_w[:, oc * 25 + s * 5 + u]

    wf3 = np.zeros((84, 128), np.float32); wf3[:, :10] = fc3_w.T
    bf3 = np.zeros((1, 128), np.float32);  bf3[0, :10] = fc3_b

    mx_ops = dict(   # matmul operands -> compute dtype (bf16)
        w1=w1_full, sw1=col_selectors(14, 6),
        w2=banded(w2, 14, 10), sh2=row_selectors(5, B), sw2=col_selectors(5, 16),
        wf1=wf1, wf2=fc2_w.T, wf3=wf3,
    )
    biases = dict(   # stay f32; added to the f32 accumulators
        b1=np.tile(b1, 28)[None, :], b2=np.tile(b2, 10)[None, :],
        bf1=fc1_b[None, :], bf2=fc2_b[None, :], bf3=bf3,
    )
    out = {k: jnp.asarray(v, dtype=dtype) for k, v in mx_ops.items()}
    out.update({k: jnp.asarray(v, dtype=jnp.float32) for k, v in biases.items()})
    return out


def init_params(key):
    """Deterministic PyTorch-style uniform init (bound = 1/sqrt(fan_in))."""
    def uniform(k, shape, fan_in):
        bound = 1.0 / jnp.sqrt(float(fan_in))
        return jax.random.uniform(k, shape, jnp.float32, -bound, bound)

    keys = jax.random.split(key, 10)
    return {
        "conv1_w": uniform(keys[0], (6, 3, 5, 5), 3 * 5 * 5),
        "conv1_b": uniform(keys[1], (6,), 3 * 5 * 5),
        "conv2_w": uniform(keys[2], (16, 6, 5, 5), 6 * 5 * 5),
        "conv2_b": uniform(keys[3], (16,), 6 * 5 * 5),
        "fc1_w": uniform(keys[4], (120, 400), 400),
        "fc1_b": uniform(keys[5], (120,), 400),
        "fc2_w": uniform(keys[6], (84, 120), 120),
        "fc2_b": uniform(keys[7], (84,), 120),
        "fc3_w": uniform(keys[8], (10, 84), 84),
        "fc3_b": uniform(keys[9], (10,), 84),
    }


def net_forward_ref(params, x):
    """Pure-JAX f32 reference (uses the raw PyTorch-layout params)."""
    def conv(x, w, b):
        y = jax.lax.conv_general_dilated(x, w, (1, 1), "VALID",
                                         dimension_numbers=("NCHW", "OIHW", "NCHW"))
        return jax.nn.relu(y + b[None, :, None, None])

    def pool(x):
        N, C, H, W = x.shape
        return x.reshape(N, C, H // 2, 2, W // 2, 2).max(axis=(3, 5))

    x = pool(conv(x, params["conv1_w"], params["conv1_b"]))
    x = pool(conv(x, params["conv2_w"], params["conv2_b"]))
    x = x.reshape(x.shape[0], 400)
    x = jax.nn.relu(x @ params["fc1_w"].T + params["fc1_b"])
    x = jax.nn.relu(x @ params["fc2_w"].T + params["fc2_b"])
    return x @ params["fc3_w"].T + params["fc3_b"]


if __name__ == "__main__":
    key = jax.random.PRNGKey(0)
    pkey, xkey = jax.random.split(key)
    params = init_params(pkey)
    fast_params = prepare_params(params)          # one-time weight baking (bf16 path)

    # fc1 (16*5*5) implies 32x32 spatial input (CIFAR-10 size). Batch of 10
    # exercises both a multi-step grid (2 blocks of 8) and the padding path.
    x = jax.random.normal(xkey, (10, 3, 32, 32), dtype=jnp.float32)

    fwd = jax.jit(net_forward)
    out = jax.block_until_ready(fwd(fast_params, x))
    ref = jax.block_until_ready(net_forward_ref(params, x))

    assert out.shape == (10, 10), out.shape
    assert bool(jnp.all(jnp.isfinite(out)))
    # bf16 matmul operands with f32 accumulation: end-to-end error << 2e-2.
    assert bool(jnp.allclose(out, ref, rtol=2e-2, atol=2e-2)), (
        f"max abs diff {float(jnp.max(jnp.abs(out - ref)))}")
    print("KERNEL_OK")
</pallas_src>

<mosaic_0001>
module attributes {stable_mosaic.version = 11 : i64} {
  func.func @_net_kernel(%arg0: i32, %arg1: memref<224x480xbf16, #tpu.memory_space<vmem>>, %arg2: memref<480x168xbf16, #tpu.memory_space<vmem>>, %arg3: memref<1x168xf32, #tpu.memory_space<vmem>>, %arg4: memref<2x168x84xbf16, #tpu.memory_space<vmem>>, %arg5: memref<5x84x160xbf16, #tpu.memory_space<vmem>>, %arg6: memref<1x160xf32, #tpu.memory_space<vmem>>, %arg7: memref<2x40x80xbf16, #tpu.memory_space<vmem>>, %arg8: memref<2x160x80xbf16, #tpu.memory_space<vmem>>, %arg9: memref<5x80x120xbf16, #tpu.memory_space<vmem>>, %arg10: memref<1x120xf32, #tpu.memory_space<vmem>>, %arg11: memref<120x84xbf16, #tpu.memory_space<vmem>>, %arg12: memref<1x84xf32, #tpu.memory_space<vmem>>, %arg13: memref<84x128xbf16, #tpu.memory_space<vmem>>, %arg14: memref<1x128xf32, #tpu.memory_space<vmem>>, %arg15: memref<8x128xf32, #tpu.memory_space<vmem>>) attributes {dimension_semantics = [#tpu.dimension_semantics<parallel>], iteration_bounds = array<i64: 2>, scalar_prefetch = 0 : i64, scratch_operands = 0 : i64, tpu.core_type = #tpu.core_type<tc>, window_params = [{transform_indices = @transform_0, window_bounds = array<i64: 224, 480>}, {pipeline_mode = #tpu.pipeline_mode<synchronous>, transform_indices = @transform_1, window_bounds = array<i64: 480, 168>}, {pipeline_mode = #tpu.pipeline_mode<synchronous>, transform_indices = @transform_2, window_bounds = array<i64: 1, 168>}, {pipeline_mode = #tpu.pipeline_mode<synchronous>, transform_indices = @transform_3, window_bounds = array<i64: 2, 168, 84>}, {pipeline_mode = #tpu.pipeline_mode<synchronous>, transform_indices = @transform_4, window_bounds = array<i64: 5, 84, 160>}, {pipeline_mode = #tpu.pipeline_mode<synchronous>, transform_indices = @transform_5, window_bounds = array<i64: 1, 160>}, {pipeline_mode = #tpu.pipeline_mode<synchronous>, transform_indices = @transform_6, window_bounds = array<i64: 2, 40, 80>}, {pipeline_mode = #tpu.pipeline_mode<synchronous>, transform_indices = @transform_7, window_bounds = array<i64: 2, 160, 80>}, {pipeline_mode = #tpu.pipeline_mode<synchronous>, transform_indices = @transform_8, window_bounds = array<i64: 5, 80, 120>}, {pipeline_mode = #tpu.pipeline_mode<synchronous>, transform_indices = @transform_9, window_bounds = array<i64: 1, 120>}, {pipeline_mode = #tpu.pipeline_mode<synchronous>, transform_indices = @transform_10, window_bounds = array<i64: 120, 84>}, {pipeline_mode = #tpu.pipeline_mode<synchronous>, transform_indices = @transform_11, window_bounds = array<i64: 1, 84>}, {pipeline_mode = #tpu.pipeline_mode<synchronous>, transform_indices = @transform_12, window_bounds = array<i64: 84, 128>}, {pipeline_mode = #tpu.pipeline_mode<synchronous>, transform_indices = @transform_13, window_bounds = array<i64: 1, 128>}, {transform_indices = @transform_14, window_bounds = array<i64: 8, 128>}]} {
    %c0 = arith.constant 0 : index
    %c0_0 = arith.constant 0 : index
    %0 = vector.load %arg1[%c0, %c0_0] : memref<224x480xbf16, #tpu.memory_space<vmem>>, vector<224x480xbf16>
    %c0_1 = arith.constant 0 : index
    %c0_2 = arith.constant 0 : index
    %1 = vector.load %arg2[%c0_1, %c0_2] : memref<480x168xbf16, #tpu.memory_space<vmem>>, vector<480x168xbf16>
    %cst = arith.constant dense<0.000000e+00> : vector<224x168xf32>
    %2 = tpu.matmul %0, %1, %cst {dimension_numbers = #tpu.dot_dimension_numbers<[1], [0], [0], [1], [0, 0, 1, 1], [], []>} : vector<224x480xbf16>, vector<480x168xbf16>, vector<224x168xf32> -> vector<224x168xf32>
    %c0_3 = arith.constant 0 : index
    %c0_4 = arith.constant 0 : index
    %3 = vector.load %arg3[%c0_3, %c0_4] : memref<1x168xf32, #tpu.memory_space<vmem>>, vector<1x168xf32>
    %4 = vector.broadcast %3 : vector<1x168xf32> to vector<224x168xf32>
    %5 = arith.addf %2, %4 : vector<224x168xf32>
    %cst_5 = arith.constant 0.000000e+00 : f32
    %6 = vector.broadcast %cst_5 : f32 to vector<224x168xf32>
    %7 = arith.maximumf %5, %6 : vector<224x168xf32>
    %8 = vector.extract_strided_slice %7 {offsets = [0, 0], sizes = [112, 168], strides = [1, 1]} : vector<224x168xf32> to vector<112x168xf32>
    %9 = vector.extract_strided_slice %7 {offsets = [112, 0], sizes = [112, 168], strides = [1, 1]} : vector<224x168xf32> to vector<112x168xf32>
    %10 = arith.maximumf %8, %9 : vector<112x168xf32>
    %11 = arith.truncf %10 : vector<112x168xf32> to vector<112x168xbf16>
    %c0_6 = arith.constant 0 : index
    %c0_7 = arith.constant 0 : index
    %c0_8 = arith.constant 0 : index
    %12 = vector.load %arg4[%c0_6, %c0_7, %c0_8] : memref<2x168x84xbf16, #tpu.memory_space<vmem>>, vector<1x168x84xbf16>
    %13 = vector.shape_cast %12 : vector<1x168x84xbf16> to vector<168x84xbf16>
    %cst_9 = arith.constant dense<0.000000e+00> : vector<112x84xf32>
    %14 = tpu.matmul %11, %13, %cst_9 {dimension_numbers = #tpu.dot_dimension_numbers<[1], [0], [0], [1], [0, 0, 1, 1], [], []>} : vector<112x168xbf16>, vector<168x84xbf16>, vector<112x84xf32> -> vector<112x84xf32>
    %c1 = arith.constant 1 : index
    %c0_10 = arith.constant 0 : index
    %c0_11 = arith.constant 0 : index
    %15 = vector.load %arg4[%c1, %c0_10, %c0_11] : memref<2x168x84xbf16, #tpu.memory_space<vmem>>, vector<1x168x84xbf16>
    %16 = vector.shape_cast %15 : vector<1x168x84xbf16> to vector<168x84xbf16>
    %cst_12 = arith.constant dense<0.000000e+00> : vector<112x84xf32>
    %17 = tpu.matmul %11, %16, %cst_12 {dimension_numbers = #tpu.dot_dimension_numbers<[1], [0], [0], [1], [0, 0, 1, 1], [], []>} : vector<112x168xbf16>, vector<168x84xbf16>, vector<112x84xf32> -> vector<112x84xf32>
    %18 = arith.maximumf %14, %17 : vector<112x84xf32>
    %19 = arith.truncf %18 : vector<112x84xf32> to vector<112x84xbf16>
    %20 = vector.extract_strided_slice %19 {offsets = [0, 0], sizes = [80, 84], strides = [1, 1]} : vector<112x84xbf16> to vector<80x84xbf16>
    %c0_13 = arith.constant 0 : index
    %c0_14 = arith.constant 0 : index
    %c0_15 = arith.constant 0 : index
    %21 = vector.load %arg5[%c0_13, %c0_14, %c0_15] : memref<5x84x160xbf16, #tpu.memory_space<vmem>>, vector<1x84x160xbf16>
    %22 = vector.shape_cast %21 : vector<1x84x160xbf16> to vector<84x160xbf16>
    %cst_16 = arith.constant dense<0.000000e+00> : vector<80x160xf32>
    %23 = tpu.matmul %20, %22, %cst_16 {dimension_numbers = #tpu.dot_dimension_numbers<[1], [0], [0], [1], [0, 0, 1, 1], [], []>} : vector<80x84xbf16>, vector<84x160xbf16>, vector<80x160xf32> -> vector<80x160xf32>
    %24 = vector.extract_strided_slice %19 {offsets = [8, 0], sizes = [80, 84], strides = [1, 1]} : vector<112x84xbf16> to vector<80x84xbf16>
    %c1_17 = arith.constant 1 : index
    %c0_18 = arith.constant 0 : index
    %c0_19 = arith.constant 0 : index
    %25 = vector.load %arg5[%c1_17, %c0_18, %c0_19] : memref<5x84x160xbf16, #tpu.memory_space<vmem>>, vector<1x84x160xbf16>
    %26 = vector.shape_cast %25 : vector<1x84x160xbf16> to vector<84x160xbf16>
    %cst_20 = arith.constant dense<0.000000e+00> : vector<80x160xf32>
    %27 = tpu.matmul %24, %26, %cst_20 {dimension_numbers = #tpu.dot_dimension_numbers<[1], [0], [0], [1], [0, 0, 1, 1], [], []>} : vector<80x84xbf16>, vector<84x160xbf16>, vector<80x160xf32> -> vector<80x160xf32>
    %28 = arith.addf %23, %27 : vector<80x160xf32>
    %29 = vector.extract_strided_slice %19 {offsets = [16, 0], sizes = [80, 84], strides = [1, 1]} : vector<112x84xbf16> to vector<80x84xbf16>
    %c2 = arith.constant 2 : index
    %c0_21 = arith.constant 0 : index
    %c0_22 = arith.constant 0 : index
    %30 = vector.load %arg5[%c2, %c0_21, %c0_22] : memref<5x84x160xbf16, #tpu.memory_space<vmem>>, vector<1x84x160xbf16>
    %31 = vector.shape_cast %30 : vector<1x84x160xbf16> to vector<84x160xbf16>
    %cst_23 = arith.constant dense<0.000000e+00> : vector<80x160xf32>
    %32 = tpu.matmul %29, %31, %cst_23 {dimension_numbers = #tpu.dot_dimension_numbers<[1], [0], [0], [1], [0, 0, 1, 1], [], []>} : vector<80x84xbf16>, vector<84x160xbf16>, vector<80x160xf32> -> vector<80x160xf32>
    %33 = arith.addf %28, %32 : vector<80x160xf32>
    %34 = vector.extract_strided_slice %19 {offsets = [24, 0], sizes = [80, 84], strides = [1, 1]} : vector<112x84xbf16> to vector<80x84xbf16>
    %c3 = arith.constant 3 : index
    %c0_24 = arith.constant 0 : index
    %c0_25 = arith.constant 0 : index
    %35 = vector.load %arg5[%c3, %c0_24, %c0_25] : memref<5x84x160xbf16, #tpu.memory_space<vmem>>, vector<1x84x160xbf16>
    %36 = vector.shape_cast %35 : vector<1x84x160xbf16> to vector<84x160xbf16>
    %cst_26 = arith.constant dense<0.000000e+00> : vector<80x160xf32>
    %37 = tpu.matmul %34, %36, %cst_26 {dimension_numbers = #tpu.dot_dimension_numbers<[1], [0], [0], [1], [0, 0, 1, 1], [], []>} : vector<80x84xbf16>, vector<84x160xbf16>, vector<80x160xf32> -> vector<80x160xf32>
    %38 = arith.addf %33, %37 : vector<80x160xf32>
    %39 = vector.extract_strided_slice %19 {offsets = [32, 0], sizes = [80, 84], strides = [1, 1]} : vector<112x84xbf16> to vector<80x84xbf16>
    %c4 = arith.constant 4 : index
    %c0_27 = arith.constant 0 : index
    %c0_28 = arith.constant 0 : index
    %40 = vector.load %arg5[%c4, %c0_27, %c0_28] : memref<5x84x160xbf16, #tpu.memory_space<vmem>>, vector<1x84x160xbf16>
    %41 = vector.shape_cast %40 : vector<1x84x160xbf16> to vector<84x160xbf16>
    %cst_29 = arith.constant dense<0.000000e+00> : vector<80x160xf32>
    %42 = tpu.matmul %39, %41, %cst_29 {dimension_numbers = #tpu.dot_dimension_numbers<[1], [0], [0], [1], [0, 0, 1, 1], [], []>} : vector<80x84xbf16>, vector<84x160xbf16>, vector<80x160xf32> -> vector<80x160xf32>
    %43 = arith.addf %38, %42 : vector<80x160xf32>
    %c0_30 = arith.constant 0 : index
    %c0_31 = arith.constant 0 : index
    %44 = vector.load %arg6[%c0_30, %c0_31] : memref<1x160xf32, #tpu.memory_space<vmem>>, vector<1x160xf32>
    %45 = vector.broadcast %44 : vector<1x160xf32> to vector<80x160xf32>
    %46 = arith.addf %43, %45 : vector<80x160xf32>
    %cst_32 = arith.constant 0.000000e+00 : f32
    %47 = vector.broadcast %cst_32 : f32 to vector<80x160xf32>
    %48 = arith.maximumf %46, %47 : vector<80x160xf32>
    %49 = arith.truncf %48 : vector<80x160xf32> to vector<80x160xbf16>
    %c0_33 = arith.constant 0 : index
    %c0_34 = arith.constant 0 : index
    %c0_35 = arith.constant 0 : index
    %50 = vector.load %arg7[%c0_33, %c0_34, %c0_35] : memref<2x40x80xbf16, #tpu.memory_space<vmem>>, vector<1x40x80xbf16>
    %51 = vector.shape_cast %50 : vector<1x40x80xbf16> to vector<40x80xbf16>
    %cst_36 = arith.constant dense<0.000000e+00> : vector<40x160xf32>
    %52 = tpu.matmul %51, %49, %cst_36 {dimension_numbers = #tpu.dot_dimension_numbers<[1], [0], [0], [1], [0, 0, 1, 1], [], []>} : vector<40x80xbf16>, vector<80x160xbf16>, vector<40x160xf32> -> vector<40x160xf32>
    %c1_37 = arith.constant 1 : index
    %c0_38 = arith.constant 0 : index
    %c0_39 = arith.constant 0 : index
    %53 = vector.load %arg7[%c1_37, %c0_38, %c0_39] : memref<2x40x80xbf16, #tpu.memory_space<vmem>>, vector<1x40x80xbf16>
    %54 = vector.shape_cast %53 : vector<1x40x80xbf16> to vector<40x80xbf16>
    %cst_40 = arith.constant dense<0.000000e+00> : vector<40x160xf32>
    %55 = tpu.matmul %54, %49, %cst_40 {dimension_numbers = #tpu.dot_dimension_numbers<[1], [0], [0], [1], [0, 0, 1, 1], [], []>} : vector<40x80xbf16>, vector<80x160xbf16>, vector<40x160xf32> -> vector<40x160xf32>
    %56 = arith.maximumf %52, %55 : vector<40x160xf32>
    %57 = arith.truncf %56 : vector<40x160xf32> to vector<40x160xbf16>
    %c0_41 = arith.constant 0 : index
    %c0_42 = arith.constant 0 : index
    %c0_43 = arith.constant 0 : index
    %58 = vector.load %arg8[%c0_41, %c0_42, %c0_43] : memref<2x160x80xbf16, #tpu.memory_space<vmem>>, vector<1x160x80xbf16>
    %59 = vector.shape_cast %58 : vector<1x160x80xbf16> to vector<160x80xbf16>
    %cst_44 = arith.constant dense<0.000000e+00> : vector<40x80xf32>
    %60 = tpu.matmul %57, %59, %cst_44 {dimension_numbers = #tpu.dot_dimension_numbers<[1], [0], [0], [1], [0, 0, 1, 1], [], []>} : vector<40x160xbf16>, vector<160x80xbf16>, vector<40x80xf32> -> vector<40x80xf32>
    %c1_45 = arith.constant 1 : index
    %c0_46 = arith.constant 0 : index
    %c0_47 = arith.constant 0 : index
    %61 = vector.load %arg8[%c1_45, %c0_46, %c0_47] : memref<2x160x80xbf16, #tpu.memory_space<vmem>>, vector<1x160x80xbf16>
    %62 = vector.shape_cast %61 : vector<1x160x80xbf16> to vector<160x80xbf16>
    %cst_48 = arith.constant dense<0.000000e+00> : vector<40x80xf32>
    %63 = tpu.matmul %57, %62, %cst_48 {dimension_numbers = #tpu.dot_dimension_numbers<[1], [0], [0], [1], [0, 0, 1, 1], [], []>} : vector<40x160xbf16>, vector<160x80xbf16>, vector<40x80xf32> -> vector<40x80xf32>
    %64 = arith.maximumf %60, %63 : vector<40x80xf32>
    %65 = arith.truncf %64 : vector<40x80xf32> to vector<40x80xbf16>
    %66 = vector.extract_strided_slice %65 {offsets = [0, 0], sizes = [8, 80], strides = [1, 1]} : vector<40x80xbf16> to vector<8x80xbf16>
    %c0_49 = arith.constant 0 : index
    %c0_50 = arith.constant 0 : index
    %c0_51 = arith.constant 0 : index
    %67 = vector.load %arg9[%c0_49, %c0_50, %c0_51] : memref<5x80x120xbf16, #tpu.memory_space<vmem>>, vector<1x80x120xbf16>
    %68 = vector.shape_cast %67 : vector<1x80x120xbf16> to vector<80x120xbf16>
    %cst_52 = arith.constant dense<0.000000e+00> : vector<8x120xf32>
    %69 = tpu.matmul %66, %68, %cst_52 {dimension_numbers = #tpu.dot_dimension_numbers<[1], [0], [0], [1], [0, 0, 1, 1], [], []>} : vector<8x80xbf16>, vector<80x120xbf16>, vector<8x120xf32> -> vector<8x120xf32>
    %70 = vector.extract_strided_slice %65 {offsets = [8, 0], sizes = [8, 80], strides = [1, 1]} : vector<40x80xbf16> to vector<8x80xbf16>
    %c1_53 = arith.constant 1 : index
    %c0_54 = arith.constant 0 : index
    %c0_55 = arith.constant 0 : index
    %71 = vector.load %arg9[%c1_53, %c0_54, %c0_55] : memref<5x80x120xbf16, #tpu.memory_space<vmem>>, vector<1x80x120xbf16>
    %72 = vector.shape_cast %71 : vector<1x80x120xbf16> to vector<80x120xbf16>
    %cst_56 = arith.constant dense<0.000000e+00> : vector<8x120xf32>
    %73 = tpu.matmul %70, %72, %cst_56 {dimension_numbers = #tpu.dot_dimension_numbers<[1], [0], [0], [1], [0, 0, 1, 1], [], []>} : vector<8x80xbf16>, vector<80x120xbf16>, vector<8x120xf32> -> vector<8x120xf32>
    %74 = arith.addf %69, %73 : vector<8x120xf32>
    %75 = vector.extract_strided_slice %65 {offsets = [16, 0], sizes = [8, 80], strides = [1, 1]} : vector<40x80xbf16> to vector<8x80xbf16>
    %c2_57 = arith.constant 2 : index
    %c0_58 = arith.constant 0 : index
    %c0_59 = arith.constant 0 : index
    %76 = vector.load %arg9[%c2_57, %c0_58, %c0_59] : memref<5x80x120xbf16, #tpu.memory_space<vmem>>, vector<1x80x120xbf16>
    %77 = vector.shape_cast %76 : vector<1x80x120xbf16> to vector<80x120xbf16>
    %cst_60 = arith.constant dense<0.000000e+00> : vector<8x120xf32>
    %78 = tpu.matmul %75, %77, %cst_60 {dimension_numbers = #tpu.dot_dimension_numbers<[1], [0], [0], [1], [0, 0, 1, 1], [], []>} : vector<8x80xbf16>, vector<80x120xbf16>, vector<8x120xf32> -> vector<8x120xf32>
    %79 = arith.addf %74, %78 : vector<8x120xf32>
    %80 = vector.extract_strided_slice %65 {offsets = [24, 0], sizes = [8, 80], strides = [1, 1]} : vector<40x80xbf16> to vector<8x80xbf16>
    %c3_61 = arith.constant 3 : index
    %c0_62 = arith.constant 0 : index
    %c0_63 = arith.constant 0 : index
    %81 = vector.load %arg9[%c3_61, %c0_62, %c0_63] : memref<5x80x120xbf16, #tpu.memory_space<vmem>>, vector<1x80x120xbf16>
    %82 = vector.shape_cast %81 : vector<1x80x120xbf16> to vector<80x120xbf16>
    %cst_64 = arith.constant dense<0.000000e+00> : vector<8x120xf32>
    %83 = tpu.matmul %80, %82, %cst_64 {dimension_numbers = #tpu.dot_dimension_numbers<[1], [0], [0], [1], [0, 0, 1, 1], [], []>} : vector<8x80xbf16>, vector<80x120xbf16>, vector<8x120xf32> -> vector<8x120xf32>
    %84 = arith.addf %79, %83 : vector<8x120xf32>
    %85 = vector.extract_strided_slice %65 {offsets = [32, 0], sizes = [8, 80], strides = [1, 1]} : vector<40x80xbf16> to vector<8x80xbf16>
    %c4_65 = arith.constant 4 : index
    %c0_66 = arith.constant 0 : index
    %c0_67 = arith.constant 0 : index
    %86 = vector.load %arg9[%c4_65, %c0_66, %c0_67] : memref<5x80x120xbf16, #tpu.memory_space<vmem>>, vector<1x80x120xbf16>
    %87 = vector.shape_cast %86 : vector<1x80x120xbf16> to vector<80x120xbf16>
    %cst_68 = arith.constant dense<0.000000e+00> : vector<8x120xf32>
    %88 = tpu.matmul %85, %87, %cst_68 {dimension_numbers = #tpu.dot_dimension_numbers<[1], [0], [0], [1], [0, 0, 1, 1], [], []>} : vector<8x80xbf16>, vector<80x120xbf16>, vector<8x120xf32> -> vector<8x120xf32>
    %89 = arith.addf %84, %88 : vector<8x120xf32>
    %c0_69 = arith.constant 0 : index
    %c0_70 = arith.constant 0 : index
    %90 = vector.load %arg10[%c0_69, %c0_70] : memref<1x120xf32, #tpu.memory_space<vmem>>, vector<1x120xf32>
    %91 = vector.broadcast %90 : vector<1x120xf32> to vector<8x120xf32>
    %92 = arith.addf %89, %91 : vector<8x120xf32>
    %cst_71 = arith.constant 0.000000e+00 : f32
    %93 = vector.broadcast %cst_71 : f32 to vector<8x120xf32>
    %94 = arith.maximumf %92, %93 : vector<8x120xf32>
    %95 = arith.truncf %94 : vector<8x120xf32> to vector<8x120xbf16>
    %c0_72 = arith.constant 0 : index
    %c0_73 = arith.constant 0 : index
    %96 = vector.load %arg11[%c0_72, %c0_73] : memref<120x84xbf16, #tpu.memory_space<vmem>>, vector<120x84xbf16>
    %cst_74 = arith.constant dense<0.000000e+00> : vector<8x84xf32>
    %97 = tpu.matmul %95, %96, %cst_74 {dimension_numbers = #tpu.dot_dimension_numbers<[1], [0], [0], [1], [0, 0, 1, 1], [], []>} : vector<8x120xbf16>, vector<120x84xbf16>, vector<8x84xf32> -> vector<8x84xf32>
    %c0_75 = arith.constant 0 : index
    %c0_76 = arith.constant 0 : index
    %98 = vector.load %arg12[%c0_75, %c0_76] : memref<1x84xf32, #tpu.memory_space<vmem>>, vector<1x84xf32>
    %99 = vector.broadcast %98 : vector<1x84xf32> to vector<8x84xf32>
    %100 = arith.addf %97, %99 : vector<8x84xf32>
    %cst_77 = arith.constant 0.000000e+00 : f32
    %101 = vector.broadcast %cst_77 : f32 to vector<8x84xf32>
    %102 = arith.maximumf %100, %101 : vector<8x84xf32>
    %103 = arith.truncf %102 : vector<8x84xf32> to vector<8x84xbf16>
    %c0_78 = arith.constant 0 : index
    %c0_79 = arith.constant 0 : index
    %104 = vector.load %arg13[%c0_78, %c0_79] : memref<84x128xbf16, #tpu.memory_space<vmem>>, vector<84x128xbf16>
    %cst_80 = arith.constant dense<0.000000e+00> : vector<8x128xf32>
    %105 = tpu.matmul %103, %104, %cst_80 {dimension_numbers = #tpu.dot_dimension_numbers<[1], [0], [0], [1], [0, 0, 1, 1], [], []>} : vector<8x84xbf16>, vector<84x128xbf16>, vector<8x128xf32> -> vector<8x128xf32>
    %c0_81 = arith.constant 0 : index
    %c0_82 = arith.constant 0 : index
    %106 = vector.load %arg14[%c0_81, %c0_82] : memref<1x128xf32, #tpu.memory_space<vmem>>, vector<1x128xf32>
    %107 = vector.broadcast %106 : vector<1x128xf32> to vector<8x128xf32>
    %108 = arith.addf %105, %107 : vector<8x128xf32>
    %c0_83 = arith.constant 0 : index
    %c0_84 = arith.constant 0 : index
    %109 = vector.load %arg15[%c0_83, %c0_84] : memref<8x128xf32, #tpu.memory_space<vmem>>, vector<8x128xf32>
    tpu.vector_store %arg15[%c0_83, %c0_84], %108 {strides = array<i32>} : memref<8x128xf32, #tpu.memory_space<vmem>>, vector<8x128xf32>,
    return
  }
  func.func @transform_0(%arg0: i32) -> (i32, i32) {
    %c0_i32 = arith.constant 0 : i32
    %c0_i32_0 = arith.constant 0 : i32
    return %arg0, %c0_i32 : i32, i32
  }
  func.func @transform_1(%arg0: i32) -> (i32, i32) {
    %c0_i32 = arith.constant 0 : i32
    %c0_i32_0 = arith.constant 0 : i32
    %c0_i32_1 = arith.constant 0 : i32
    return %c0_i32, %c0_i32_0 : i32, i32
  }
  func.func @transform_2(%arg0: i32) -> (i32, i32) {
    %c0_i32 = arith.constant 0 : i32
    %c0_i32_0 = arith.constant 0 : i32
    %c0_i32_1 = arith.constant 0 : i32
    return %c0_i32, %c0_i32_0 : i32, i32
  }
  func.func @transform_3(%arg0: i32) -> (i32, i32, i32) {
    %c0_i32 = arith.constant 0 : i32
    %c0_i32_0 = arith.constant 0 : i32
    %c0_i32_1 = arith.constant 0 : i32
    %c0_i32_2 = arith.constant 0 : i32
    return %c0_i32, %c0_i32_0, %c0_i32_1 : i32, i32, i32
  }
  func.func @transform_4(%arg0: i32) -> (i32, i32, i32) {
    %c0_i32 = arith.constant 0 : i32
    %c0_i32_0 = arith.constant 0 : i32
    %c0_i32_1 = arith.constant 0 : i32
    %c0_i32_2 = arith.constant 0 : i32
    return %c0_i32, %c0_i32_0, %c0_i32_1 : i32, i32, i32
  }
  func.func @transform_5(%arg0: i32) -> (i32, i32) {
    %c0_i32 = arith.constant 0 : i32
    %c0_i32_0 = arith.constant 0 : i32
    %c0_i32_1 = arith.constant 0 : i32
    return %c0_i32, %c0_i32_0 : i32, i32
  }
  func.func @transform_6(%arg0: i32) -> (i32, i32, i32) {
    %c0_i32 = arith.constant 0 : i32
    %c0_i32_0 = arith.constant 0 : i32
    %c0_i32_1 = arith.constant 0 : i32
    %c0_i32_2 = arith.constant 0 : i32
    return %c0_i32, %c0_i32_0, %c0_i32_1 : i32, i32, i32
  }
  func.func @transform_7(%arg0: i32) -> (i32, i32, i32) {
    %c0_i32 = arith.constant 0 : i32
    %c0_i32_0 = arith.constant 0 : i32
    %c0_i32_1 = arith.constant 0 : i32
    %c0_i32_2 = arith.constant 0 : i32
    return %c0_i32, %c0_i32_0, %c0_i32_1 : i32, i32, i32
  }
  func.func @transform_8(%arg0: i32) -> (i32, i32, i32) {
    %c0_i32 = arith.constant 0 : i32
    %c0_i32_0 = arith.constant 0 : i32
    %c0_i32_1 = arith.constant 0 : i32
    %c0_i32_2 = arith.constant 0 : i32
    return %c0_i32, %c0_i32_0, %c0_i32_1 : i32, i32, i32
  }
  func.func @transform_9(%arg0: i32) -> (i32, i32) {
    %c0_i32 = arith.constant 0 : i32
    %c0_i32_0 = arith.constant 0 : i32
    %c0_i32_1 = arith.constant 0 : i32
    return %c0_i32, %c0_i32_0 : i32, i32
  }
  func.func @transform_10(%arg0: i32) -> (i32, i32) {
    %c0_i32 = arith.constant 0 : i32
    %c0_i32_0 = arith.constant 0 : i32
    %c0_i32_1 = arith.constant 0 : i32
    return %c0_i32, %c0_i32_0 : i32, i32
  }
  func.func @transform_11(%arg0: i32) -> (i32, i32) {
    %c0_i32 = arith.constant 0 : i32
    %c0_i32_0 = arith.constant 0 : i32
    %c0_i32_1 = arith.constant 0 : i32
    return %c0_i32, %c0_i32_0 : i32, i32
  }
  func.func @transform_12(%arg0: i32) -> (i32, i32) {
    %c0_i32 = arith.constant 0 : i32
    %c0_i32_0 = arith.constant 0 : i32
    %c0_i32_1 = arith.constant 0 : i32
    return %c0_i32, %c0_i32_0 : i32, i32
  }
  func.func @transform_13(%arg0: i32) -> (i32, i32) {
    %c0_i32 = arith.constant 0 : i32
    %c0_i32_0 = arith.constant 0 : i32
    %c0_i32_1 = arith.constant 0 : i32
    return %c0_i32, %c0_i32_0 : i32, i32
  }
  func.func @transform_14(%arg0: i32) -> (i32, i32) {
    %c0_i32 = arith.constant 0 : i32
    %c0_i32_0 = arith.constant 0 : i32
    return %arg0, %c0_i32 : i32, i32
  }
}

</mosaic_0001>

<llo_original>
// kernel: net_forward.1
$region0: #{net_forward.1}
  #allocation0 [shape = 'u32[]', space=smem, size = 0x4, offset = 0x4, fixed_abs, tag = 'smem constant byte address 0x4 - core index']
  #allocation1 [shape = 'u32[72,128]{1,0:T(1,128)}', space=vmem, size = 0x9000, scoped, tag = 'internal scratch']
  %s0 = inlined_call_operand.vmem [shape: bf16[448,480], index: 0, kind: input, shape index: {}]
  %s1 = inlined_call_operand.vmem [shape: bf16[480,168], index: 1, kind: input, shape index: {}]
  %s2 = inlined_call_operand.vmem [shape: f32[1,168], index: 2, kind: input, shape index: {}]
  %s3 = inlined_call_operand.vmem [shape: bf16[2,168,84], index: 3, kind: input, shape index: {}]
  %s4 = inlined_call_operand.vmem [shape: bf16[5,84,160], index: 4, kind: input, shape index: {}]
  %s5 = inlined_call_operand.vmem [shape: f32[1,160], index: 5, kind: input, shape index: {}]
  %s6 = inlined_call_operand.vmem [shape: bf16[2,40,80], index: 6, kind: input, shape index: {}]
  %s7 = inlined_call_operand.vmem [shape: bf16[2,160,80], index: 7, kind: input, shape index: {}]
  %s8 = inlined_call_operand.vmem [shape: bf16[5,80,120], index: 8, kind: input, shape index: {}]
  %s9 = inlined_call_operand.vmem [shape: f32[1,120], index: 9, kind: input, shape index: {}]
  %s10 = inlined_call_operand.vmem [shape: bf16[120,84], index: 10, kind: input, shape index: {}]
  %s11 = inlined_call_operand.vmem [shape: f32[1,84], index: 11, kind: input, shape index: {}]
  %s12 = inlined_call_operand.vmem [shape: bf16[84,128], index: 12, kind: input, shape index: {}]
  %s13 = inlined_call_operand.vmem [shape: f32[1,128], index: 13, kind: input, shape index: {}]
  %s14 = inlined_call_operand.hbm [shape: f32[16,128], index: 14, kind: output, shape index: {}]
  %s15 = sld [smem:[#allocation0]]
  $region89: #{net_forward.1} parent=0
    _
  %s17 = ssub.s32 1, %s15
  %s18 = scalar_select 0, %s17, %s15
  $region1: #{net_forward.1} parent=0
    #allocation2 [shape = 'u8[8192]{0}', space=vmem, size = 0x2000, scoped, tag = 'output window, operand 0']
    #allocation3 [shape = 's32[2]{0}', space=sflag, size = 0x8, scoped, tag = 'scoped memory for net_forward.1']
    %19 = vsyncpa [#allocation3], 0
    %s20 = scalar_lea.sflag [#allocation3], 1
    %21 = vsyncpa %s20, 0
    loop: start=0, step=1, limit=4
    $region2: #{net_forward.1} parent=1 // loop_pre_header
      _
    $region3: #{net_forward.1} parent=1 // loop_header
      %s23 = sphi 0, %s27
      %p24 = scmp.ge.s32.totalorder %s23, 4
      %s33 = sphi 0, %s35
      %s36 = sphi 0, %s33
      %s37 = sphi 0, %s36
      %s53 = sphi 0, %s37
      %s57 = sphi 0, %s57
      %s59 = sphi 0, %s57
      %s60 = sphi 0, %s59
      %s74 = sphi 0, %s60
      %s78 = sphi 0, %s78
      %s80 = sphi 0, %s78
      %s81 = sphi 0, %s80
      %s95 = sphi 0, %s81
      %s99 = sphi 0, %s99
      %s101 = sphi 0, %s99
      %s102 = sphi 0, %s101
      %s116 = sphi 0, %s102
      %s120 = sphi 0, %s120
      %s122 = sphi 0, %s120
      %s123 = sphi 0, %s122
      %s137 = sphi 0, %s123
      %s141 = sphi 0, %s141
      %s143 = sphi 0, %s141
      %s144 = sphi 0, %s143
      %s158 = sphi 0, %s144
      %s162 = sphi 0, %s162
      %s164 = sphi 0, %s162
      %s165 = sphi 0, %s164
      %s179 = sphi 0, %s165
      %s183 = sphi 0, %s183
      %s185 = sphi 0, %s183
      %s186 = sphi 0, %s185
      %s200 = sphi 0, %s186
      %s204 = sphi 0, %s204
      %s206 = sphi 0, %s204
      %s207 = sphi 0, %s206
      %s221 = sphi 0, %s207
      %s225 = sphi 0, %s225
      %s227 = sphi 0, %s225
      %s228 = sphi 0, %s227
      %s242 = sphi 0, %s228
      %s246 = sphi 0, %s246
      %s248 = sphi 0, %s246
      %s249 = sphi 0, %s248
      %s263 = sphi 0, %s249
      %s267 = sphi 0, %s267
      %s269 = sphi 0, %s267
      %s270 = sphi 0, %s269
      %s284 = sphi 0, %s270
      %s288 = sphi 0, %s288
      %s290 = sphi 0, %s288
      %s291 = sphi 0, %s290
      %s305 = sphi 0, %s291
      %s309 = sphi 0, %s309
      %s311 = sphi 0, %s309
      %s312 = sphi 0, %s311
      %s326 = sphi 0, %s312
      %s332 = sphi 0, %s334
      %s335 = sphi 0, %s332
      %s336 = sphi 0, %s335
      %s352 = sphi 0, %s336
    $region4: #{net_forward.1} parent=1 // loop_header_branch
      %26 = sbr.rel (%p24) target = $region8
    $region5: #{net_forward.1} parent=1 // loop_body
      %s28 = ssub.s32 %s23, 1
      %s29 = ssub.s32 %s23, 2
      %s30 = sadd.s32 %s23, 1
      %s31 = ssub.s32 %s23, %s30
      %p32 = scmp.eq.s32.totalorder %s31, 0
      %s34 = sadd.s32 %s33, 1
      %s35 = scalar_select %p32, %s33, %s34
      %p38 = pneg %p32
      %p39 = scmp.eq.s32.totalorder %s23, 1
      %p40 = por %p38, %p39
      %p41 = scmp.ne.s32.totalorder %s33, %s36
      %p42 = scmp.eq.s32.totalorder %s23, 0
      %p43 = por %p41, %p42
      %p44 = scmp.ne.s32.totalorder %s33, %s36
      %p45 = scmp.eq.s32.totalorder %s28, 1
      %p46 = por %p44, %p45
      %p47 = scmp.ne.s32.totalorder %s36, %s37
      %p48 = scmp.eq.s32.totalorder %s28, 0
      %p49 = por %p47, %p48
      %p50 = scmp.ne.s32.totalorder %s36, %s37
      %p51 = scmp.eq.s32.totalorder %s29, 1
      %p52 = por %p50, %p51
      %p54 = scmp.ne.s32.totalorder %s37, %s53
      %p55 = scmp.eq.s32.totalorder %s29, 0
      %p56 = por %p54, %p55
      %s58 = sadd.s32 %s57, 1
      %p61 = scmp.eq.s32.totalorder %s23, 1
      %p62 = scmp.ne.s32.totalorder %s57, %s59
      %p63 = scmp.eq.s32.totalorder %s23, 0
      %p64 = por %p62, %p63
      %p65 = scmp.ne.s32.totalorder %s57, %s59
      %p66 = scmp.eq.s32.totalorder %s28, 1
      %p67 = por %p65, %p66
      %p68 = scmp.ne.s32.totalorder %s59, %s60
      %p69 = scmp.eq.s32.totalorder %s28, 0
      %p70 = por %p68, %p69
      %p71 = scmp.ne.s32.totalorder %s59, %s60
      %p72 = scmp.eq.s32.totalorder %s29, 1
      %p73 = por %p71, %p72
      %p75 = scmp.ne.s32.totalorder %s60, %s74
      %p76 = scmp.eq.s32.totalorder %s29, 0
      %p77 = por %p75, %p76
      %s79 = sadd.s32 %s78, 1
      %p82 = scmp.eq.s32.totalorder %s23, 1
      %p83 = scmp.ne.s32.totalorder %s78, %s80
      %p84 = scmp.eq.s32.totalorder %s23, 0
      %p85 = por %p83, %p84
      %p86 = scmp.ne.s32.totalorder %s78, %s80
      %p87 = scmp.eq.s32.totalorder %s28, 1
      %p88 = por %p86, %p87
      %p89 = scmp.ne.s32.totalorder %s80, %s81
      %p90 = scmp.eq.s32.totalorder %s28, 0
      %p91 = por %p89, %p90
      %p92 = scmp.ne.s32.totalorder %s80, %s81
      %p93 = scmp.eq.s32.totalorder %s29, 1
      %p94 = por %p92, %p93
      %p96 = scmp.ne.s32.totalorder %s81, %s95
      %p97 = scmp.eq.s32.totalorder %s29, 0
      %p98 = por %p96, %p97
      %s100 = sadd.s32 %s99, 1
      %p103 = scmp.eq.s32.totalorder %s23, 1
      %p104 = scmp.ne.s32.totalorder %s99, %s101
      %p105 = scmp.eq.s32.totalorder %s23, 0
      %p106 = por %p104, %p105
      %p107 = scmp.ne.s32.totalorder %s99, %s101
      %p108 = scmp.eq.s32.totalorder %s28, 1
      %p109 = por %p107, %p108
      %p110 = scmp.ne.s32.totalorder %s101, %s102
      %p111 = scmp.eq.s32.totalorder %s28, 0
      %p112 = por %p110, %p111
      %p113 = scmp.ne.s32.totalorder %s101, %s102
      %p114 = scmp.eq.s32.totalorder %s29, 1
      %p115 = por %p113, %p114
      %p117 = scmp.ne.s32.totalorder %s102, %s116
      %p118 = scmp.eq.s32.totalorder %s29, 0
      %p119 = por %p117, %p118
      %s121 = sadd.s32 %s120, 1
      %p124 = scmp.eq.s32.totalorder %s23, 1
      %p125 = scmp.ne.s32.totalorder %s120, %s122
      %p126 = scmp.eq.s32.totalorder %s23, 0
      %p127 = por %p125, %p126
      %p128 = scmp.ne.s32.totalorder %s120, %s122
      %p129 = scmp.eq.s32.totalorder %s28, 1
      %p130 = por %p128, %p129
      %p131 = scmp.ne.s32.totalorder %s122, %s123
      %p132 = scmp.eq.s32.totalorder %s28, 0
      %p133 = por %p131, %p132
      %p134 = scmp.ne.s32.totalorder %s122, %s123
      %p135 = scmp.eq.s32.totalorder %s29, 1
      %p136 = por %p134, %p135
      %p138 = scmp.ne.s32.totalorder %s123, %s137
      %p139 = scmp.eq.s32.totalorder %s29, 0
      %p140 = por %p138, %p139
      %s142 = sadd.s32 %s141, 1
      %p145 = scmp.eq.s32.totalorder %s23, 1
      %p146 = scmp.ne.s32.totalorder %s141, %s143
      %p147 = scmp.eq.s32.totalorder %s23, 0
      %p148 = por %p146, %p147
      %p149 = scmp.ne.s32.totalorder %s141, %s143
      %p150 = scmp.eq.s32.totalorder %s28, 1
      %p151 = por %p149, %p150
      %p152 = scmp.ne.s32.totalorder %s143, %s144
      %p153 = scmp.eq.s32.totalorder %s28, 0
      %p154 = por %p152, %p153
      %p155 = scmp.ne.s32.totalorder %s143, %s144
      %p156 = scmp.eq.s32.totalorder %s29, 1
      %p157 = por %p155, %p156
      %p159 = scmp.ne.s32.totalorder %s144, %s158
      %p160 = scmp.eq.s32.totalorder %s29, 0
      %p161 = por %p159, %p160
      %s163 = sadd.s32 %s162, 1
      %p166 = scmp.eq.s32.totalorder %s23, 1
      %p167 = scmp.ne.s32.totalorder %s162, %s164
      %p168 = scmp.eq.s32.totalorder %s23, 0
      %p169 = por %p167, %p168
      %p170 = scmp.ne.s32.totalorder %s162, %s164
      %p171 = scmp.eq.s32.totalorder %s28, 1
      %p172 = por %p170, %p171
      %p173 = scmp.ne.s32.totalorder %s164, %s165
      %p174 = scmp.eq.s32.totalorder %s28, 0
      %p175 = por %p173, %p174
      %p176 = scmp.ne.s32.totalorder %s164, %s165
      %p177 = scmp.eq.s32.totalorder %s29, 1
      %p178 = por %p176, %p177
      %p180 = scmp.ne.s32.totalorder %s165, %s179
      %p181 = scmp.eq.s32.totalorder %s29, 0
      %p182 = por %p180, %p181
      %s184 = sadd.s32 %s183, 1
      %p187 = scmp.eq.s32.totalorder %s23, 1
      %p188 = scmp.ne.s32.totalorder %s183, %s185
      %p189 = scmp.eq.s32.totalorder %s23, 0
      %p190 = por %p188, %p189
      %p191 = scmp.ne.s32.totalorder %s183, %s185
      %p192 = scmp.eq.s32.totalorder %s28, 1
      %p193 = por %p191, %p192
      %p194 = scmp.ne.s32.totalorder %s185, %s186
      %p195 = scmp.eq.s32.totalorder %s28, 0
      %p196 = por %p194, %p195
      %p197 = scmp.ne.s32.totalorder %s185, %s186
      %p198 = scmp.eq.s32.totalorder %s29, 1
      %p199 = por %p197, %p198
      %p201 = scmp.ne.s32.totalorder %s186, %s200
      %p202 = scmp.eq.s32.totalorder %s29, 0
      %p203 = por %p201, %p202
      %s205 = sadd.s32 %s204, 1
      %p208 = scmp.eq.s32.totalorder %s23, 1
      %p209 = scmp.ne.s32.totalorder %s204, %s206
      %p210 = scmp.eq.s32.totalorder %s23, 0
      %p211 = por %p209, %p210
      %p212 = scmp.ne.s32.totalorder %s204, %s206
      %p213 = scmp.eq.s32.totalorder %s28, 1
      %p214 = por %p212, %p213
      %p215 = scmp.ne.s32.totalorder %s206, %s207
      %p216 = scmp.eq.s32.totalorder %s28, 0
      %p217 = por %p215, %p216
      %p218 = scmp.ne.s32.totalorder %s206, %s207
      %p219 = scmp.eq.s32.totalorder %s29, 1
      %p220 = por %p218, %p219
      %p222 = scmp.ne.s32.totalorder %s207, %s221
      %p223 = scmp.eq.s32.totalorder %s29, 0
      %p224 = por %p222, %p223
      %s226 = sadd.s32 %s225, 1
      %p229 = scmp.eq.s32.totalorder %s23, 1
      %p230 = scmp.ne.s32.totalorder %s225, %s227
      %p231 = scmp.eq.s32.totalorder %s23, 0
      %p232 = por %p230, %p231
      %p233 = scmp.ne.s32.totalorder %s225, %s227
      %p234 = scmp.eq.s32.totalorder %s28, 1
      %p235 = por %p233, %p234
      %p236 = scmp.ne.s32.totalorder %s227, %s228
      %p237 = scmp.eq.s32.totalorder %s28, 0
      %p238 = por %p236, %p237
      %p239 = scmp.ne.s32.totalorder %s227, %s228
      %p240 = scmp.eq.s32.totalorder %s29, 1
      %p241 = por %p239, %p240
      %p243 = scmp.ne.s32.totalorder %s228, %s242
      %p244 = scmp.eq.s32.totalorder %s29, 0
      %p245 = por %p243, %p244
      %s247 = sadd.s32 %s246, 1
      %p250 = scmp.eq.s32.totalorder %s23, 1
      %p251 = scmp.ne.s32.totalorder %s246, %s248
      %p252 = scmp.eq.s32.totalorder %s23, 0
      %p253 = por %p251, %p252
      %p254 = scmp.ne.s32.totalorder %s246, %s248
      %p255 = scmp.eq.s32.totalorder %s28, 1
      %p256 = por %p254, %p255
      %p257 = scmp.ne.s32.totalorder %s248, %s249
      %p258 = scmp.eq.s32.totalorder %s28, 0
      %p259 = por %p257, %p258
      %p260 = scmp.ne.s32.totalorder %s248, %s249
      %p261 = scmp.eq.s32.totalorder %s29, 1
      %p262 = por %p260, %p261
      %p264 = scmp.ne.s32.totalorder %s249, %s263
      %p265 = scmp.eq.s32.totalorder %s29, 0
      %p266 = por %p264, %p265
      %s268 = sadd.s32 %s267, 1
      %p271 = scmp.eq.s32.totalorder %s23, 1
      %p272 = scmp.ne.s32.totalorder %s267, %s269
      %p273 = scmp.eq.s32.totalorder %s23, 0
      %p274 = por %p272, %p273
      %p275 = scmp.ne.s32.totalorder %s267, %s269
      %p276 = scmp.eq.s32.totalorder %s28, 1
      %p277 = por %p275, %p276
      %p278 = scmp.ne.s32.totalorder %s269, %s270
      %p279 = scmp.eq.s32.totalorder %s28, 0
      %p280 = por %p278, %p279
      %p281 = scmp.ne.s32.totalorder %s269, %s270
      %p282 = scmp.eq.s32.totalorder %s29, 1
      %p283 = por %p281, %p282
      %p285 = scmp.ne.s32.totalorder %s270, %s284
      %p286 = scmp.eq.s32.totalorder %s29, 0
      %p287 = por %p285, %p286
      %s289 = sadd.s32 %s288, 1
      %p292 = scmp.eq.s32.totalorder %s23, 1
      %p293 = scmp.ne.s32.totalorder %s288, %s290
      %p294 = scmp.eq.s32.totalorder %s23, 0
      %p295 = por %p293, %p294
      %p296 = scmp.ne.s32.totalorder %s288, %s290
      %p297 = scmp.eq.s32.totalorder %s28, 1
      %p298 = por %p296, %p297
      %p299 = scmp.ne.s32.totalorder %s290, %s291
      %p300 = scmp.eq.s32.totalorder %s28, 0
      %p301 = por %p299, %p300
      %p302 = scmp.ne.s32.totalorder %s290, %s291
      %p303 = scmp.eq.s32.totalorder %s29, 1
      %p304 = por %p302, %p303
      %p306 = scmp.ne.s32.totalorder %s291, %s305
      %p307 = scmp.eq.s32.totalorder %s29, 0
      %p308 = por %p306, %p307
      %s310 = sadd.s32 %s309, 1
      %p313 = scmp.eq.s32.totalorder %s23, 1
      %p314 = scmp.ne.s32.totalorder %s309, %s311
      %p315 = scmp.eq.s32.totalorder %s23, 0
      %p316 = por %p314, %p315
      %p317 = scmp.ne.s32.totalorder %s309, %s311
      %p318 = scmp.eq.s32.totalorder %s28, 1
      %p319 = por %p317, %p318
      %p320 = scmp.ne.s32.totalorder %s311, %s312
      %p321 = scmp.eq.s32.totalorder %s28, 0
      %p322 = por %p320, %p321
      %p323 = scmp.ne.s32.totalorder %s311, %s312
      %p324 = scmp.eq.s32.totalorder %s29, 1
      %p325 = por %p323, %p324
      %p327 = scmp.ne.s32.totalorder %s312, %s326
      %p328 = scmp.eq.s32.totalorder %s29, 0
      %p329 = por %p327, %p328
      %s330 = ssub.s32 %s23, %s30
      %p331 = scmp.eq.s32.totalorder %s330, 0
      %s333 = sadd.s32 %s332, 1
      %s334 = scalar_select %p331, %s332, %s333
      %p337 = pneg %p331
      %p338 = scmp.eq.s32.totalorder %s23, 1
      %p339 = por %p337, %p338
      %p340 = scmp.ne.s32.totalorder %s332, %s335
      %p341 = scmp.eq.s32.totalorder %s23, 0
      %p342 = por %p340, %p341
      %p343 = scmp.ne.s32.totalorder %s332, %s335
      %p344 = scmp.eq.s32.totalorder %s28, 1
      %p345 = por %p343, %p344
      %p346 = scmp.ne.s32.totalorder %s335, %s336
      %p347 = scmp.eq.s32.totalorder %s28, 0
      %p348 = por %p346, %p347
      %p349 = scmp.ne.s32.totalorder %s335, %s336
      %p350 = scmp.eq.s32.totalorder %s29, 1
      %p351 = por %p349, %p350
      %p353 = scmp.ne.s32.totalorder %s336, %s352
      %p354 = scmp.eq.s32.totalorder %s29, 0
      %p355 = por %p353, %p354
      %p356 = scmp.le.s32.totalorder 1, %s23
      %p357 = scmp.lt.s32.totalorder %s23, 3
      %p358 = pnand %p356, %p357
      %p359 = pneg %p358
      // Predicated region
      $region9: #{net_forward.1} parent=5 // pred_check
        _
      $region10: #{net_forward.1} parent=5 // pred_check_branch
        %361 = sbr.rel (%p358) target = $region12
      $region11: #{net_forward.1} parent=5 // pred_region
        %s362 = ssub.s32 %s23, 1
        // Predicated region
        $region13: #{net_forward.1} parent=11 // pred_check
          %p363 = pneg %p70
        $region14: #{net_forward.1} parent=11 // pred_check_branch
          %365 = sbr.rel (%p363) target = $region16
        $region15: #{net_forward.1} parent=11 // pred_region
          _
        $region16: #{net_forward.1} parent=11 // pred_fallthru
          _
        // Predicated region
        $region17: #{net_forward.1} parent=11 // pred_check
          %p366 = pneg %p91
        $region18: #{net_forward.1} parent=11 // pred_check_branch
          %368 = sbr.rel (%p366) target = $region20
        $region19: #{net_forward.1} parent=11 // pred_region
          _
        $region20: #{net_forward.1} parent=11 // pred_fallthru
          _
        // Predicated region
        $region21: #{net_forward.1} parent=11 // pred_check
          %p369 = pneg %p112
        $region22: #{net_forward.1} parent=11 // pred_check_branch
          %371 = sbr.rel (%p369) target = $region24
        $region23: #{net_forward.1} parent=11 // pred_region
          _
        $region24: #{net_forward.1} parent=11 // pred_fallthru
          _
        // Predicated region
        $region25: #{net_forward.1} parent=11 // pred_check
          %p372 = pneg %p133
        $region26: #{net_forward.1} parent=11 // pred_check_branch
          %374 = sbr.rel (%p372) target = $region28
        $region27: #{net_forward.1} parent=11 // pred_region
          _
        $region28: #{net_forward.1} parent=11 // pred_fallthru
          _
        // Predicated region
        $region29: #{net_forward.1} parent=11 // pred_check
          %p375 = pneg %p154
        $region30: #{net_forward.1} parent=11 // pred_check_branch
          %377 = sbr.rel (%p375) target = $region32
        $region31: #{net_forward.1} parent=11 // pred_region
          _
        $region32: #{net_forward.1} parent=11 // pred_fallthru
          _
        // Predicated region
        $region33: #{net_forward.1} parent=11 // pred_check
          %p378 = pneg %p175
        $region34: #{net_forward.1} parent=11 // pred_check_branch
          %380 = sbr.rel (%p378) target = $region36
        $region35: #{net_forward.1} parent=11 // pred_region
          _
        $region36: #{net_forward.1} parent=11 // pred_fallthru
          _
        // Predicated region
        $region37: #{net_forward.1} parent=11 // pred_check
          %p381 = pneg %p196
        $region38: #{net_forward.1} parent=11 // pred_check_branch
          %383 = sbr.rel (%p381) target = $region40
        $region39: #{net_forward.1} parent=11 // pred_region
          _
        $region40: #{net_forward.1} parent=11 // pred_fallthru
          _
        // Predicated region
        $region41: #{net_forward.1} parent=11 // pred_check
          %p384 = pneg %p217
        $region42: #{net_forward.1} parent=11 // pred_check_branch
          %386 = sbr.rel (%p384) target = $region44
        $region43: #{net_forward.1} parent=11 // pred_region
          _
        $region44: #{net_forward.1} parent=11 // pred_fallthru
          _
        // Predicated region
        $region45: #{net_forward.1} parent=11 // pred_check
          %p387 = pneg %p238
        $region46: #{net_forward.1} parent=11 // pred_check_branch
          %389 = sbr.rel (%p387) target = $region48
        $region47: #{net_forward.1} parent=11 // pred_region
          _
        $region48: #{net_forward.1} parent=11 // pred_fallthru
          _
        // Predicated region
        $region49: #{net_forward.1} parent=11 // pred_check
          %p390 = pneg %p259
        $region50: #{net_forward.1} parent=11 // pred_check_branch
          %392 = sbr.rel (%p390) target = $region52
        $region51: #{net_forward.1} parent=11 // pred_region
          _
        $region52: #{net_forward.1} parent=11 // pred_fallthru
          _
        // Predicated region
        $region53: #{net_forward.1} parent=11 // pred_check
          %p393 = pneg %p280
        $region54: #{net_forward.1} parent=11 // pred_check_branch
          %395 = sbr.rel (%p393) target = $region56
        $region55: #{net_forward.1} parent=11 // pred_region
          _
        $region56: #{net_forward.1} parent=11 // pred_fallthru
          _
        // Predicated region
        $region57: #{net_forward.1} parent=11 // pred_check
          %p396 = pneg %p301
        $region58: #{net_forward.1} parent=11 // pred_check_branch
          %398 = sbr.rel (%p396) target = $region60
        $region59: #{net_forward.1} parent=11 // pred_region
          _
        $region60: #{net_forward.1} parent=11 // pred_fallthru
          _
        // Predicated region
        $region61: #{net_forward.1} parent=11 // pred_check
          %p399 = pneg %p322
        $region62: #{net_forward.1} parent=11 // pred_check_branch
          %401 = sbr.rel (%p399) target = $region64
        $region63: #{net_forward.1} parent=11 // pred_region
          _
        $region64: #{net_forward.1} parent=11 // pred_fallthru
          _
      $region12: #{net_forward.1} parent=5 // pred_fallthru
        _
      %p402 = scmp.lt.s32.totalorder %s23, 2
      // Predicated region
      $region65: #{net_forward.1} parent=5 // pred_check
        %p403 = pneg %p402
      $region66: #{net_forward.1} parent=5 // pred_check_branch
        %405 = sbr.rel (%p403) target = $region68
      $region67: #{net_forward.1} parent=5 // pred_region
        // Predicated region
        $region69: #{net_forward.1} parent=67 // pred_check
          %p406 = pneg %p43
        $region70: #{net_forward.1} parent=67 // pred_check_branch
          %408 = sbr.rel (%p406) target = $region72
        $region71: #{net_forward.1} parent=67 // pred_region
          %s409 = smul.u32 28, %s23
          %p410 = scmp.lt.s32.totalorder %s409, 55
          %s411 = scalar_select %p410, %s409, 55
          %s412 = smul.addr %s411, 4
          %s413 = smul.addr %s412, 4
          %s414 = scalar_lea.vmem %s0, %s413
          %s415 = smul.u32 28, %s23
        $region72: #{net_forward.1} parent=67 // pred_fallthru
          _
      $region68: #{net_forward.1} parent=5 // pred_fallthru
        _
      %p416 = scmp.le.s32.totalorder 1, %s23
      %p417 = scmp.lt.s32.totalorder %s23, 3
      %p418 = pnand %p416, %p417
      %p419 = pneg %p418
      // Predicated region
      $region73: #{net_forward.1} parent=5 // pred_check
        _
      $region74: #{net_forward.1} parent=5 // pred_check_branch
        %421 = sbr.rel (%p418) target = $region76
      $region75: #{net_forward.1} parent=5 // pred_region
        %s422 = ssub.s32 %s23, 1
        %s423 = smul.u32 28, %s28
        %p424 = scmp.lt.s32.totalorder %s423, 55
        %s425 = scalar_select %p424, %s423, 55
        %s426 = smul.addr %s425, 4
        %s427 = smul.addr %s426, 4
        %s428 = scalar_lea.vmem %s0, %s427
        %p429 = pneg %p49
        %p430 = pneg %p46
        %p431 = pneg %p70
        %p432 = pneg %p67
        %p433 = pneg %p91
        %p434 = pneg %p88
        %p435 = pneg %p112
        %p436 = pneg %p109
        %p437 = pneg %p133
        %p438 = pneg %p130
        %p439 = pneg %p154
        %p440 = pneg %p151
        %p441 = pneg %p175
        %p442 = pneg %p172
        %p443 = pneg %p196
        %p444 = pneg %p193
        %p445 = pneg %p217
        %p446 = pneg %p214
        %p447 = pneg %p238
        %p448 = pneg %p235
        %p449 = pneg %p259
        %p450 = pneg %p256
        %p451 = pneg %p280
        %p452 = pneg %p277
        %p453 = pneg %p301
        %p454 = pneg %p298
        %p455 = pneg %p322
        %p456 = pneg %p319
        %p457 = pneg %p348
        %p458 = pneg %p345
        %s459 = sand.u32 %s335, 1
        %s460 = scalar_lea.sflag [#allocation3], %s459
        %s461 = sand.u32 %s335, 1
        %s462 = smul.addr %s461, 8
        %s463 = scalar_lea.vmem [#allocation2], %s462
        %s464 = smul.u32 28, %s28
        %p465 = scmp.lt.s32.totalorder %s464, 55
        %s466 = scalar_select %p465, %s464, 55
        %s467 = smul.addr %s466, 4
        %s468 = smul.addr %s467, 4
        %s469 = scalar_lea.vmem %s0, %s468
        %s470 = smul.u32 28, %s28
        %v472 = vld [vmem:[%s469] sm:$0xff]
        %v473 = vld [vmem:[%s469 + $0x8] sm:$0xff]
        %v474 = vld [vmem:[%s469 + $0x10] sm:$0xff]
        %v475 = vld [vmem:[%s469 + $0x18] sm:$0xff]
        %v476 = vld [vmem:[%s469 + $0x20] sm:$0xff]
        %v477 = vld [vmem:[%s469 + $0x28] sm:$0xff]
        %v478 = vld [vmem:[%s469 + $0x30] sm:$0xff]
        %v479 = vld [vmem:[%s469 + $0x38] sm:$0xff]
        %v480 = vld [vmem:[%s469 + $0x40] sm:$0xff]
        %v481 = vld [vmem:[%s469 + $0x48] sm:$0xff]
        %v482 = vld [vmem:[%s469 + $0x50] sm:$0xff]
        %v483 = vld [vmem:[%s469 + $0x58] sm:$0xff]
        %v484 = vld [vmem:[%s469 + $0x60] sm:$0xff]
        %v485 = vld [vmem:[%s469 + $0x68] sm:$0xff]
        %v486 = vld [vmem:[%s469 + $0x70] sm:$0xff]
        %v487 = vld [vmem:[%s469 + $0x78] sm:$0xff]
        %v488 = vld [vmem:[%s469 + $0x80] sm:$0xff]
        %v489 = vld [vmem:[%s469 + $0x88] sm:$0xff]
        %v490 = vld [vmem:[%s469 + $0x90] sm:$0xff]
        %v491 = vld [vmem:[%s469 + $0x98] sm:$0xff]
        %v492 = vld [vmem:[%s469 + $0xa0] sm:$0xff]
        %v493 = vld [vmem:[%s469 + $0xa8] sm:$0xff]
        %v494 = vld [vmem:[%s469 + $0xb0] sm:$0xff]
        %v495 = vld [vmem:[%s469 + $0xb8] sm:$0xff]
        %v496 = vld [vmem:[%s469 + $0xc0] sm:$0xff]
        %v497 = vld [vmem:[%s469 + $0xc8] sm:$0xff]
        %v498 = vld [vmem:[%s469 + $0xd0] sm:$0xff]
        %v499 = vld [vmem:[%s469 + $0xd8] sm:$0xff]
        %v500 = vld [vmem:[%s469 + $0xe0] sm:$0xff]
        %v501 = vld [vmem:[%s469 + $0xe8] sm:$0xff]
        %v502 = vld [vmem:[%s469 + $0xf0] sm:$0xff]
        %v503 = vld [vmem:[%s469 + $0xf8] sm:$0xff]
        %v504 = vld [vmem:[%s469 + $0x100] sm:$0xff]
        %v505 = vld [vmem:[%s469 + $0x108] sm:$0xff]
        %v506 = vld [vmem:[%s469 + $0x110] sm:$0xff]
        %v507 = vld [vmem:[%s469 + $0x118] sm:$0xff]
        %v508 = vld [vmem:[%s469 + $0x120] sm:$0xff]
        %v509 = vld [vmem:[%s469 + $0x128] sm:$0xff]
        %v510 = vld [vmem:[%s469 + $0x130] sm:$0xff]
        %v511 = vld [vmem:[%s469 + $0x138] sm:$0xff]
        %v512 = vld [vmem:[%s469 + $0x140] sm:$0xff]
        %v513 = vld [vmem:[%s469 + $0x148] sm:$0xff]
        %v514 = vld [vmem:[%s469 + $0x150] sm:$0xff]
        %v515 = vld [vmem:[%s469 + $0x158] sm:$0xff]
        %v516 = vld [vmem:[%s469 + $0x160] sm:$0xff]
        %v517 = vld [vmem:[%s469 + $0x168] sm:$0xff]
        %v518 = vld [vmem:[%s469 + $0x170] sm:$0xff]
        %v519 = vld [vmem:[%s469 + $0x178] sm:$0xff]
        %v520 = vld [vmem:[%s469 + $0x180] sm:$0xff]
        %v521 = vld [vmem:[%s469 + $0x188] sm:$0xff]
        %v522 = vld [vmem:[%s469 + $0x190] sm:$0xff]
        %v523 = vld [vmem:[%s469 + $0x198] sm:$0xff]
        %v524 = vld [vmem:[%s469 + $0x1a0] sm:$0xff]
        %v525 = vld [vmem:[%s469 + $0x1a8] sm:$0xff]
        %v526 = vld [vmem:[%s469 + $0x1b0] sm:$0xff]
        %v527 = vld [vmem:[%s469 + $0x1b8] sm:$0xff]
        %v528 = vld [vmem:[%s1] sm:$0xff]
        %v529 = vld [vmem:[%s1 + $0x8] sm:$0xff]
        %v530 = vld [vmem:[%s1 + $0x10] sm:$0xff]
        %v531 = vld [vmem:[%s1 + $0x18] sm:$0xff]
        %v532 = vld [vmem:[%s1 + $0x20] sm:$0xff]
        %v533 = vld [vmem:[%s1 + $0x28] sm:$0xff]
        %v534 = vld [vmem:[%s1 + $0x30] sm:$0xff]
        %v535 = vld [vmem:[%s1 + $0x38] sm:$0xff]
        %v536 = vld [vmem:[%s1 + $0x40] sm:$0xff]
        %v537 = vld [vmem:[%s1 + $0x48] sm:$0xff]
        %v538 = vld [vmem:[%s1 + $0x50] sm:$0xff]
        %v539 = vld [vmem:[%s1 + $0x58] sm:$0xff]
        %v540 = vld [vmem:[%s1 + $0x60] sm:$0xff]
        %v541 = vld [vmem:[%s1 + $0x68] sm:$0xff]
        %v542 = vld [vmem:[%s1 + $0x70] sm:$0xff]
        %v543 = vld [vmem:[%s1 + $0x78] sm:$0xff]
        %v544 = vld [vmem:[%s1 + $0x80] sm:$0xff]
        %v545 = vld [vmem:[%s1 + $0x88] sm:$0xff]
        %v546 = vld [vmem:[%s1 + $0x90] sm:$0xff]
        %v547 = vld [vmem:[%s1 + $0x98] sm:$0xff]
        %v548 = vld [vmem:[%s1 + $0xa0] sm:$0xff]
        %v549 = vld [vmem:[%s1 + $0xa8] sm:$0xff]
        %v550 = vld [vmem:[%s1 + $0xb0] sm:$0xff]
        %v551 = vld [vmem:[%s1 + $0xb8] sm:$0xff]
        %v552 = vld [vmem:[%s1 + $0xc0] sm:$0xff]
        %v553 = vld [vmem:[%s1 + $0xc8] sm:$0xff]
        %v554 = vld [vmem:[%s1 + $0xd0] sm:$0xff]
        %v555 = vld [vmem:[%s1 + $0xd8] sm:$0xff]
        %v556 = vld [vmem:[%s1 + $0xe0] sm:$0xff]
        %v557 = vld [vmem:[%s1 + $0xe8] sm:$0xff]
        %v558 = vld [vmem:[%s1 + $0xf0] sm:$0xff]
        %v559 = vld [vmem:[%s1 + $0xf8] sm:$0xff]
        %v560 = vld [vmem:[%s1 + $0x100] sm:$0xff]
        %v561 = vld [vmem:[%s1 + $0x108] sm:$0xff]
        %v562 = vld [vmem:[%s1 + $0x110] sm:$0xff]
        %v563 = vld [vmem:[%s1 + $0x118] sm:$0xff]
        %v564 = vld [vmem:[%s1 + $0x120] sm:$0xff]
        %v565 = vld [vmem:[%s1 + $0x128] sm:$0xff]
        %v566 = vld [vmem:[%s1 + $0x130] sm:$0xff]
        %v567 = vld [vmem:[%s1 + $0x138] sm:$0xff]
        %v568 = vld [vmem:[%s1 + $0x140] sm:$0xff]
        %v569 = vld [vmem:[%s1 + $0x148] sm:$0xff]
        %v570 = vld [vmem:[%s1 + $0x150] sm:$0xff]
        %v571 = vld [vmem:[%s1 + $0x158] sm:$0xff]
        %v572 = vld [vmem:[%s1 + $0x160] sm:$0xff]
        %v573 = vld [vmem:[%s1 + $0x168] sm:$0xff]
        %v574 = vld [vmem:[%s1 + $0x170] sm:$0xff]
        %v575 = vld [vmem:[%s1 + $0x178] sm:$0xff]
        %v576 = vld [vmem:[%s1 + $0x180] sm:$0xff]
        %v577 = vld [vmem:[%s1 + $0x188] sm:$0xff]
        %v578 = vld [vmem:[%s1 + $0x190] sm:$0xff]
        %v579 = vld [vmem:[%s1 + $0x198] sm:$0xff]
        %v580 = vld [vmem:[%s1 + $0x1a0] sm:$0xff]
        %v581 = vld [vmem:[%s1 + $0x1a8] sm:$0xff]
        %v582 = vld [vmem:[%s1 + $0x1b0] sm:$0xff]
        %v583 = vld [vmem:[%s1 + $0x1b8] sm:$0xff]
        %v584 = vld [vmem:[%s1 + $0x1c0] sm:$0xff]
        %v585 = vld [vmem:[%s1 + $0x1c8] sm:$0xff]
        %v586 = vld [vmem:[%s1 + $0x1d0] sm:$0xff]
        %v587 = vld [vmem:[%s1 + $0x1d8] sm:$0xff]
        %v588 = vld [vmem:[%s2] sm:$0x3]
        %v590 = vperm.slane %v588, 0
        %v591 = vperm.slane %v588, 1
        %v650 = vunpack.c.l.b16 %v472
        %v651 = vunpack.c.h.b16 %v472
        %v652 = vunpack.c.l.b16 %v473
        %v653 = vunpack.c.h.b16 %v473
        %v654 = vunpack.c.l.b16 %v474
        %v655 = vunpack.c.h.b16 %v474
        %v656 = vunpack.c.l.b16 %v475
        %v657 = vunpack.c.h.b16 %v475
        %v658 = vunpack.c.l.b16 %v476
        %v659 = vunpack.c.h.b16 %v476
        %v660 = vunpack.c.l.b16 %v477
        %v661 = vunpack.c.h.b16 %v477
        %v662 = vunpack.c.l.b16 %v478
        %v663 = vunpack.c.h.b16 %v478
        %v664 = vunpack.c.l.b16 %v479
        %v665 = vunpack.c.h.b16 %v479
        %v666 = vunpack.c.l.b16 %v480
        %v667 = vunpack.c.h.b16 %v480
        %v668 = vunpack.c.l.b16 %v481
        %v669 = vunpack.c.h.b16 %v481
        %v670 = vunpack.c.l.b16 %v482
        %v671 = vunpack.c.h.b16 %v482
        %v672 = vunpack.c.l.b16 %v483
        %v673 = vunpack.c.h.b16 %v483
        %v674 = vunpack.c.l.b16 %v484
        %v675 = vunpack.c.h.b16 %v484
        %v676 = vunpack.c.l.b16 %v485
        %v677 = vunpack.c.h.b16 %v485
        %v678 = vunpack.c.l.b16 %v486
        %v679 = vunpack.c.h.b16 %v486
        %v680 = vunpack.c.l.b16 %v487
        %v681 = vunpack.c.h.b16 %v487
        %v682 = vunpack.c.l.b16 %v488
        %v683 = vunpack.c.h.b16 %v488
        %v684 = vunpack.c.l.b16 %v489
        %v685 = vunpack.c.h.b16 %v489
        %v686 = vunpack.c.l.b16 %v490
        %v687 = vunpack.c.h.b16 %v490
        %v688 = vunpack.c.l.b16 %v491
        %v689 = vunpack.c.h.b16 %v491
        %v690 = vunpack.c.l.b16 %v492
        %v691 = vunpack.c.h.b16 %v492
        %v692 = vunpack.c.l.b16 %v493
        %v693 = vunpack.c.h.b16 %v493
        %v694 = vunpack.c.l.b16 %v494
        %v695 = vunpack.c.h.b16 %v494
        %v696 = vunpack.c.l.b16 %v495
        %v697 = vunpack.c.h.b16 %v495
        %v698 = vunpack.c.l.b16 %v496
        %v699 = vunpack.c.h.b16 %v496
        %v700 = vunpack.c.l.b16 %v497
        %v701 = vunpack.c.h.b16 %v497
        %v702 = vunpack.c.l.b16 %v498
        %v703 = vunpack.c.h.b16 %v498
        %v704 = vunpack.c.l.b16 %v499
        %v705 = vunpack.c.h.b16 %v499
        %v706 = vunpack.c.l.b16 %v500
        %v707 = vunpack.c.h.b16 %v500
        %v708 = vunpack.c.l.b16 %v501
        %v709 = vunpack.c.h.b16 %v501
        %v710 = vunpack.c.l.b16 %v502
        %v711 = vunpack.c.h.b16 %v502
        %v712 = vunpack.c.l.b16 %v503
        %v713 = vunpack.c.h.b16 %v503
        %v714 = vunpack.c.l.b16 %v504
        %v715 = vunpack.c.h.b16 %v504
        %v716 = vunpack.c.l.b16 %v505
        %v717 = vunpack.c.h.b16 %v505
        %v718 = vunpack.c.l.b16 %v506
        %v719 = vunpack.c.h.b16 %v506
        %v720 = vunpack.c.l.b16 %v507
        %v721 = vunpack.c.h.b16 %v507
        %v722 = vunpack.c.l.b16 %v508
        %v723 = vunpack.c.h.b16 %v508
        %v724 = vunpack.c.l.b16 %v509
        %v725 = vunpack.c.h.b16 %v509
        %v726 = vunpack.c.l.b16 %v510
        %v727 = vunpack.c.h.b16 %v510
        %v728 = vunpack.c.l.b16 %v511
        %v729 = vunpack.c.h.b16 %v511
        %v730 = vunpack.c.l.b16 %v512
        %v731 = vunpack.c.h.b16 %v512
        %v732 = vunpack.c.l.b16 %v513
        %v733 = vunpack.c.h.b16 %v513
        %v734 = vunpack.c.l.b16 %v514
        %v735 = vunpack.c.h.b16 %v514
        %v736 = vunpack.c.l.b16 %v515
        %v737 = vunpack.c.h.b16 %v515
        %v738 = vunpack.c.l.b16 %v516
        %v739 = vunpack.c.h.b16 %v516
        %v740 = vunpack.c.l.b16 %v517
        %v741 = vunpack.c.h.b16 %v517
        %v742 = vunpack.c.l.b16 %v518
        %v743 = vunpack.c.h.b16 %v518
        %v744 = vunpack.c.l.b16 %v519
        %v745 = vunpack.c.h.b16 %v519
        %v746 = vunpack.c.l.b16 %v520
        %v747 = vunpack.c.h.b16 %v520
        %v748 = vunpack.c.l.b16 %v521
        %v749 = vunpack.c.h.b16 %v521
        %v750 = vunpack.c.l.b16 %v522
        %v751 = vunpack.c.h.b16 %v522
        %v752 = vunpack.c.l.b16 %v523
        %v753 = vunpack.c.h.b16 %v523
        %v754 = vunpack.c.l.b16 %v524
        %v755 = vunpack.c.h.b16 %v524
        %v756 = vunpack.c.l.b16 %v525
        %v757 = vunpack.c.h.b16 %v525
        %v758 = vunpack.c.l.b16 %v526
        %v759 = vunpack.c.h.b16 %v526
        %v760 = vunpack.c.l.b16 %v527
        %v761 = vunpack.c.h.b16 %v527
        %v762 = vpack.c.b16 %v654, %v650
        %v763 = vpack.c.b16 %v655, %v651
        %v764 = vpack.c.b16 %v656, %v652
        %v765 = vpack.c.b16 %v657, %v653
        %v766 = vpack.c.b16 %v662, %v658
        %v767 = vpack.c.b16 %v663, %v659
        %v768 = vpack.c.b16 %v664, %v660
        %v769 = vpack.c.b16 %v665, %v661
        %v770 = vpack.c.b16 %v670, %v666
        %v771 = vpack.c.b16 %v671, %v667
        %v772 = vpack.c.b16 %v672, %v668
        %v773 = vpack.c.b16 %v673, %v669
        %v774 = vpack.c.b16 %v678, %v674
        %v775 = vpack.c.b16 %v679, %v675
        %v776 = vpack.c.b16 %v680, %v676
        %v777 = vpack.c.b16 %v681, %v677
        %v778 = vpack.c.b16 %v686, %v682
        %v779 = vpack.c.b16 %v687, %v683
        %v780 = vpack.c.b16 %v688, %v684
        %v781 = vpack.c.b16 %v689, %v685
        %v782 = vpack.c.b16 %v694, %v690
        %v783 = vpack.c.b16 %v695, %v691
        %v784 = vpack.c.b16 %v696, %v692
        %v785 = vpack.c.b16 %v697, %v693
        %v786 = vpack.c.b16 %v702, %v698
        %v787 = vpack.c.b16 %v703, %v699
        %v788 = vpack.c.b16 %v704, %v700
        %v789 = vpack.c.b16 %v705, %v701
        %v790 = vpack.c.b16 %v710, %v706
        %v791 = vpack.c.b16 %v711, %v707
        %v792 = vpack.c.b16 %v712, %v708
        %v793 = vpack.c.b16 %v713, %v709
        %v794 = vpack.c.b16 %v718, %v714
        %v795 = vpack.c.b16 %v719, %v715
        %v796 = vpack.c.b16 %v720, %v716
        %v797 = vpack.c.b16 %v721, %v717
        %v798 = vpack.c.b16 %v726, %v722
        %v799 = vpack.c.b16 %v727, %v723
        %v800 = vpack.c.b16 %v728, %v724
        %v801 = vpack.c.b16 %v729, %v725
        %v802 = vpack.c.b16 %v734, %v730
        %v803 = vpack.c.b16 %v735, %v731
        %v804 = vpack.c.b16 %v736, %v732
        %v805 = vpack.c.b16 %v737, %v733
        %v806 = vpack.c.b16 %v742, %v738
        %v807 = vpack.c.b16 %v743, %v739
        %v808 = vpack.c.b16 %v744, %v740
        %v809 = vpack.c.b16 %v745, %v741
        %v810 = vpack.c.b16 %v750, %v746
        %v811 = vpack.c.b16 %v751, %v747
        %v812 = vpack.c.b16 %v752, %v748
        %v813 = vpack.c.b16 %v753, %v749
        %v814 = vpack.c.b16 %v758, %v754
        %v815 = vpack.c.b16 %v759, %v755
        %v816 = vpack.c.b16 %v760, %v756
        %v817 = vpack.c.b16 %v761, %v757
        %v920 = vunpack.c.l.b16 %v528
        %v921 = vunpack.c.h.b16 %v528
        %v922 = vunpack.c.l.b16 %v529
        %v923 = vunpack.c.h.b16 %v529
        %v924 = vunpack.c.l.b16 %v530
        %v925 = vunpack.c.h.b16 %v530
        %v926 = vunpack.c.l.b16 %v531
        %v927 = vunpack.c.h.b16 %v531
        %v928 = vunpack.c.l.b16 %v532
        %v929 = vunpack.c.h.b16 %v532
        %v930 = vunpack.c.l.b16 %v533
        %v931 = vunpack.c.h.b16 %v533
        %v932 = vunpack.c.l.b16 %v534
        %v933 = vunpack.c.h.b16 %v534
        %v934 = vunpack.c.l.b16 %v535
        %v935 = vunpack.c.h.b16 %v535
        %v936 = vunpack.c.l.b16 %v536
        %v937 = vunpack.c.h.b16 %v536
        %v938 = vunpack.c.l.b16 %v537
        %v939 = vunpack.c.h.b16 %v537
        %v940 = vunpack.c.l.b16 %v538
        %v941 = vunpack.c.h.b16 %v538
        %v942 = vunpack.c.l.b16 %v539
        %v943 = vunpack.c.h.b16 %v539
        %v944 = vunpack.c.l.b16 %v540
        %v945 = vunpack.c.h.b16 %v540
        %v946 = vunpack.c.l.b16 %v541
        %v947 = vunpack.c.h.b16 %v541
        %v948 = vunpack.c.l.b16 %v542
        %v949 = vunpack.c.h.b16 %v542
        %v950 = vunpack.c.l.b16 %v543
        %v951 = vunpack.c.h.b16 %v543
        %v952 = vunpack.c.l.b16 %v544
        %v953 = vunpack.c.h.b16 %v544
        %v954 = vunpack.c.l.b16 %v545
        %v955 = vunpack.c.h.b16 %v545
        %v956 = vunpack.c.l.b16 %v546
        %v957 = vunpack.c.h.b16 %v546
        %v958 = vunpack.c.l.b16 %v547
        %v959 = vunpack.c.h.b16 %v547
        %v960 = vunpack.c.l.b16 %v548
        %v961 = vunpack.c.h.b16 %v548
        %v962 = vunpack.c.l.b16 %v549
        %v963 = vunpack.c.h.b16 %v549
        %v964 = vunpack.c.l.b16 %v550
        %v965 = vunpack.c.h.b16 %v550
        %v966 = vunpack.c.l.b16 %v551
        %v967 = vunpack.c.h.b16 %v551
        %v968 = vunpack.c.l.b16 %v552
        %v969 = vunpack.c.h.b16 %v552
        %v970 = vunpack.c.l.b16 %v553
        %v971 = vunpack.c.h.b16 %v553
        %v972 = vunpack.c.l.b16 %v554
        %v973 = vunpack.c.h.b16 %v554
        %v974 = vunpack.c.l.b16 %v555
        %v975 = vunpack.c.h.b16 %v555
        %v976 = vunpack.c.l.b16 %v556
        %v977 = vunpack.c.h.b16 %v556
        %v978 = vunpack.c.l.b16 %v557
        %v979 = vunpack.c.h.b16 %v557
        %v980 = vunpack.c.l.b16 %v558
        %v981 = vunpack.c.h.b16 %v558
        %v982 = vunpack.c.l.b16 %v559
        %v983 = vunpack.c.h.b16 %v559
        %v984 = vunpack.c.l.b16 %v560
        %v985 = vunpack.c.h.b16 %v560
        %v986 = vunpack.c.l.b16 %v561
        %v987 = vunpack.c.h.b16 %v561
        %v988 = vunpack.c.l.b16 %v562
        %v989 = vunpack.c.h.b16 %v562
        %v990 = vunpack.c.l.b16 %v563
        %v991 = vunpack.c.h.b16 %v563
        %v992 = vunpack.c.l.b16 %v564
        %v993 = vunpack.c.h.b16 %v564
        %v994 = vunpack.c.l.b16 %v565
        %v995 = vunpack.c.h.b16 %v565
        %v996 = vunpack.c.l.b16 %v566
        %v997 = vunpack.c.h.b16 %v566
        %v998 = vunpack.c.l.b16 %v567
        %v999 = vunpack.c.h.b16 %v567
        %v1000 = vunpack.c.l.b16 %v568
        %v1001 = vunpack.c.h.b16 %v568
        %v1002 = vunpack.c.l.b16 %v569
        %v1003 = vunpack.c.h.b16 %v569
        %v1004 = vunpack.c.l.b16 %v570
        %v1005 = vunpack.c.h.b16 %v570
        %v1006 = vunpack.c.l.b16 %v571
        %v1007 = vunpack.c.h.b16 %v571
        %v1008 = vunpack.c.l.b16 %v572
        %v1009 = vunpack.c.h.b16 %v572
        %v1010 = vunpack.c.l.b16 %v573
        %v1011 = vunpack.c.h.b16 %v573
        %v1012 = vunpack.c.l.b16 %v574
        %v1013 = vunpack.c.h.b16 %v574
        %v1014 = vunpack.c.l.b16 %v575
        %v1015 = vunpack.c.h.b16 %v575
        %v1016 = vunpack.c.l.b16 %v576
        %v1017 = vunpack.c.h.b16 %v576
        %v1018 = vunpack.c.l.b16 %v577
        %v1019 = vunpack.c.h.b16 %v577
        %v1020 = vunpack.c.l.b16 %v578
        %v1021 = vunpack.c.h.b16 %v578
        %v1022 = vunpack.c.l.b16 %v579
        %v1023 = vunpack.c.h.b16 %v579
        %v1024 = vunpack.c.l.b16 %v580
        %v1025 = vunpack.c.h.b16 %v580
        %v1026 = vunpack.c.l.b16 %v581
        %v1027 = vunpack.c.h.b16 %v581
        %v1028 = vunpack.c.l.b16 %v582
        %v1029 = vunpack.c.h.b16 %v582
        %v1030 = vunpack.c.l.b16 %v583
        %v1031 = vunpack.c.h.b16 %v583
        %v1032 = vunpack.c.l.b16 %v584
        %v1033 = vunpack.c.h.b16 %v584
        %v1034 = vunpack.c.l.b16 %v585
        %v1035 = vunpack.c.h.b16 %v585
        %v1036 = vunpack.c.l.b16 %v586
        %v1037 = vunpack.c.h.b16 %v586
        %v1038 = vunpack.c.l.b16 %v587
        %v1039 = vunpack.c.h.b16 %v587
        %v1040 = vpack.c.b16 %v922, %v920
        %v1041 = vpack.c.b16 %v923, %v921
        %v1042 = vpack.c.b16 %v926, %v924
        %v1043 = vpack.c.b16 %v927, %v925
        %v1044 = vpack.c.b16 %v930, %v928
        %v1045 = vpack.c.b16 %v931, %v929
        %v1046 = vpack.c.b16 %v934, %v932
        %v1047 = vpack.c.b16 %v935, %v933
        %v1048 = vpack.c.b16 %v938, %v936
        %v1049 = vpack.c.b16 %v939, %v937
        %v1050 = vpack.c.b16 %v942, %v940
        %v1051 = vpack.c.b16 %v943, %v941
        %v1052 = vpack.c.b16 %v946, %v944
        %v1053 = vpack.c.b16 %v947, %v945
        %v1054 = vpack.c.b16 %v950, %v948
        %v1055 = vpack.c.b16 %v951, %v949
        %v1056 = vpack.c.b16 %v954, %v952
        %v1057 = vpack.c.b16 %v955, %v953
        %v1058 = vpack.c.b16 %v958, %v956
        %v1059 = vpack.c.b16 %v959, %v957
        %v1060 = vpack.c.b16 %v962, %v960
        %v1061 = vpack.c.b16 %v963, %v961
        %v1062 = vpack.c.b16 %v966, %v964
        %v1063 = vpack.c.b16 %v967, %v965
        %v1064 = vpack.c.b16 %v970, %v968
        %v1065 = vpack.c.b16 %v971, %v969
        %v1066 = vpack.c.b16 %v974, %v972
        %v1067 = vpack.c.b16 %v975, %v973
        %v1068 = vpack.c.b16 %v978, %v976
        %v1069 = vpack.c.b16 %v979, %v977
        %v1070 = vpack.c.b16 %v982, %v980
        %v1071 = vpack.c.b16 %v983, %v981
        %v1072 = vpack.c.b16 %v986, %v984
        %v1073 = vpack.c.b16 %v987, %v985
        %v1074 = vpack.c.b16 %v990, %v988
        %v1075 = vpack.c.b16 %v991, %v989
        %v1076 = vpack.c.b16 %v994, %v992
        %v1077 = vpack.c.b16 %v995, %v993
        %v1078 = vpack.c.b16 %v998, %v996
        %v1079 = vpack.c.b16 %v999, %v997
        %v1080 = vpack.c.b16 %v1002, %v1000
        %v1081 = vpack.c.b16 %v1003, %v1001
        %v1082 = vpack.c.b16 %v1006, %v1004
        %v1083 = vpack.c.b16 %v1007, %v1005
        %v1084 = vpack.c.b16 %v1010, %v1008
        %v1085 = vpack.c.b16 %v1011, %v1009
        %v1086 = vpack.c.b16 %v1014, %v1012
        %v1087 = vpack.c.b16 %v1015, %v1013
        %v1088 = vpack.c.b16 %v1018, %v1016
        %v1089 = vpack.c.b16 %v1019, %v1017
        %v1090 = vpack.c.b16 %v1022, %v1020
        %v1091 = vpack.c.b16 %v1023, %v1021
        %v1092 = vpack.c.b16 %v1026, %v1024
        %v1093 = vpack.c.b16 %v1027, %v1025
        %v1094 = vpack.c.b16 %v1030, %v1028
        %v1095 = vpack.c.b16 %v1031, %v1029
        %v1096 = vpack.c.b16 %v1034, %v1032
        %v1097 = vpack.c.b16 %v1035, %v1033
        %v1098 = vpack.c.b16 %v1038, %v1036
        %v1099 = vpack.c.b16 %v1039, %v1037
        %vm1160 = vcmask 785408
        %v1162 = vsel %vm1160, %v765, 0
        %v1165 = vsel %vm1160, %v769, 0
        %v1168 = vsel %vm1160, %v773, 0
        %v1171 = vsel %vm1160, %v777, 0
        %v1174 = vsel %vm1160, %v781, 0
        %v1177 = vsel %vm1160, %v785, 0
        %v1180 = vsel %vm1160, %v789, 0
        %v1183 = vsel %vm1160, %v793, 0
        %v1186 = vsel %vm1160, %v797, 0
        %v1189 = vsel %vm1160, %v801, 0
        %v1192 = vsel %vm1160, %v805, 0
        %v1195 = vsel %vm1160, %v809, 0
        %v1198 = vsel %vm1160, %v813, 0
        %v1201 = vsel %vm1160, %v817, 0
        %1203 = vmatpush.bf16.msra.mxu0 %v1054
        %1204 = vmatpush.bf16.msra.mxu0 %v1052
        %1205 = vmatpush.bf16.msra.mxu0 %v1050
        %1206 = vmatpush.bf16.msra.mxu0 %v1048
        %1207 = vmatpush.bf16.msra.mxu0 %v1046
        %1208 = vmatpush.bf16.msra.mxu0 %v1044
        %1209 = vmatpush.bf16.msra.mxu0 %v1042
        %1210 = vmatpush.bf16.msra.mxu0 %v1040
        %1211 = vmatmul.bf16.gmra.mxu0 %v762
        %v1212 = vpop.f32.mrf.mxu0
        %v1213 = vadd.f32 %v590, %v1212
        %v1214 = vpop.f32.mrf.mxu0
        %v1215 = vadd.f32 %v590, %v1214
        %1216 = vmatmul.bf16.gmra.mxu0 %v766
        %v1217 = vpop.f32.mrf.mxu0
        %v1218 = vadd.f32 %v590, %v1217
        %v1219 = vpop.f32.mrf.mxu0
        %v1220 = vadd.f32 %v590, %v1219
        %1221 = vmatmul.bf16.gmra.mxu0 %v770
        %v1222 = vpop.f32.mrf.mxu0
        %v1223 = vadd.f32 %v590, %v1222
        %v1224 = vpop.f32.mrf.mxu0
        %v1225 = vadd.f32 %v590, %v1224
        %1226 = vmatmul.bf16.gmra.mxu0 %v774
        %v1227 = vpop.f32.mrf.mxu0
        %v1228 = vadd.f32 %v590, %v1227
        %v1229 = vpop.f32.mrf.mxu0
        %v1230 = vadd.f32 %v590, %v1229
        %1231 = vmatmul.bf16.gmra.mxu0 %v778
        %v1232 = vpop.f32.mrf.mxu0
        %v1233 = vadd.f32 %v590, %v1232
        %v1234 = vpop.f32.mrf.mxu0
        %v1235 = vadd.f32 %v590, %v1234
        %1236 = vmatmul.bf16.gmra.mxu0 %v782
        %v1237 = vpop.f32.mrf.mxu0
        %v1238 = vadd.f32 %v590, %v1237
        %v1239 = vpop.f32.mrf.mxu0
        %v1240 = vadd.f32 %v590, %v1239
        %1241 = vmatmul.bf16.gmra.mxu0 %v786
        %v1242 = vpop.f32.mrf.mxu0
        %v1243 = vadd.f32 %v590, %v1242
        %v1244 = vpop.f32.mrf.mxu0
        %v1245 = vadd.f32 %v590, %v1244
        %1246 = vmatmul.bf16.gmra.mxu0 %v790
        %v1247 = vpop.f32.mrf.mxu0
        %v1248 = vadd.f32 %v590, %v1247
        %v1249 = vpop.f32.mrf.mxu0
        %v1250 = vadd.f32 %v590, %v1249
        %1251 = vmatmul.bf16.gmra.mxu0 %v794
        %v1252 = vpop.f32.mrf.mxu0
        %v1253 = vadd.f32 %v590, %v1252
        %v1254 = vpop.f32.mrf.mxu0
        %v1255 = vadd.f32 %v590, %v1254
        %1256 = vmatmul.bf16.gmra.mxu0 %v798
        %v1257 = vpop.f32.mrf.mxu0
        %v1258 = vadd.f32 %v590, %v1257
        %v1259 = vpop.f32.mrf.mxu0
        %v1260 = vadd.f32 %v590, %v1259
        %1261 = vmatmul.bf16.gmra.mxu0 %v802
        %v1262 = vpop.f32.mrf.mxu0
        %v1263 = vadd.f32 %v590, %v1262
        %v1264 = vpop.f32.mrf.mxu0
        %v1265 = vadd.f32 %v590, %v1264
        %1266 = vmatmul.bf16.gmra.mxu0 %v806
        %v1267 = vpop.f32.mrf.mxu0
        %v1268 = vadd.f32 %v590, %v1267
        %v1269 = vpop.f32.mrf.mxu0
        %v1270 = vadd.f32 %v590, %v1269
        %1271 = vmatmul.bf16.gmra.mxu0 %v810
        %v1272 = vpop.f32.mrf.mxu0
        %v1273 = vadd.f32 %v590, %v1272
        %v1274 = vpop.f32.mrf.mxu0
        %v1275 = vadd.f32 %v590, %v1274
        %1276 = vmatmul.bf16.gmra.mxu0 %v814
        %v1277 = vpop.f32.mrf.mxu0
        %v1278 = vadd.f32 %v590, %v1277
        %v1279 = vpop.f32.mrf.mxu0
        %v1280 = vadd.f32 %v590, %v1279
        %1281 = vdwg.mxu0
        %1282 = vmatpush.bf16.msra.mxu0 %v1070
        %1283 = vmatpush.bf16.msra.mxu0 %v1068
        %1284 = vmatpush.bf16.msra.mxu0 %v1066
        %1285 = vmatpush.bf16.msra.mxu0 %v1064
        %1286 = vmatpush.bf16.msra.mxu0 %v1062
        %1287 = vmatpush.bf16.msra.mxu0 %v1060
        %1288 = vmatpush.bf16.msra.mxu0 %v1058
        %1289 = vmatpush.bf16.msra.mxu0 %v1056
        %1290 = vmatmul.bf16.gmra.mxu0 %v763
        %v1291 = vpop.f32.mrf.mxu0
        %v1292 = vadd.f32 %v1213, %v1291
        %v1293 = vpop.f32.mrf.mxu0
        %v1294 = vadd.f32 %v1215, %v1293
        %1295 = vmatmul.bf16.gmra.mxu0 %v767
        %v1296 = vpop.f32.mrf.mxu0
        %v1297 = vadd.f32 %v1218, %v1296
        %v1298 = vpop.f32.mrf.mxu0
        %v1299 = vadd.f32 %v1220, %v1298
        %1300 = vmatmul.bf16.gmra.mxu0 %v771
        %v1301 = vpop.f32.mrf.mxu0
        %v1302 = vadd.f32 %v1223, %v1301
        %v1303 = vpop.f32.mrf.mxu0
        %v1304 = vadd.f32 %v1225, %v1303
        %1305 = vmatmul.bf16.gmra.mxu0 %v775
        %v1306 = vpop.f32.mrf.mxu0
        %v1307 = vadd.f32 %v1228, %v1306
        %v1308 = vpop.f32.mrf.mxu0
        %v1309 = vadd.f32 %v1230, %v1308
        %1310 = vmatmul.bf16.gmra.mxu0 %v779
        %v1311 = vpop.f32.mrf.mxu0
        %v1312 = vadd.f32 %v1233, %v1311
        %v1313 = vpop.f32.mrf.mxu0
        %v1314 = vadd.f32 %v1235, %v1313
        %1315 = vmatmul.bf16.gmra.mxu0 %v783
        %v1316 = vpop.f32.mrf.mxu0
        %v1317 = vadd.f32 %v1238, %v1316
        %v1318 = vpop.f32.mrf.mxu0
        %v1319 = vadd.f32 %v1240, %v1318
        %1320 = vmatmul.bf16.gmra.mxu0 %v787
        %v1321 = vpop.f32.mrf.mxu0
        %v1322 = vadd.f32 %v1243, %v1321
        %v1323 = vpop.f32.mrf.mxu0
        %v1324 = vadd.f32 %v1245, %v1323
        %1325 = vmatmul.bf16.gmra.mxu0 %v791
        %v1326 = vpop.f32.mrf.mxu0
        %v1327 = vadd.f32 %v1248, %v1326
        %v1328 = vpop.f32.mrf.mxu0
        %v1329 = vadd.f32 %v1250, %v1328
        %1330 = vmatmul.bf16.gmra.mxu0 %v795
        %v1331 = vpop.f32.mrf.mxu0
        %v1332 = vadd.f32 %v1253, %v1331
        %v1333 = vpop.f32.mrf.mxu0
        %v1334 = vadd.f32 %v1255, %v1333
        %1335 = vmatmul.bf16.gmra.mxu0 %v799
        %v1336 = vpop.f32.mrf.mxu0
        %v1337 = vadd.f32 %v1258, %v1336
        %v1338 = vpop.f32.mrf.mxu0
        %v1339 = vadd.f32 %v1260, %v1338
        %1340 = vmatmul.bf16.gmra.mxu0 %v803
        %v1341 = vpop.f32.mrf.mxu0
        %v1342 = vadd.f32 %v1263, %v1341
        %v1343 = vpop.f32.mrf.mxu0
        %v1344 = vadd.f32 %v1265, %v1343
        %1345 = vmatmul.bf16.gmra.mxu0 %v807
        %v1346 = vpop.f32.mrf.mxu0
        %v1347 = vadd.f32 %v1268, %v1346
        %v1348 = vpop.f32.mrf.mxu0
        %v1349 = vadd.f32 %v1270, %v1348
        %1350 = vmatmul.bf16.gmra.mxu0 %v811
        %v1351 = vpop.f32.mrf.mxu0
        %v1352 = vadd.f32 %v1273, %v1351
        %v1353 = vpop.f32.mrf.mxu0
        %v1354 = vadd.f32 %v1275, %v1353
        %1355 = vmatmul.bf16.gmra.mxu0 %v815
        %v1356 = vpop.f32.mrf.mxu0
        %v1357 = vadd.f32 %v1278, %v1356
        %v1358 = vpop.f32.mrf.mxu0
        %v1359 = vadd.f32 %v1280, %v1358
        %1360 = vdwg.mxu0
        %1361 = vmatpush.bf16.msra.mxu0 %v1086
        %1362 = vmatpush.bf16.msra.mxu0 %v1084
        %1363 = vmatpush.bf16.msra.mxu0 %v1082
        %1364 = vmatpush.bf16.msra.mxu0 %v1080
        %1365 = vmatpush.bf16.msra.mxu0 %v1078
        %1366 = vmatpush.bf16.msra.mxu0 %v1076
        %1367 = vmatpush.bf16.msra.mxu0 %v1074
        %1368 = vmatpush.bf16.msra.mxu0 %v1072
        %1369 = vmatmul.bf16.gmra.mxu0 %v764
        %v1370 = vpop.f32.mrf.mxu0
        %v1371 = vadd.f32 %v1292, %v1370
        %v1372 = vpop.f32.mrf.mxu0
        %v1373 = vadd.f32 %v1294, %v1372
        %1374 = vmatmul.bf16.gmra.mxu0 %v768
        %v1375 = vpop.f32.mrf.mxu0
        %v1376 = vadd.f32 %v1297, %v1375
        %v1377 = vpop.f32.mrf.mxu0
        %v1378 = vadd.f32 %v1299, %v1377
        %1379 = vmatmul.bf16.gmra.mxu0 %v772
        %v1380 = vpop.f32.mrf.mxu0
        %v1381 = vadd.f32 %v1302, %v1380
        %v1382 = vpop.f32.mrf.mxu0
        %v1383 = vadd.f32 %v1304, %v1382
        %1384 = vmatmul.bf16.gmra.mxu0 %v776
        %v1385 = vpop.f32.mrf.mxu0
        %v1386 = vadd.f32 %v1307, %v1385
        %v1387 = vpop.f32.mrf.mxu0
        %v1388 = vadd.f32 %v1309, %v1387
        %1389 = vmatmul.bf16.gmra.mxu0 %v780
        %v1390 = vpop.f32.mrf.mxu0
        %v1391 = vadd.f32 %v1312, %v1390
        %v1392 = vpop.f32.mrf.mxu0
        %v1393 = vadd.f32 %v1314, %v1392
        %1394 = vmatmul.bf16.gmra.mxu0 %v784
        %v1395 = vpop.f32.mrf.mxu0
        %v1396 = vadd.f32 %v1317, %v1395
        %v1397 = vpop.f32.mrf.mxu0
        %v1398 = vadd.f32 %v1319, %v1397
        %1399 = vmatmul.bf16.gmra.mxu0 %v788
        %v1400 = vpop.f32.mrf.mxu0
        %v1401 = vadd.f32 %v1322, %v1400
        %v1402 = vpop.f32.mrf.mxu0
        %v1403 = vadd.f32 %v1324, %v1402
        %1404 = vmatmul.bf16.gmra.mxu0 %v792
        %v1405 = vpop.f32.mrf.mxu0
        %v1406 = vadd.f32 %v1327, %v1405
        %v1407 = vpop.f32.mrf.mxu0
        %v1408 = vadd.f32 %v1329, %v1407
        %1409 = vmatmul.bf16.gmra.mxu0 %v796
        %v1410 = vpop.f32.mrf.mxu0
        %v1411 = vadd.f32 %v1332, %v1410
        %v1412 = vpop.f32.mrf.mxu0
        %v1413 = vadd.f32 %v1334, %v1412
        %1414 = vmatmul.bf16.gmra.mxu0 %v800
        %v1415 = vpop.f32.mrf.mxu0
        %v1416 = vadd.f32 %v1337, %v1415
        %v1417 = vpop.f32.mrf.mxu0
        %v1418 = vadd.f32 %v1339, %v1417
        %1419 = vmatmul.bf16.gmra.mxu0 %v804
        %v1420 = vpop.f32.mrf.mxu0
        %v1421 = vadd.f32 %v1342, %v1420
        %v1422 = vpop.f32.mrf.mxu0
        %v1423 = vadd.f32 %v1344, %v1422
        %1424 = vmatmul.bf16.gmra.mxu0 %v808
        %v1425 = vpop.f32.mrf.mxu0
        %v1426 = vadd.f32 %v1347, %v1425
        %v1427 = vpop.f32.mrf.mxu0
        %v1428 = vadd.f32 %v1349, %v1427
        %1429 = vmatmul.bf16.gmra.mxu0 %v812
        %v1430 = vpop.f32.mrf.mxu0
        %v1431 = vadd.f32 %v1352, %v1430
        %v1432 = vpop.f32.mrf.mxu0
        %v1433 = vadd.f32 %v1354, %v1432
        %1434 = vmatmul.bf16.gmra.mxu0 %v816
        %v1435 = vpop.f32.mrf.mxu0
        %v1436 = vadd.f32 %v1357, %v1435
        %v1437 = vpop.f32.mrf.mxu0
        %v1438 = vadd.f32 %v1359, %v1437
        %1439 = vdwg.mxu0
        %1440 = vmatpush.bf16.msra.mxu0 0
        %1441 = vmatpush.bf16.msra.mxu0 0
        %1442 = vmatpush.bf16.msra.mxu0 %v1098
        %1443 = vmatpush.bf16.msra.mxu0 %v1096
        %1444 = vmatpush.bf16.msra.mxu0 %v1094
        %1445 = vmatpush.bf16.msra.mxu0 %v1092
        %1446 = vmatpush.bf16.msra.mxu0 %v1090
        %1447 = vmatpush.bf16.msra.mxu0 %v1088
        %1448 = vmatmul.bf16.gmra.mxu0 %v1162
        %v1449 = vpop.f32.mrf.mxu0
        %v1450 = vadd.f32 %v1371, %v1449
        %v1451 = vpop.f32.mrf.mxu0
        %v1452 = vadd.f32 %v1373, %v1451
        %1453 = vmatmul.bf16.gmra.mxu0 %v1165
        %v1454 = vpop.f32.mrf.mxu0
        %v1455 = vadd.f32 %v1376, %v1454
        %v1456 = vpop.f32.mrf.mxu0
        %v1457 = vadd.f32 %v1378, %v1456
        %1458 = vmatmul.bf16.gmra.mxu0 %v1168
        %v1459 = vpop.f32.mrf.mxu0
        %v1460 = vadd.f32 %v1381, %v1459
        %v1461 = vpop.f32.mrf.mxu0
        %v1462 = vadd.f32 %v1383, %v1461
        %1463 = vmatmul.bf16.gmra.mxu0 %v1171
        %v1464 = vpop.f32.mrf.mxu0
        %v1465 = vadd.f32 %v1386, %v1464
        %v1466 = vpop.f32.mrf.mxu0
        %v1467 = vadd.f32 %v1388, %v1466
        %1468 = vmatmul.bf16.gmra.mxu0 %v1174
        %v1469 = vpop.f32.mrf.mxu0
        %v1470 = vadd.f32 %v1391, %v1469
        %v1471 = vpop.f32.mrf.mxu0
        %v1472 = vadd.f32 %v1393, %v1471
        %1473 = vmatmul.bf16.gmra.mxu0 %v1177
        %v1474 = vpop.f32.mrf.mxu0
        %v1475 = vadd.f32 %v1396, %v1474
        %v1476 = vpop.f32.mrf.mxu0
        %v1477 = vadd.f32 %v1398, %v1476
        %1478 = vmatmul.bf16.gmra.mxu0 %v1180
        %v1479 = vpop.f32.mrf.mxu0
        %v1480 = vadd.f32 %v1401, %v1479
        %v1481 = vpop.f32.mrf.mxu0
        %v1482 = vadd.f32 %v1403, %v1481
        %1483 = vmatmul.bf16.gmra.mxu0 %v1183
        %v1484 = vpop.f32.mrf.mxu0
        %v1485 = vadd.f32 %v1406, %v1484
        %v1486 = vpop.f32.mrf.mxu0
        %v1487 = vadd.f32 %v1408, %v1486
        %1488 = vmatmul.bf16.gmra.mxu0 %v1186
        %v1489 = vpop.f32.mrf.mxu0
        %v1490 = vadd.f32 %v1411, %v1489
        %v1491 = vpop.f32.mrf.mxu0
        %v1492 = vadd.f32 %v1413, %v1491
        %1493 = vmatmul.bf16.gmra.mxu0 %v1189
        %v1494 = vpop.f32.mrf.mxu0
        %v1495 = vadd.f32 %v1416, %v1494
        %v1496 = vpop.f32.mrf.mxu0
        %v1497 = vadd.f32 %v1418, %v1496
        %1498 = vmatmul.bf16.gmra.mxu0 %v1192
        %v1499 = vpop.f32.mrf.mxu0
        %v1500 = vadd.f32 %v1421, %v1499
        %v1501 = vpop.f32.mrf.mxu0
        %v1502 = vadd.f32 %v1423, %v1501
        %1503 = vmatmul.bf16.gmra.mxu0 %v1195
        %v1504 = vpop.f32.mrf.mxu0
        %v1505 = vadd.f32 %v1426, %v1504
        %v1506 = vpop.f32.mrf.mxu0
        %v1507 = vadd.f32 %v1428, %v1506
        %1508 = vmatmul.bf16.gmra.mxu0 %v1198
        %v1509 = vpop.f32.mrf.mxu0
        %v1510 = vadd.f32 %v1431, %v1509
        %v1511 = vpop.f32.mrf.mxu0
        %v1512 = vadd.f32 %v1433, %v1511
        %1513 = vmatmul.bf16.gmra.mxu0 %v1201
        %v1514 = vpop.f32.mrf.mxu0
        %v1515 = vadd.f32 %v1436, %v1514
        %v1516 = vpop.f32.mrf.mxu0
        %v1517 = vadd.f32 %v1438, %v1516
        %1518 = vdwg.mxu0
        %1519 = vmatpush.bf16.msra.mxu0 %v1055
        %1520 = vmatpush.bf16.msra.mxu0 %v1053
        %1521 = vmatpush.bf16.msra.mxu0 %v1051
        %1522 = vmatpush.bf16.msra.mxu0 %v1049
        %1523 = vmatpush.bf16.msra.mxu0 %v1047
        %1524 = vmatpush.bf16.msra.mxu0 %v1045
        %1525 = vmatpush.bf16.msra.mxu0 %v1043
        %1526 = vmatpush.bf16.msra.mxu0 %v1041
        %1527 = vmatmul.bf16.gmra.mxu0 %v762
        %v1528 = vpop.f32.mrf.mxu0
        %v1529 = vadd.f32 %v591, %v1528
        %v1530 = vpop.f32.mrf.mxu0
        %v1531 = vadd.f32 %v591, %v1530
        %1532 = vmatmul.bf16.gmra.mxu0 %v766
        %v1533 = vpop.f32.mrf.mxu0
        %v1534 = vadd.f32 %v591, %v1533
        %v1535 = vpop.f32.mrf.mxu0
        %v1536 = vadd.f32 %v591, %v1535
        %1537 = vmatmul.bf16.gmra.mxu0 %v770
        %v1538 = vpop.f32.mrf.mxu0
        %v1539 = vadd.f32 %v591, %v1538
        %v1540 = vpop.f32.mrf.mxu0
        %v1541 = vadd.f32 %v591, %v1540
        %1542 = vmatmul.bf16.gmra.mxu0 %v774
        %v1543 = vpop.f32.mrf.mxu0
        %v1544 = vadd.f32 %v591, %v1543
        %v1545 = vpop.f32.mrf.mxu0
        %v1546 = vadd.f32 %v591, %v1545
        %1547 = vmatmul.bf16.gmra.mxu0 %v778
        %v1548 = vpop.f32.mrf.mxu0
        %v1549 = vadd.f32 %v591, %v1548
        %v1550 = vpop.f32.mrf.mxu0
        %v1551 = vadd.f32 %v591, %v1550
        %1552 = vmatmul.bf16.gmra.mxu0 %v782
        %v1553 = vpop.f32.mrf.mxu0
        %v1554 = vadd.f32 %v591, %v1553
        %v1555 = vpop.f32.mrf.mxu0
        %v1556 = vadd.f32 %v591, %v1555
        %1557 = vmatmul.bf16.gmra.mxu0 %v786
        %v1558 = vpop.f32.mrf.mxu0
        %v1559 = vadd.f32 %v591, %v1558
        %v1560 = vpop.f32.mrf.mxu0
        %v1561 = vadd.f32 %v591, %v1560
        %1562 = vmatmul.bf16.gmra.mxu0 %v790
        %v1563 = vpop.f32.mrf.mxu0
        %v1564 = vadd.f32 %v591, %v1563
        %v1565 = vpop.f32.mrf.mxu0
        %v1566 = vadd.f32 %v591, %v1565
        %1567 = vmatmul.bf16.gmra.mxu0 %v794
        %v1568 = vpop.f32.mrf.mxu0
        %v1569 = vadd.f32 %v591, %v1568
        %v1570 = vpop.f32.mrf.mxu0
        %v1571 = vadd.f32 %v591, %v1570
        %1572 = vmatmul.bf16.gmra.mxu0 %v798
        %v1573 = vpop.f32.mrf.mxu0
        %v1574 = vadd.f32 %v591, %v1573
        %v1575 = vpop.f32.mrf.mxu0
        %v1576 = vadd.f32 %v591, %v1575
        %1577 = vmatmul.bf16.gmra.mxu0 %v802
        %v1578 = vpop.f32.mrf.mxu0
        %v1579 = vadd.f32 %v591, %v1578
        %v1580 = vpop.f32.mrf.mxu0
        %v1581 = vadd.f32 %v591, %v1580
        %1582 = vmatmul.bf16.gmra.mxu0 %v806
        %v1583 = vpop.f32.mrf.mxu0
        %v1584 = vadd.f32 %v591, %v1583
        %v1585 = vpop.f32.mrf.mxu0
        %v1586 = vadd.f32 %v591, %v1585
        %1587 = vmatmul.bf16.gmra.mxu0 %v810
        %v1588 = vpop.f32.mrf.mxu0
        %v1589 = vadd.f32 %v591, %v1588
        %v1590 = vpop.f32.mrf.mxu0
        %v1591 = vadd.f32 %v591, %v1590
        %1592 = vmatmul.bf16.gmra.mxu0 %v814
        %v1593 = vpop.f32.mrf.mxu0
        %v1594 = vadd.f32 %v591, %v1593
        %v1595 = vpop.f32.mrf.mxu0
        %v1596 = vadd.f32 %v591, %v1595
        %1597 = vdwg.mxu0
        %1598 = vmatpush.bf16.msra.mxu0 %v1071
        %1599 = vmatpush.bf16.msra.mxu0 %v1069
        %1600 = vmatpush.bf16.msra.mxu0 %v1067
        %1601 = vmatpush.bf16.msra.mxu0 %v1065
        %1602 = vmatpush.bf16.msra.mxu0 %v1063
        %1603 = vmatpush.bf16.msra.mxu0 %v1061
        %1604 = vmatpush.bf16.msra.mxu0 %v1059
        %1605 = vmatpush.bf16.msra.mxu0 %v1057
        %1606 = vmatmul.bf16.gmra.mxu0 %v763
        %v1607 = vpop.f32.mrf.mxu0
        %v1608 = vadd.f32 %v1529, %v1607
        %v1609 = vpop.f32.mrf.mxu0
        %v1610 = vadd.f32 %v1531, %v1609
        %1611 = vmatmul.bf16.gmra.mxu0 %v767
        %v1612 = vpop.f32.mrf.mxu0
        %v1613 = vadd.f32 %v1534, %v1612
        %v1614 = vpop.f32.mrf.mxu0
        %v1615 = vadd.f32 %v1536, %v1614
        %1616 = vmatmul.bf16.gmra.mxu0 %v771
        %v1617 = vpop.f32.mrf.mxu0
        %v1618 = vadd.f32 %v1539, %v1617
        %v1619 = vpop.f32.mrf.mxu0
        %v1620 = vadd.f32 %v1541, %v1619
        %1621 = vmatmul.bf16.gmra.mxu0 %v775
        %v1622 = vpop.f32.mrf.mxu0
        %v1623 = vadd.f32 %v1544, %v1622
        %v1624 = vpop.f32.mrf.mxu0
        %v1625 = vadd.f32 %v1546, %v1624
        %1626 = vmatmul.bf16.gmra.mxu0 %v779
        %v1627 = vpop.f32.mrf.mxu0
        %v1628 = vadd.f32 %v1549, %v1627
        %v1629 = vpop.f32.mrf.mxu0
        %v1630 = vadd.f32 %v1551, %v1629
        %1631 = vmatmul.bf16.gmra.mxu0 %v783
        %v1632 = vpop.f32.mrf.mxu0
        %v1633 = vadd.f32 %v1554, %v1632
        %v1634 = vpop.f32.mrf.mxu0
        %v1635 = vadd.f32 %v1556, %v1634
        %1636 = vmatmul.bf16.gmra.mxu0 %v787
        %v1637 = vpop.f32.mrf.mxu0
        %v1638 = vadd.f32 %v1559, %v1637
        %v1639 = vpop.f32.mrf.mxu0
        %v1640 = vadd.f32 %v1561, %v1639
        %1641 = vmatmul.bf16.gmra.mxu0 %v791
        %v1642 = vpop.f32.mrf.mxu0
        %v1643 = vadd.f32 %v1564, %v1642
        %v1644 = vpop.f32.mrf.mxu0
        %v1645 = vadd.f32 %v1566, %v1644
        %1646 = vmatmul.bf16.gmra.mxu0 %v795
        %v1647 = vpop.f32.mrf.mxu0
        %v1648 = vadd.f32 %v1569, %v1647
        %v1649 = vpop.f32.mrf.mxu0
        %v1650 = vadd.f32 %v1571, %v1649
        %1651 = vmatmul.bf16.gmra.mxu0 %v799
        %v1652 = vpop.f32.mrf.mxu0
        %v1653 = vadd.f32 %v1574, %v1652
        %v1654 = vpop.f32.mrf.mxu0
        %v1655 = vadd.f32 %v1576, %v1654
        %1656 = vmatmul.bf16.gmra.mxu0 %v803
        %v1657 = vpop.f32.mrf.mxu0
        %v1658 = vadd.f32 %v1579, %v1657
        %v1659 = vpop.f32.mrf.mxu0
        %v1660 = vadd.f32 %v1581, %v1659
        %1661 = vmatmul.bf16.gmra.mxu0 %v807
        %v1662 = vpop.f32.mrf.mxu0
        %v1663 = vadd.f32 %v1584, %v1662
        %v1664 = vpop.f32.mrf.mxu0
        %v1665 = vadd.f32 %v1586, %v1664
        %1666 = vmatmul.bf16.gmra.mxu0 %v811
        %v1667 = vpop.f32.mrf.mxu0
        %v1668 = vadd.f32 %v1589, %v1667
        %v1669 = vpop.f32.mrf.mxu0
        %v1670 = vadd.f32 %v1591, %v1669
        %1671 = vmatmul.bf16.gmra.mxu0 %v815
        %v1672 = vpop.f32.mrf.mxu0
        %v1673 = vadd.f32 %v1594, %v1672
        %v1674 = vpop.f32.mrf.mxu0
        %v1675 = vadd.f32 %v1596, %v1674
        %1676 = vdwg.mxu0
        %1677 = vmatpush.bf16.msra.mxu0 %v1087
        %1678 = vmatpush.bf16.msra.mxu0 %v1085
        %1679 = vmatpush.bf16.msra.mxu0 %v1083
        %1680 = vmatpush.bf16.msra.mxu0 %v1081
        %1681 = vmatpush.bf16.msra.mxu0 %v1079
        %1682 = vmatpush.bf16.msra.mxu0 %v1077
        %1683 = vmatpush.bf16.msra.mxu0 %v1075
        %1684 = vmatpush.bf16.msra.mxu0 %v1073
        %1685 = vmatmul.bf16.gmra.mxu0 %v764
        %v1686 = vpop.f32.mrf.mxu0
        %v1687 = vadd.f32 %v1608, %v1686
        %v1688 = vpop.f32.mrf.mxu0
        %v1689 = vadd.f32 %v1610, %v1688
        %1690 = vmatmul.bf16.gmra.mxu0 %v768
        %v1691 = vpop.f32.mrf.mxu0
        %v1692 = vadd.f32 %v1613, %v1691
        %v1693 = vpop.f32.mrf.mxu0
        %v1694 = vadd.f32 %v1615, %v1693
        %1695 = vmatmul.bf16.gmra.mxu0 %v772
        %v1696 = vpop.f32.mrf.mxu0
        %v1697 = vadd.f32 %v1618, %v1696
        %v1698 = vpop.f32.mrf.mxu0
        %v1699 = vadd.f32 %v1620, %v1698
        %1700 = vmatmul.bf16.gmra.mxu0 %v776
        %v1701 = vpop.f32.mrf.mxu0
        %v1702 = vadd.f32 %v1623, %v1701
        %v1703 = vpop.f32.mrf.mxu0
        %v1704 = vadd.f32 %v1625, %v1703
        %1705 = vmatmul.bf16.gmra.mxu0 %v780
        %v1706 = vpop.f32.mrf.mxu0
        %v1707 = vadd.f32 %v1628, %v1706
        %v1708 = vpop.f32.mrf.mxu0
        %v1709 = vadd.f32 %v1630, %v1708
        %1710 = vmatmul.bf16.gmra.mxu0 %v784
        %v1711 = vpop.f32.mrf.mxu0
        %v1712 = vadd.f32 %v1633, %v1711
        %v1713 = vpop.f32.mrf.mxu0
        %v1714 = vadd.f32 %v1635, %v1713
        %1715 = vmatmul.bf16.gmra.mxu0 %v788
        %v1716 = vpop.f32.mrf.mxu0
        %v1717 = vadd.f32 %v1638, %v1716
        %v1718 = vpop.f32.mrf.mxu0
        %v1719 = vadd.f32 %v1640, %v1718
        %1720 = vmatmul.bf16.gmra.mxu0 %v792
        %v1721 = vpop.f32.mrf.mxu0
        %v1722 = vadd.f32 %v1643, %v1721
        %v1723 = vpop.f32.mrf.mxu0
        %v1724 = vadd.f32 %v1645, %v1723
        %1725 = vmatmul.bf16.gmra.mxu0 %v796
        %v1726 = vpop.f32.mrf.mxu0
        %v1727 = vadd.f32 %v1648, %v1726
        %v1728 = vpop.f32.mrf.mxu0
        %v1729 = vadd.f32 %v1650, %v1728
        %1730 = vmatmul.bf16.gmra.mxu0 %v800
        %v1731 = vpop.f32.mrf.mxu0
        %v1732 = vadd.f32 %v1653, %v1731
        %v1733 = vpop.f32.mrf.mxu0
        %v1734 = vadd.f32 %v1655, %v1733
        %1735 = vmatmul.bf16.gmra.mxu0 %v804
        %v1736 = vpop.f32.mrf.mxu0
        %v1737 = vadd.f32 %v1658, %v1736
        %v1738 = vpop.f32.mrf.mxu0
        %v1739 = vadd.f32 %v1660, %v1738
        %1740 = vmatmul.bf16.gmra.mxu0 %v808
        %v1741 = vpop.f32.mrf.mxu0
        %v1742 = vadd.f32 %v1663, %v1741
        %v1743 = vpop.f32.mrf.mxu0
        %v1744 = vadd.f32 %v1665, %v1743
        %1745 = vmatmul.bf16.gmra.mxu0 %v812
        %v1746 = vpop.f32.mrf.mxu0
        %v1747 = vadd.f32 %v1668, %v1746
        %v1748 = vpop.f32.mrf.mxu0
        %v1749 = vadd.f32 %v1670, %v1748
        %1750 = vmatmul.bf16.gmra.mxu0 %v816
        %v1751 = vpop.f32.mrf.mxu0
        %v1752 = vadd.f32 %v1673, %v1751
        %v1753 = vpop.f32.mrf.mxu0
        %v1754 = vadd.f32 %v1675, %v1753
        %1755 = vdwg.mxu0
        %1756 = vmatpush.bf16.msra.mxu0 0
        %1757 = vmatpush.bf16.msra.mxu0 0
        %1758 = vmatpush.bf16.msra.mxu0 %v1099
        %1759 = vmatpush.bf16.msra.mxu0 %v1097
        %1760 = vmatpush.bf16.msra.mxu0 %v1095
        %1761 = vmatpush.bf16.msra.mxu0 %v1093
        %1762 = vmatpush.bf16.msra.mxu0 %v1091
        %1763 = vmatpush.bf16.msra.mxu0 %v1089
        %1764 = vmatmul.bf16.gmra.mxu0 %v1162
        %v1765 = vpop.f32.mrf.mxu0
        %v1766 = vadd.f32 %v1687, %v1765
        %v1767 = vpop.f32.mrf.mxu0
        %v1768 = vadd.f32 %v1689, %v1767
        %1769 = vmatmul.bf16.gmra.mxu0 %v1165
        %v1770 = vpop.f32.mrf.mxu0
        %v1771 = vadd.f32 %v1692, %v1770
        %v1772 = vpop.f32.mrf.mxu0
        %v1773 = vadd.f32 %v1694, %v1772
        %1774 = vmatmul.bf16.gmra.mxu0 %v1168
        %v1775 = vpop.f32.mrf.mxu0
        %v1776 = vadd.f32 %v1697, %v1775
        %v1777 = vpop.f32.mrf.mxu0
        %v1778 = vadd.f32 %v1699, %v1777
        %1779 = vmatmul.bf16.gmra.mxu0 %v1171
        %v1780 = vpop.f32.mrf.mxu0
        %v1781 = vadd.f32 %v1702, %v1780
        %v1782 = vpop.f32.mrf.mxu0
        %v1783 = vadd.f32 %v1704, %v1782
        %1784 = vmatmul.bf16.gmra.mxu0 %v1174
        %v1785 = vpop.f32.mrf.mxu0
        %v1786 = vadd.f32 %v1707, %v1785
        %v1787 = vpop.f32.mrf.mxu0
        %v1788 = vadd.f32 %v1709, %v1787
        %1789 = vmatmul.bf16.gmra.mxu0 %v1177
        %v1790 = vpop.f32.mrf.mxu0
        %v1791 = vadd.f32 %v1712, %v1790
        %v1792 = vpop.f32.mrf.mxu0
        %v1793 = vadd.f32 %v1714, %v1792
        %1794 = vmatmul.bf16.gmra.mxu0 %v1180
        %v1795 = vpop.f32.mrf.mxu0
        %v1796 = vadd.f32 %v1717, %v1795
        %v1797 = vpop.f32.mrf.mxu0
        %v1798 = vadd.f32 %v1719, %v1797
        %1799 = vmatmul.bf16.gmra.mxu0 %v1183
        %v1800 = vpop.f32.mrf.mxu0
        %v1801 = vadd.f32 %v1722, %v1800
        %v1802 = vpop.f32.mrf.mxu0
        %v1803 = vadd.f32 %v1724, %v1802
        %1804 = vmatmul.bf16.gmra.mxu0 %v1186
        %v1805 = vpop.f32.mrf.mxu0
        %v1806 = vadd.f32 %v1727, %v1805
        %v1807 = vpop.f32.mrf.mxu0
        %v1808 = vadd.f32 %v1729, %v1807
        %1809 = vmatmul.bf16.gmra.mxu0 %v1189
        %v1810 = vpop.f32.mrf.mxu0
        %v1811 = vadd.f32 %v1732, %v1810
        %v1812 = vpop.f32.mrf.mxu0
        %v1813 = vadd.f32 %v1734, %v1812
        %1814 = vmatmul.bf16.gmra.mxu0 %v1192
        %v1815 = vpop.f32.mrf.mxu0
        %v1816 = vadd.f32 %v1737, %v1815
        %v1817 = vpop.f32.mrf.mxu0
        %v1818 = vadd.f32 %v1739, %v1817
        %1819 = vmatmul.bf16.gmra.mxu0 %v1195
        %v1820 = vpop.f32.mrf.mxu0
        %v1821 = vadd.f32 %v1742, %v1820
        %v1822 = vpop.f32.mrf.mxu0
        %v1823 = vadd.f32 %v1744, %v1822
        %1824 = vmatmul.bf16.gmra.mxu0 %v1198
        %v1825 = vpop.f32.mrf.mxu0
        %v1826 = vadd.f32 %v1747, %v1825
        %v1827 = vpop.f32.mrf.mxu0
        %v1828 = vadd.f32 %v1749, %v1827
        %1829 = vmatmul.bf16.gmra.mxu0 %v1201
        %v1830 = vpop.f32.mrf.mxu0
        %v1831 = vadd.f32 %v1752, %v1830
        %v1832 = vpop.f32.mrf.mxu0
        %v1833 = vadd.f32 %v1754, %v1832
        %1834 = vdwg.mxu0
        %v1835 = vmax.f32 %v1450, 0.0
        %v1836 = vmax.f32 %v1766, 0.0
        %v1837 = vmax.f32 %v1452, 0.0
        %v1838 = vmax.f32 %v1768, 0.0
        %v1839 = vmax.f32 %v1455, 0.0
        %v1840 = vmax.f32 %v1771, 0.0
        %v1841 = vmax.f32 %v1457, 0.0
        %v1842 = vmax.f32 %v1773, 0.0
        %v1843 = vmax.f32 %v1460, 0.0
        %v1844 = vmax.f32 %v1776, 0.0
        %v1845 = vmax.f32 %v1462, 0.0
        %v1846 = vmax.f32 %v1778, 0.0
        %v1847 = vmax.f32 %v1465, 0.0
        %v1848 = vmax.f32 %v1781, 0.0
        %v1849 = vmax.f32 %v1467, 0.0
        %v1850 = vmax.f32 %v1783, 0.0
        %v1851 = vmax.f32 %v1470, 0.0
        %v1852 = vmax.f32 %v1786, 0.0
        %v1853 = vmax.f32 %v1472, 0.0
        %v1854 = vmax.f32 %v1788, 0.0
        %v1855 = vmax.f32 %v1475, 0.0
        %v1856 = vmax.f32 %v1791, 0.0
        %v1857 = vmax.f32 %v1477, 0.0
        %v1858 = vmax.f32 %v1793, 0.0
        %v1859 = vmax.f32 %v1480, 0.0
        %v1860 = vmax.f32 %v1796, 0.0
        %v1861 = vmax.f32 %v1482, 0.0
        %v1862 = vmax.f32 %v1798, 0.0
        %v1863 = vmax.f32 %v1485, 0.0
        %v1864 = vmax.f32 %v1801, 0.0
        %v1865 = vmax.f32 %v1487, 0.0
        %v1866 = vmax.f32 %v1803, 0.0
        %v1867 = vmax.f32 %v1490, 0.0
        %v1868 = vmax.f32 %v1806, 0.0
        %v1869 = vmax.f32 %v1492, 0.0
        %v1870 = vmax.f32 %v1808, 0.0
        %v1871 = vmax.f32 %v1495, 0.0
        %v1872 = vmax.f32 %v1811, 0.0
        %v1873 = vmax.f32 %v1497, 0.0
        %v1874 = vmax.f32 %v1813, 0.0
        %v1875 = vmax.f32 %v1500, 0.0
        %v1876 = vmax.f32 %v1816, 0.0
        %v1877 = vmax.f32 %v1502, 0.0
        %v1878 = vmax.f32 %v1818, 0.0
        %v1879 = vmax.f32 %v1505, 0.0
        %v1880 = vmax.f32 %v1821, 0.0
        %v1881 = vmax.f32 %v1507, 0.0
        %v1882 = vmax.f32 %v1823, 0.0
        %v1883 = vmax.f32 %v1510, 0.0
        %v1884 = vmax.f32 %v1826, 0.0
        %v1885 = vmax.f32 %v1512, 0.0
        %v1886 = vmax.f32 %v1828, 0.0
        %v1887 = vmax.f32 %v1515, 0.0
        %v1888 = vmax.f32 %v1831, 0.0
        %v1889 = vmax.f32 %v1517, 0.0
        %v1890 = vmax.f32 %v1833, 0.0
        %v1891 = vmax.f32 %v1835, %v1863
        %v1892 = vmax.f32 %v1836, %v1864
        %v1893 = vmax.f32 %v1837, %v1865
        %v1894 = vmax.f32 %v1838, %v1866
        %v1895 = vmax.f32 %v1839, %v1867
        %v1896 = vmax.f32 %v1840, %v1868
        %v1897 = vmax.f32 %v1841, %v1869
        %v1898 = vmax.f32 %v1842, %v1870
        %v1899 = vmax.f32 %v1843, %v1871
        %v1900 = vmax.f32 %v1844, %v1872
        %v1901 = vmax.f32 %v1845, %v1873
        %v1902 = vmax.f32 %v1846, %v1874
        %v1903 = vmax.f32 %v1847, %v1875
        %v1904 = vmax.f32 %v1848, %v1876
        %v1905 = vmax.f32 %v1849, %v1877
        %v1906 = vmax.f32 %v1850, %v1878
        %v1907 = vmax.f32 %v1851, %v1879
        %v1908 = vmax.f32 %v1852, %v1880
        %v1909 = vmax.f32 %v1853, %v1881
        %v1910 = vmax.f32 %v1854, %v1882
        %v1911 = vmax.f32 %v1855, %v1883
        %v1912 = vmax.f32 %v1856, %v1884
        %v1913 = vmax.f32 %v1857, %v1885
        %v1914 = vmax.f32 %v1858, %v1886
        %v1915 = vmax.f32 %v1859, %v1887
        %v1916 = vmax.f32 %v1860, %v1888
        %v1917 = vmax.f32 %v1861, %v1889
        %v1918 = vmax.f32 %v1862, %v1890
        %v1919 = vpack.c.bf16 %v1893, %v1891
        %v1920 = vpack.c.bf16 %v1894, %v1892
        %v1921 = vpack.c.bf16 %v1897, %v1895
        %v1922 = vpack.c.bf16 %v1898, %v1896
        %v1923 = vpack.c.bf16 %v1901, %v1899
        %v1924 = vpack.c.bf16 %v1902, %v1900
        %v1925 = vpack.c.bf16 %v1905, %v1903
        %v1926 = vpack.c.bf16 %v1906, %v1904
        %v1927 = vpack.c.bf16 %v1909, %v1907
        %v1928 = vpack.c.bf16 %v1910, %v1908
        %v1929 = vpack.c.bf16 %v1913, %v1911
        %v1930 = vpack.c.bf16 %v1914, %v1912
        %v1931 = vpack.c.bf16 %v1917, %v1915
        %v1932 = vpack.c.bf16 %v1918, %v1916
        %v1933 = vld [vmem:[%s3] sm:$0xf]
        %v1934 = vld [vmem:[%s3 + $0x4] sm:$0xf]
        %v1935 = vld [vmem:[%s3 + $0x8] sm:$0xf]
        %v1936 = vld [vmem:[%s3 + $0xc] sm:$0xf]
        %v1937 = vld [vmem:[%s3 + $0x10] sm:$0xf]
        %v1938 = vld [vmem:[%s3 + $0x14] sm:$0xf]
        %v1939 = vld [vmem:[%s3 + $0x18] sm:$0xf]
        %v1940 = vld [vmem:[%s3 + $0x1c] sm:$0xf]
        %v1941 = vld [vmem:[%s3 + $0x20] sm:$0xf]
        %v1942 = vld [vmem:[%s3 + $0x24] sm:$0xf]
        %v1943 = vld [vmem:[%s3 + $0x28] sm:$0xf]
        %v1944 = vld [vmem:[%s3 + $0x2c] sm:$0xf]
        %v1945 = vld [vmem:[%s3 + $0x30] sm:$0xf]
        %v1946 = vld [vmem:[%s3 + $0x34] sm:$0xf]
        %v1947 = vld [vmem:[%s3 + $0x38] sm:$0xf]
        %v1948 = vld [vmem:[%s3 + $0x3c] sm:$0xf]
        %v1949 = vld [vmem:[%s3 + $0x40] sm:$0xf]
        %v1950 = vld [vmem:[%s3 + $0x44] sm:$0xf]
        %v1951 = vld [vmem:[%s3 + $0x48] sm:$0xf]
        %v1952 = vld [vmem:[%s3 + $0x4c] sm:$0xf]
        %v1953 = vld [vmem:[%s3 + $0x50] sm:$0xf]
        %v1975 = vunpack.c.l.b16 %v1933
        %v1976 = vunpack.c.l.b16 %v1934
        %v1977 = vunpack.c.l.b16 %v1935
        %v1978 = vunpack.c.l.b16 %v1936
        %v1979 = vunpack.c.l.b16 %v1937
        %v1980 = vunpack.c.l.b16 %v1938
        %v1981 = vunpack.c.l.b16 %v1939
        %v1982 = vunpack.c.l.b16 %v1940
        %v1983 = vunpack.c.l.b16 %v1941
        %v1984 = vunpack.c.l.b16 %v1942
        %v1985 = vunpack.c.l.b16 %v1943
        %v1986 = vunpack.c.l.b16 %v1944
        %v1987 = vunpack.c.l.b16 %v1945
        %v1988 = vunpack.c.l.b16 %v1946
        %v1989 = vunpack.c.l.b16 %v1947
        %v1990 = vunpack.c.l.b16 %v1948
        %v1991 = vunpack.c.l.b16 %v1949
        %v1992 = vunpack.c.l.b16 %v1950
        %v1993 = vunpack.c.l.b16 %v1951
        %v1994 = vunpack.c.l.b16 %v1952
        %v1995 = vunpack.c.l.b16 %v1953
        %v1996 = vpack.c.b16 %v1976, %v1975
        %v1997 = vpack.c.b16 %v1978, %v1977
        %v1998 = vpack.c.b16 %v1980, %v1979
        %v1999 = vpack.c.b16 %v1982, %v1981
        %v2000 = vpack.c.b16 %v1984, %v1983
        %v2001 = vpack.c.b16 %v1986, %v1985
        %v2002 = vpack.c.b16 %v1988, %v1987
        %v2003 = vpack.c.b16 %v1990, %v1989
        %v2004 = vpack.c.b16 %v1992, %v1991
        %v2005 = vpack.c.b16 %v1994, %v1993
        %v2006 = vpack.c.b16 %v1995, %v1995
        %vm2017 = vcmask 326656
        %v2019 = vsel %vm2017, %v1920, 0
        %v2022 = vsel %vm2017, %v1922, 0
        %v2025 = vsel %vm2017, %v1924, 0
        %v2028 = vsel %vm2017, %v1926, 0
        %v2031 = vsel %vm2017, %v1928, 0
        %v2034 = vsel %vm2017, %v1930, 0
        %v2037 = vsel %vm2017, %v1932, 0
        %vm2039 = vcmask 1043456
        %v2041 = vsel %vm2039, %v2006, 0
        %2043 = vmatpush.bf16.msra.mxu0 %v2003
        %2044 = vmatpush.bf16.msra.mxu0 %v2002
        %2045 = vmatpush.bf16.msra.mxu0 %v2001
        %2046 = vmatpush.bf16.msra.mxu0 %v2000
        %2047 = vmatpush.bf16.msra.mxu0 %v1999
        %2048 = vmatpush.bf16.msra.mxu0 %v1998
        %2049 = vmatpush.bf16.msra.mxu0 %v1997
        %2050 = vmatpush.bf16.msra.mxu0 %v1996
        %2051 = vmatmul.bf16.gmra.mxu0 %v1919
        %v2052 = vpop.f32.mrf.mxu0
        %v2053 = vadd.f32 0.0, %v2052
        %v2054 = vpop.f32.mrf.mxu0
        %v2055 = vadd.f32 0.0, %v2054
        %2056 = vmatmul.bf16.gmra.mxu0 %v1921
        %v2057 = vpop.f32.mrf.mxu0
        %v2058 = vadd.f32 0.0, %v2057
        %v2059 = vpop.f32.mrf.mxu0
        %v2060 = vadd.f32 0.0, %v2059
        %2061 = vmatmul.bf16.gmra.mxu0 %v1923
        %v2062 = vpop.f32.mrf.mxu0
        %v2063 = vadd.f32 0.0, %v2062
        %v2064 = vpop.f32.mrf.mxu0
        %v2065 = vadd.f32 0.0, %v2064
        %2066 = vmatmul.bf16.gmra.mxu0 %v1925
        %v2067 = vpop.f32.mrf.mxu0
        %v2068 = vadd.f32 0.0, %v2067
        %v2069 = vpop.f32.mrf.mxu0
        %v2070 = vadd.f32 0.0, %v2069
        %2071 = vmatmul.bf16.gmra.mxu0 %v1927
        %v2072 = vpop.f32.mrf.mxu0
        %v2073 = vadd.f32 0.0, %v2072
        %v2074 = vpop.f32.mrf.mxu0
        %v2075 = vadd.f32 0.0, %v2074
        %2076 = vmatmul.bf16.gmra.mxu0 %v1929
        %v2077 = vpop.f32.mrf.mxu0
        %v2078 = vadd.f32 0.0, %v2077
        %v2079 = vpop.f32.mrf.mxu0
        %v2080 = vadd.f32 0.0, %v2079
        %2081 = vmatmul.bf16.gmra.mxu0 %v1931
        %v2082 = vpop.f32.mrf.mxu0
        %v2083 = vadd.f32 0.0, %v2082
        %v2084 = vpop.f32.mrf.mxu0
        %v2085 = vadd.f32 0.0, %v2084
        %2086 = vdwg.mxu0
        %2087 = vmatpush.bf16.msra.mxu0 0
        %2088 = vmatpush.bf16.msra.mxu0 0
        %2089 = vmatpush.bf16.msra.mxu0 0
        %2090 = vmatpush.bf16.msra.mxu0 0
        %2091 = vmatpush.bf16.msra.mxu0 0
        %2092 = vmatpush.bf16.msra.mxu0 %v2041
        %2093 = vmatpush.bf16.msra.mxu0 %v2005
        %2094 = vmatpush.bf16.msra.mxu0 %v2004
        %2095 = vmatmul.bf16.gmra.mxu0 %v2019
        %v2096 = vpop.f32.mrf.mxu0
        %v2097 = vadd.f32 %v2053, %v2096
        %v2098 = vpop.f32.mrf.mxu0
        %v2099 = vadd.f32 %v2055, %v2098
        %2100 = vmatmul.bf16.gmra.mxu0 %v2022
        %v2101 = vpop.f32.mrf.mxu0
        %v2102 = vadd.f32 %v2058, %v2101
        %v2103 = vpop.f32.mrf.mxu0
        %v2104 = vadd.f32 %v2060, %v2103
        %2105 = vmatmul.bf16.gmra.mxu0 %v2025
        %v2106 = vpop.f32.mrf.mxu0
        %v2107 = vadd.f32 %v2063, %v2106
        %v2108 = vpop.f32.mrf.mxu0
        %v2109 = vadd.f32 %v2065, %v2108
        %2110 = vmatmul.bf16.gmra.mxu0 %v2028
        %v2111 = vpop.f32.mrf.mxu0
        %v2112 = vadd.f32 %v2068, %v2111
        %v2113 = vpop.f32.mrf.mxu0
        %v2114 = vadd.f32 %v2070, %v2113
        %2115 = vmatmul.bf16.gmra.mxu0 %v2031
        %v2116 = vpop.f32.mrf.mxu0
        %v2117 = vadd.f32 %v2073, %v2116
        %v2118 = vpop.f32.mrf.mxu0
        %v2119 = vadd.f32 %v2075, %v2118
        %2120 = vmatmul.bf16.gmra.mxu0 %v2034
        %v2121 = vpop.f32.mrf.mxu0
        %v2122 = vadd.f32 %v2078, %v2121
        %v2123 = vpop.f32.mrf.mxu0
        %v2124 = vadd.f32 %v2080, %v2123
        %2125 = vmatmul.bf16.gmra.mxu0 %v2037
        %v2126 = vpop.f32.mrf.mxu0
        %v2127 = vadd.f32 %v2083, %v2126
        %v2128 = vpop.f32.mrf.mxu0
        %v2129 = vadd.f32 %v2085, %v2128
        %2130 = vdwg.mxu0
        %s2131 = scalar_lea.vmem %s3, 84
        %v2132 = vld [vmem:[%s2131] sm:$0xf]
        %v2133 = vld [vmem:[%s2131 + $0x4] sm:$0xf]
        %v2134 = vld [vmem:[%s2131 + $0x8] sm:$0xf]
        %v2135 = vld [vmem:[%s2131 + $0xc] sm:$0xf]
        %v2136 = vld [vmem:[%s2131 + $0x10] sm:$0xf]
        %v2137 = vld [vmem:[%s2131 + $0x14] sm:$0xf]
        %v2138 = vld [vmem:[%s2131 + $0x18] sm:$0xf]
        %v2139 = vld [vmem:[%s2131 + $0x1c] sm:$0xf]
        %v2140 = vld [vmem:[%s2131 + $0x20] sm:$0xf]
        %v2141 = vld [vmem:[%s2131 + $0x24] sm:$0xf]
        %v2142 = vld [vmem:[%s2131 + $0x28] sm:$0xf]
        %v2143 = vld [vmem:[%s2131 + $0x2c] sm:$0xf]
        %v2144 = vld [vmem:[%s2131 + $0x30] sm:$0xf]
        %v2145 = vld [vmem:[%s2131 + $0x34] sm:$0xf]
        %v2146 = vld [vmem:[%s2131 + $0x38] sm:$0xf]
        %v2147 = vld [vmem:[%s2131 + $0x3c] sm:$0xf]
        %v2148 = vld [vmem:[%s2131 + $0x40] sm:$0xf]
        %v2149 = vld [vmem:[%s2131 + $0x44] sm:$0xf]
        %v2150 = vld [vmem:[%s2131 + $0x48] sm:$0xf]
        %v2151 = vld [vmem:[%s2131 + $0x4c] sm:$0xf]
        %v2152 = vld [vmem:[%s2131 + $0x50] sm:$0xf]
        %v2174 = vunpack.c.l.b16 %v2132
        %v2175 = vunpack.c.l.b16 %v2133
        %v2176 = vunpack.c.l.b16 %v2134
        %v2177 = vunpack.c.l.b16 %v2135
        %v2178 = vunpack.c.l.b16 %v2136
        %v2179 = vunpack.c.l.b16 %v2137
        %v2180 = vunpack.c.l.b16 %v2138
        %v2181 = vunpack.c.l.b16 %v2139
        %v2182 = vunpack.c.l.b16 %v2140
        %v2183 = vunpack.c.l.b16 %v2141
        %v2184 = vunpack.c.l.b16 %v2142
        %v2185 = vunpack.c.l.b16 %v2143
        %v2186 = vunpack.c.l.b16 %v2144
        %v2187 = vunpack.c.l.b16 %v2145
        %v2188 = vunpack.c.l.b16 %v2146
        %v2189 = vunpack.c.l.b16 %v2147
        %v2190 = vunpack.c.l.b16 %v2148
        %v2191 = vunpack.c.l.b16 %v2149
        %v2192 = vunpack.c.l.b16 %v2150
        %v2193 = vunpack.c.l.b16 %v2151
        %v2194 = vunpack.c.l.b16 %v2152
        %v2195 = vpack.c.b16 %v2175, %v2174
        %v2196 = vpack.c.b16 %v2177, %v2176
        %v2197 = vpack.c.b16 %v2179, %v2178
        %v2198 = vpack.c.b16 %v2181, %v2180
        %v2199 = vpack.c.b16 %v2183, %v2182
        %v2200 = vpack.c.b16 %v2185, %v2184
        %v2201 = vpack.c.b16 %v2187, %v2186
        %v2202 = vpack.c.b16 %v2189, %v2188
        %v2203 = vpack.c.b16 %v2191, %v2190
        %v2204 = vpack.c.b16 %v2193, %v2192
        %v2205 = vpack.c.b16 %v2194, %v2194
        %v2217 = vsel %vm2039, %v2205, 0
        %2219 = vmatpush.bf16.msra.mxu0 %v2202
        %2220 = vmatpush.bf16.msra.mxu0 %v2201
        %2221 = vmatpush.bf16.msra.mxu0 %v2200
        %2222 = vmatpush.bf16.msra.mxu0 %v2199
        %2223 = vmatpush.bf16.msra.mxu0 %v2198
        %2224 = vmatpush.bf16.msra.mxu0 %v2197
        %2225 = vmatpush.bf16.msra.mxu0 %v2196
        %2226 = vmatpush.bf16.msra.mxu0 %v2195
        %2227 = vmatmul.bf16.gmra.mxu0 %v1919
        %v2228 = vpop.f32.mrf.mxu0
        %v2229 = vadd.f32 0.0, %v2228
        %v2230 = vpop.f32.mrf.mxu0
        %v2231 = vadd.f32 0.0, %v2230
        %2232 = vmatmul.bf16.gmra.mxu0 %v1921
        %v2233 = vpop.f32.mrf.mxu0
        %v2234 = vadd.f32 0.0, %v2233
        %v2235 = vpop.f32.mrf.mxu0
        %v2236 = vadd.f32 0.0, %v2235
        %2237 = vmatmul.bf16.gmra.mxu0 %v1923
        %v2238 = vpop.f32.mrf.mxu0
        %v2239 = vadd.f32 0.0, %v2238
        %v2240 = vpop.f32.mrf.mxu0
        %v2241 = vadd.f32 0.0, %v2240
        %2242 = vmatmul.bf16.gmra.mxu0 %v1925
        %v2243 = vpop.f32.mrf.mxu0
        %v2244 = vadd.f32 0.0, %v2243
        %v2245 = vpop.f32.mrf.mxu0
        %v2246 = vadd.f32 0.0, %v2245
        %2247 = vmatmul.bf16.gmra.mxu0 %v1927
        %v2248 = vpop.f32.mrf.mxu0
        %v2249 = vadd.f32 0.0, %v2248
        %v2250 = vpop.f32.mrf.mxu0
        %v2251 = vadd.f32 0.0, %v2250
        %2252 = vmatmul.bf16.gmra.mxu0 %v1929
        %v2253 = vpop.f32.mrf.mxu0
        %v2254 = vadd.f32 0.0, %v2253
        %v2255 = vpop.f32.mrf.mxu0
        %v2256 = vadd.f32 0.0, %v2255
        %2257 = vmatmul.bf16.gmra.mxu0 %v1931
        %v2258 = vpop.f32.mrf.mxu0
        %v2259 = vadd.f32 0.0, %v2258
        %v2260 = vpop.f32.mrf.mxu0
        %v2261 = vadd.f32 0.0, %v2260
        %2262 = vdwg.mxu0
        %2263 = vmatpush.bf16.msra.mxu0 0
        %2264 = vmatpush.bf16.msra.mxu0 0
        %2265 = vmatpush.bf16.msra.mxu0 0
        %2266 = vmatpush.bf16.msra.mxu0 0
        %2267 = vmatpush.bf16.msra.mxu0 0
        %2268 = vmatpush.bf16.msra.mxu0 %v2217
        %2269 = vmatpush.bf16.msra.mxu0 %v2204
        %2270 = vmatpush.bf16.msra.mxu0 %v2203
        %2271 = vmatmul.bf16.gmra.mxu0 %v2019
        %v2272 = vpop.f32.mrf.mxu0
        %v2273 = vadd.f32 %v2229, %v2272
        %v2274 = vpop.f32.mrf.mxu0
        %v2275 = vadd.f32 %v2231, %v2274
        %2276 = vmatmul.bf16.gmra.mxu0 %v2022
        %v2277 = vpop.f32.mrf.mxu0
        %v2278 = vadd.f32 %v2234, %v2277
        %v2279 = vpop.f32.mrf.mxu0
        %v2280 = vadd.f32 %v2236, %v2279
        %2281 = vmatmul.bf16.gmra.mxu0 %v2025
        %v2282 = vpop.f32.mrf.mxu0
        %v2283 = vadd.f32 %v2239, %v2282
        %v2284 = vpop.f32.mrf.mxu0
        %v2285 = vadd.f32 %v2241, %v2284
        %2286 = vmatmul.bf16.gmra.mxu0 %v2028
        %v2287 = vpop.f32.mrf.mxu0
        %v2288 = vadd.f32 %v2244, %v2287
        %v2289 = vpop.f32.mrf.mxu0
        %v2290 = vadd.f32 %v2246, %v2289
        %2291 = vmatmul.bf16.gmra.mxu0 %v2031
        %v2292 = vpop.f32.mrf.mxu0
        %v2293 = vadd.f32 %v2249, %v2292
        %v2294 = vpop.f32.mrf.mxu0
        %v2295 = vadd.f32 %v2251, %v2294
        %2296 = vmatmul.bf16.gmra.mxu0 %v2034
        %v2297 = vpop.f32.mrf.mxu0
        %v2298 = vadd.f32 %v2254, %v2297
        %v2299 = vpop.f32.mrf.mxu0
        %v2300 = vadd.f32 %v2256, %v2299
        %2301 = vmatmul.bf16.gmra.mxu0 %v2037
        %v2302 = vpop.f32.mrf.mxu0
        %v2303 = vadd.f32 %v2259, %v2302
        %v2304 = vpop.f32.mrf.mxu0
        %v2305 = vadd.f32 %v2261, %v2304
        %2306 = vdwg.mxu0
        %v2307 = vmax.f32 %v2097, %v2273
        %v2308 = vmax.f32 %v2099, %v2275
        %v2309 = vmax.f32 %v2102, %v2278
        %v2310 = vmax.f32 %v2104, %v2280
        %v2311 = vmax.f32 %v2107, %v2283
        %v2312 = vmax.f32 %v2109, %v2285
        %v2313 = vmax.f32 %v2112, %v2288
        %v2314 = vmax.f32 %v2114, %v2290
        %v2315 = vmax.f32 %v2117, %v2293
        %v2316 = vmax.f32 %v2119, %v2295
        %v2317 = vmax.f32 %v2122, %v2298
        %v2318 = vmax.f32 %v2124, %v2300
        %v2319 = vmax.f32 %v2127, %v2303
        %v2320 = vmax.f32 %v2129, %v2305
        %v2321 = vpack.c.bf16 %v2307, %v2307
        %v2322 = vpack.c.bf16 %v2308, %v2308
        %v2323 = vpack.c.bf16 %v2309, %v2309
        %v2324 = vpack.c.bf16 %v2310, %v2310
        %v2325 = vpack.c.bf16 %v2311, %v2311
        %v2326 = vpack.c.bf16 %v2312, %v2312
        %v2327 = vpack.c.bf16 %v2313, %v2313
        %v2328 = vpack.c.bf16 %v2314, %v2314
        %v2329 = vpack.c.bf16 %v2315, %v2315
        %v2330 = vpack.c.bf16 %v2316, %v2316
        %v2331 = vpack.c.bf16 %v2317, %v2317
        %v2332 = vpack.c.bf16 %v2318, %v2318
        %v2333 = vpack.c.bf16 %v2319, %v2319
        %v2334 = vpack.c.bf16 %v2320, %v2320
        %v2335 = vld [vmem:[%s4] sm:$0xff]
        %v2336 = vld [vmem:[%s4 + $0x8] sm:$0xff]
        %v2337 = vld [vmem:[%s4 + $0x10] sm:$0xff]
        %v2338 = vld [vmem:[%s4 + $0x18] sm:$0xff]
        %v2339 = vld [vmem:[%s4 + $0x20] sm:$0xff]
        %v2340 = vld [vmem:[%s4 + $0x28] sm:$0xff]
        %v2341 = vld [vmem:[%s4 + $0x30] sm:$0xff]
        %v2342 = vld [vmem:[%s4 + $0x38] sm:$0xff]
        %v2343 = vld [vmem:[%s4 + $0x40] sm:$0xff]
        %v2344 = vld [vmem:[%s4 + $0x48] sm:$0xff]
        %v2345 = vld [vmem:[%s4 + $0x50] sm:$0x33]
        %s2346 = scalar_lea.vmem %s4, 88
        %v2347 = vld [vmem:[%s2346] sm:$0xff]
        %v2348 = vld [vmem:[%s2346 + $0x8] sm:$0xff]
        %v2349 = vld [vmem:[%s2346 + $0x10] sm:$0xff]
        %v2350 = vld [vmem:[%s2346 + $0x18] sm:$0xff]
        %v2351 = vld [vmem:[%s2346 + $0x20] sm:$0xff]
        %v2352 = vld [vmem:[%s2346 + $0x28] sm:$0xff]
        %v2353 = vld [vmem:[%s2346 + $0x30] sm:$0xff]
        %v2354 = vld [vmem:[%s2346 + $0x38] sm:$0xff]
        %v2355 = vld [vmem:[%s2346 + $0x40] sm:$0xff]
        %v2356 = vld [vmem:[%s2346 + $0x48] sm:$0xff]
        %v2357 = vld [vmem:[%s2346 + $0x50] sm:$0x33]
        %v2368 = vunpack.c.l.b16 %v2322
        %v2369 = vunpack.c.l.b16 %v2323
        %v2370 = vunpack.c.l.b16 %v2324
        %v2371 = vunpack.c.l.b16 %v2325
        %v2372 = vunpack.c.l.b16 %v2326
        %v2373 = vunpack.c.l.b16 %v2327
        %v2374 = vunpack.c.l.b16 %v2328
        %v2375 = vunpack.c.l.b16 %v2329
        %v2376 = vunpack.c.l.b16 %v2330
        %v2377 = vunpack.c.l.b16 %v2331
        %v2378 = vpack.c.b16 %v2369, %v2368
        %v2379 = vpack.c.b16 %v2371, %v2370
        %v2380 = vpack.c.b16 %v2373, %v2372
        %v2381 = vpack.c.b16 %v2375, %v2374
        %v2382 = vpack.c.b16 %v2377, %v2376
        %v2394 = vunpack.c.l.b16 %v2347
        %v2395 = vunpack.c.h.b16 %v2347
        %v2396 = vunpack.c.l.b16 %v2348
        %v2397 = vunpack.c.h.b16 %v2348
        %v2398 = vunpack.c.l.b16 %v2349
        %v2399 = vunpack.c.h.b16 %v2349
        %v2400 = vunpack.c.l.b16 %v2350
        %v2401 = vunpack.c.h.b16 %v2350
        %v2402 = vunpack.c.l.b16 %v2351
        %v2403 = vunpack.c.h.b16 %v2351
        %v2404 = vunpack.c.l.b16 %v2352
        %v2405 = vunpack.c.h.b16 %v2352
        %v2406 = vunpack.c.l.b16 %v2353
        %v2407 = vunpack.c.h.b16 %v2353
        %v2408 = vunpack.c.l.b16 %v2354
        %v2409 = vunpack.c.h.b16 %v2354
        %v2410 = vunpack.c.l.b16 %v2355
        %v2411 = vunpack.c.h.b16 %v2355
        %v2412 = vunpack.c.l.b16 %v2356
        %v2413 = vunpack.c.h.b16 %v2356
        %v2414 = vunpack.c.l.b16 %v2357
        %v2415 = vunpack.c.h.b16 %v2357
        %v2416 = vpack.c.b16 %v2396, %v2394
        %v2417 = vpack.c.b16 %v2397, %v2395
        %v2418 = vpack.c.b16 %v2400, %v2398
        %v2419 = vpack.c.b16 %v2401, %v2399
        %v2420 = vpack.c.b16 %v2404, %v2402
        %v2421 = vpack.c.b16 %v2405, %v2403
        %v2422 = vpack.c.b16 %v2408, %v2406
        %v2423 = vpack.c.b16 %v2409, %v2407
        %v2424 = vpack.c.b16 %v2412, %v2410
        %v2425 = vpack.c.b16 %v2413, %v2411
        %v2426 = vpack.c.b16 %v2414, %v2414
        %v2427 = vpack.c.b16 %v2415, %v2415
        %vm2438 = vcmask 687104
        %v2440 = vsel %vm2438, %v2378, 0
        %v2443 = vsel %vm2438, %v2379, 0
        %v2446 = vsel %vm2438, %v2380, 0
        %v2449 = vsel %vm2438, %v2381, 0
        %v2452 = vsel %vm2438, %v2382, 0
        %vm2454 = vcmask 1041408
        %v2456 = vsel %vm2454, %v2426, 0
        %v2459 = vsel %vm2454, %v2427, 0
        %2461 = vmatpush.bf16.msra.mxu0 0
        %2462 = vmatpush.bf16.msra.mxu0 0
        %2463 = vmatpush.bf16.msra.mxu0 %v2456
        %2464 = vmatpush.bf16.msra.mxu0 %v2424
        %2465 = vmatpush.bf16.msra.mxu0 %v2422
        %2466 = vmatpush.bf16.msra.mxu0 %v2420
        %2467 = vmatpush.bf16.msra.mxu0 %v2418
        %2468 = vmatpush.bf16.msra.mxu0 %v2416
        %2469 = vmatmul.bf16.gmra.mxu0 %v2440
        %v2470 = vpop.f32.mrf.mxu0
        %v2471 = vadd.f32 0.0, %v2470
        %v2472 = vpop.f32.mrf.mxu0
        %v2473 = vadd.f32 0.0, %v2472
        %2474 = vmatmul.bf16.gmra.mxu0 %v2443
        %v2475 = vpop.f32.mrf.mxu0
        %v2476 = vadd.f32 0.0, %v2475
        %v2477 = vpop.f32.mrf.mxu0
        %v2478 = vadd.f32 0.0, %v2477
        %2479 = vmatmul.bf16.gmra.mxu0 %v2446
        %v2480 = vpop.f32.mrf.mxu0
        %v2481 = vadd.f32 0.0, %v2480
        %v2482 = vpop.f32.mrf.mxu0
        %v2483 = vadd.f32 0.0, %v2482
        %2484 = vmatmul.bf16.gmra.mxu0 %v2449
        %v2485 = vpop.f32.mrf.mxu0
        %v2486 = vadd.f32 0.0, %v2485
        %v2487 = vpop.f32.mrf.mxu0
        %v2488 = vadd.f32 0.0, %v2487
        %2489 = vmatmul.bf16.gmra.mxu0 %v2452
        %v2490 = vpop.f32.mrf.mxu0
        %v2491 = vadd.f32 0.0, %v2490
        %v2492 = vpop.f32.mrf.mxu0
        %v2493 = vadd.f32 0.0, %v2492
        %2494 = vdwg.mxu0
        %2495 = vmatpush.bf16.msra.mxu0 0
        %2496 = vmatpush.bf16.msra.mxu0 0
        %2497 = vmatpush.bf16.msra.mxu0 %v2459
        %2498 = vmatpush.bf16.msra.mxu0 %v2425
        %2499 = vmatpush.bf16.msra.mxu0 %v2423
        %2500 = vmatpush.bf16.msra.mxu0 %v2421
        %2501 = vmatpush.bf16.msra.mxu0 %v2419
        %2502 = vmatpush.bf16.msra.mxu0 %v2417
        %2503 = vmatmul.bf16.gmra.mxu0 %v2440
        %v2504 = vpop.f32.mrf.mxu0
        %v2505 = vadd.f32 0.0, %v2504
        %v2506 = vpop.f32.mrf.mxu0
        %v2507 = vadd.f32 0.0, %v2506
        %2508 = vmatmul.bf16.gmra.mxu0 %v2443
        %v2509 = vpop.f32.mrf.mxu0
        %v2510 = vadd.f32 0.0, %v2509
        %v2511 = vpop.f32.mrf.mxu0
        %v2512 = vadd.f32 0.0, %v2511
        %2513 = vmatmul.bf16.gmra.mxu0 %v2446
        %v2514 = vpop.f32.mrf.mxu0
        %v2515 = vadd.f32 0.0, %v2514
        %v2516 = vpop.f32.mrf.mxu0
        %v2517 = vadd.f32 0.0, %v2516
        %2518 = vmatmul.bf16.gmra.mxu0 %v2449
        %v2519 = vpop.f32.mrf.mxu0
        %v2520 = vadd.f32 0.0, %v2519
        %v2521 = vpop.f32.mrf.mxu0
        %v2522 = vadd.f32 0.0, %v2521
        %2523 = vmatmul.bf16.gmra.mxu0 %v2452
        %v2524 = vpop.f32.mrf.mxu0
        %v2525 = vadd.f32 0.0, %v2524
        %v2526 = vpop.f32.mrf.mxu0
        %v2527 = vadd.f32 0.0, %v2526
        %2528 = vdwg.mxu0
        %v2530 = vunpack.c.l.b16 %v2321
        %v2531 = vpack.c.b16 %v2368, %v2530
        %v2532 = vpack.c.b16 %v2370, %v2369
        %v2533 = vpack.c.b16 %v2372, %v2371
        %v2534 = vpack.c.b16 %v2374, %v2373
        %v2535 = vpack.c.b16 %v2376, %v2375
        %v2547 = vunpack.c.l.b16 %v2335
        %v2548 = vunpack.c.h.b16 %v2335
        %v2549 = vunpack.c.l.b16 %v2336
        %v2550 = vunpack.c.h.b16 %v2336
        %v2551 = vunpack.c.l.b16 %v2337
        %v2552 = vunpack.c.h.b16 %v2337
        %v2553 = vunpack.c.l.b16 %v2338
        %v2554 = vunpack.c.h.b16 %v2338
        %v2555 = vunpack.c.l.b16 %v2339
        %v2556 = vunpack.c.h.b16 %v2339
        %v2557 = vunpack.c.l.b16 %v2340
        %v2558 = vunpack.c.h.b16 %v2340
        %v2559 = vunpack.c.l.b16 %v2341
        %v2560 = vunpack.c.h.b16 %v2341
        %v2561 = vunpack.c.l.b16 %v2342
        %v2562 = vunpack.c.h.b16 %v2342
        %v2563 = vunpack.c.l.b16 %v2343
        %v2564 = vunpack.c.h.b16 %v2343
        %v2565 = vunpack.c.l.b16 %v2344
        %v2566 = vunpack.c.h.b16 %v2344
        %v2567 = vunpack.c.l.b16 %v2345
        %v2568 = vunpack.c.h.b16 %v2345
        %v2569 = vpack.c.b16 %v2549, %v2547
        %v2570 = vpack.c.b16 %v2550, %v2548
        %v2571 = vpack.c.b16 %v2553, %v2551
        %v2572 = vpack.c.b16 %v2554, %v2552
        %v2573 = vpack.c.b16 %v2557, %v2555
        %v2574 = vpack.c.b16 %v2558, %v2556
        %v2575 = vpack.c.b16 %v2561, %v2559
        %v2576 = vpack.c.b16 %v2562, %v2560
        %v2577 = vpack.c.b16 %v2565, %v2563
        %v2578 = vpack.c.b16 %v2566, %v2564
        %v2579 = vpack.c.b16 %v2567, %v2567
        %v2580 = vpack.c.b16 %v2568, %v2568
        %v2592 = vsel %vm2438, %v2531, 0
        %v2595 = vsel %vm2438, %v2532, 0
        %v2598 = vsel %vm2438, %v2533, 0
        %v2601 = vsel %vm2438, %v2534, 0
        %v2604 = vsel %vm2438, %v2535, 0
        %v2607 = vsel %vm2454, %v2579, 0
        %v2610 = vsel %vm2454, %v2580, 0
        %2612 = vmatpush.bf16.msra.mxu0 0
        %2613 = vmatpush.bf16.msra.mxu0 0
        %2614 = vmatpush.bf16.msra.mxu0 %v2607
        %2615 = vmatpush.bf16.msra.mxu0 %v2577
        %2616 = vmatpush.bf16.msra.mxu0 %v2575
        %2617 = vmatpush.bf16.msra.mxu0 %v2573
        %2618 = vmatpush.bf16.msra.mxu0 %v2571
        %2619 = vmatpush.bf16.msra.mxu0 %v2569
        %2620 = vmatmul.bf16.gmra.mxu0 %v2592
        %v2621 = vpop.f32.mrf.mxu0
        %v2622 = vadd.f32 %v2471, %v2621
        %v2623 = vpop.f32.mrf.mxu0
        %v2624 = vadd.f32 %v2473, %v2623
        %2625 = vmatmul.bf16.gmra.mxu0 %v2595
        %v2626 = vpop.f32.mrf.mxu0
        %v2627 = vadd.f32 %v2476, %v2626
        %v2628 = vpop.f32.mrf.mxu0
        %v2629 = vadd.f32 %v2478, %v2628
        %2630 = vmatmul.bf16.gmra.mxu0 %v2598
        %v2631 = vpop.f32.mrf.mxu0
        %v2632 = vadd.f32 %v2481, %v2631
        %v2633 = vpop.f32.mrf.mxu0
        %v2634 = vadd.f32 %v2483, %v2633
        %2635 = vmatmul.bf16.gmra.mxu0 %v2601
        %v2636 = vpop.f32.mrf.mxu0
        %v2637 = vadd.f32 %v2486, %v2636
        %v2638 = vpop.f32.mrf.mxu0
        %v2639 = vadd.f32 %v2488, %v2638
        %2640 = vmatmul.bf16.gmra.mxu0 %v2604
        %v2641 = vpop.f32.mrf.mxu0
        %v2642 = vadd.f32 %v2491, %v2641
        %v2643 = vpop.f32.mrf.mxu0
        %v2644 = vadd.f32 %v2493, %v2643
        %2645 = vdwg.mxu0
        %2646 = vmatpush.bf16.msra.mxu0 0
        %2647 = vmatpush.bf16.msra.mxu0 0
        %2648 = vmatpush.bf16.msra.mxu0 %v2610
        %2649 = vmatpush.bf16.msra.mxu0 %v2578
        %2650 = vmatpush.bf16.msra.mxu0 %v2576
        %2651 = vmatpush.bf16.msra.mxu0 %v2574
        %2652 = vmatpush.bf16.msra.mxu0 %v2572
        %2653 = vmatpush.bf16.msra.mxu0 %v2570
        %2654 = vmatmul.bf16.gmra.mxu0 %v2592
        %v2655 = vpop.f32.mrf.mxu0
        %v2656 = vadd.f32 %v2505, %v2655
        %v2657 = vpop.f32.mrf.mxu0
        %v2658 = vadd.f32 %v2507, %v2657
        %2659 = vmatmul.bf16.gmra.mxu0 %v2595
        %v2660 = vpop.f32.mrf.mxu0
        %v2661 = vadd.f32 %v2510, %v2660
        %v2662 = vpop.f32.mrf.mxu0
        %v2663 = vadd.f32 %v2512, %v2662
        %2664 = vmatmul.bf16.gmra.mxu0 %v2598
        %v2665 = vpop.f32.mrf.mxu0
        %v2666 = vadd.f32 %v2515, %v2665
        %v2667 = vpop.f32.mrf.mxu0
        %v2668 = vadd.f32 %v2517, %v2667
        %2669 = vmatmul.bf16.gmra.mxu0 %v2601
        %v2670 = vpop.f32.mrf.mxu0
        %v2671 = vadd.f32 %v2520, %v2670
        %v2672 = vpop.f32.mrf.mxu0
        %v2673 = vadd.f32 %v2522, %v2672
        %2674 = vmatmul.bf16.gmra.mxu0 %v2604
        %v2675 = vpop.f32.mrf.mxu0
        %v2676 = vadd.f32 %v2525, %v2675
        %v2677 = vpop.f32.mrf.mxu0
        %v2678 = vadd.f32 %v2527, %v2677
        %2679 = vdwg.mxu0
        %s2680 = scalar_lea.vmem %s4, 176
        %v2681 = vld [vmem:[%s2680] sm:$0xff]
        %v2682 = vld [vmem:[%s2680 + $0x8] sm:$0xff]
        %v2683 = vld [vmem:[%s2680 + $0x10] sm:$0xff]
        %v2684 = vld [vmem:[%s2680 + $0x18] sm:$0xff]
        %v2685 = vld [vmem:[%s2680 + $0x20] sm:$0xff]
        %v2686 = vld [vmem:[%s2680 + $0x28] sm:$0xff]
        %v2687 = vld [vmem:[%s2680 + $0x30] sm:$0xff]
        %v2688 = vld [vmem:[%s2680 + $0x38] sm:$0xff]
        %v2689 = vld [vmem:[%s2680 + $0x40] sm:$0xff]
        %v2690 = vld [vmem:[%s2680 + $0x48] sm:$0xff]
        %v2691 = vld [vmem:[%s2680 + $0x50] sm:$0x33]
        %v2693 = vunpack.c.l.b16 %v2332
        %v2694 = vpack.c.b16 %v2693, %v2377
        %v2706 = vunpack.c.l.b16 %v2681
        %v2707 = vunpack.c.h.b16 %v2681
        %v2708 = vunpack.c.l.b16 %v2682
        %v2709 = vunpack.c.h.b16 %v2682
        %v2710 = vunpack.c.l.b16 %v2683
        %v2711 = vunpack.c.h.b16 %v2683
        %v2712 = vunpack.c.l.b16 %v2684
        %v2713 = vunpack.c.h.b16 %v2684
        %v2714 = vunpack.c.l.b16 %v2685
        %v2715 = vunpack.c.h.b16 %v2685
        %v2716 = vunpack.c.l.b16 %v2686
        %v2717 = vunpack.c.h.b16 %v2686
        %v2718 = vunpack.c.l.b16 %v2687
        %v2719 = vunpack.c.h.b16 %v2687
        %v2720 = vunpack.c.l.b16 %v2688
        %v2721 = vunpack.c.h.b16 %v2688
        %v2722 = vunpack.c.l.b16 %v2689
        %v2723 = vunpack.c.h.b16 %v2689
        %v2724 = vunpack.c.l.b16 %v2690
        %v2725 = vunpack.c.h.b16 %v2690
        %v2726 = vunpack.c.l.b16 %v2691
        %v2727 = vunpack.c.h.b16 %v2691
        %v2728 = vpack.c.b16 %v2708, %v2706
        %v2729 = vpack.c.b16 %v2709, %v2707
        %v2730 = vpack.c.b16 %v2712, %v2710
        %v2731 = vpack.c.b16 %v2713, %v2711
        %v2732 = vpack.c.b16 %v2716, %v2714
        %v2733 = vpack.c.b16 %v2717, %v2715
        %v2734 = vpack.c.b16 %v2720, %v2718
        %v2735 = vpack.c.b16 %v2721, %v2719
        %v2736 = vpack.c.b16 %v2724, %v2722
        %v2737 = vpack.c.b16 %v2725, %v2723
        %v2738 = vpack.c.b16 %v2726, %v2726
        %v2739 = vpack.c.b16 %v2727, %v2727
        %v2751 = vsel %vm2438, %v2694, 0
        %v2754 = vsel %vm2454, %v2738, 0
        %v2757 = vsel %vm2454, %v2739, 0
        %2759 = vmatpush.bf16.msra.mxu0 0
        %2760 = vmatpush.bf16.msra.mxu0 0
        %2761 = vmatpush.bf16.msra.mxu0 %v2754
        %2762 = vmatpush.bf16.msra.mxu0 %v2736
        %2763 = vmatpush.bf16.msra.mxu0 %v2734
        %2764 = vmatpush.bf16.msra.mxu0 %v2732
        %2765 = vmatpush.bf16.msra.mxu0 %v2730
        %2766 = vmatpush.bf16.msra.mxu0 %v2728
        %2767 = vmatmul.bf16.gmra.mxu0 %v2595
        %v2768 = vpop.f32.mrf.mxu0
        %v2769 = vadd.f32 0.0, %v2768
        %v2770 = vpop.f32.mrf.mxu0
        %v2771 = vadd.f32 0.0, %v2770
        %2772 = vmatmul.bf16.gmra.mxu0 %v2598
        %v2773 = vpop.f32.mrf.mxu0
        %v2774 = vadd.f32 0.0, %v2773
        %v2775 = vpop.f32.mrf.mxu0
        %v2776 = vadd.f32 0.0, %v2775
        %2777 = vmatmul.bf16.gmra.mxu0 %v2601
        %v2778 = vpop.f32.mrf.mxu0
        %v2779 = vadd.f32 0.0, %v2778
        %v2780 = vpop.f32.mrf.mxu0
        %v2781 = vadd.f32 0.0, %v2780
        %2782 = vmatmul.bf16.gmra.mxu0 %v2604
        %v2783 = vpop.f32.mrf.mxu0
        %v2784 = vadd.f32 0.0, %v2783
        %v2785 = vpop.f32.mrf.mxu0
        %v2786 = vadd.f32 0.0, %v2785
        %2787 = vmatmul.bf16.gmra.mxu0 %v2751
        %v2788 = vpop.f32.mrf.mxu0
        %v2789 = vadd.f32 0.0, %v2788
        %v2790 = vpop.f32.mrf.mxu0
        %v2791 = vadd.f32 0.0, %v2790
        %2792 = vdwg.mxu0
        %2793 = vmatpush.bf16.msra.mxu0 0
        %2794 = vmatpush.bf16.msra.mxu0 0
        %2795 = vmatpush.bf16.msra.mxu0 %v2757
        %2796 = vmatpush.bf16.msra.mxu0 %v2737
        %2797 = vmatpush.bf16.msra.mxu0 %v2735
        %2798 = vmatpush.bf16.msra.mxu0 %v2733
        %2799 = vmatpush.bf16.msra.mxu0 %v2731
        %2800 = vmatpush.bf16.msra.mxu0 %v2729
        %2801 = vmatmul.bf16.gmra.mxu0 %v2595
        %v2802 = vpop.f32.mrf.mxu0
        %v2803 = vadd.f32 0.0, %v2802
        %v2804 = vpop.f32.mrf.mxu0
        %v2805 = vadd.f32 0.0, %v2804
        %2806 = vmatmul.bf16.gmra.mxu0 %v2598
        %v2807 = vpop.f32.mrf.mxu0
        %v2808 = vadd.f32 0.0, %v2807
        %v2809 = vpop.f32.mrf.mxu0
        %v2810 = vadd.f32 0.0, %v2809
        %2811 = vmatmul.bf16.gmra.mxu0 %v2601
        %v2812 = vpop.f32.mrf.mxu0
        %v2813 = vadd.f32 0.0, %v2812
        %v2814 = vpop.f32.mrf.mxu0
        %v2815 = vadd.f32 0.0, %v2814
        %2816 = vmatmul.bf16.gmra.mxu0 %v2604
        %v2817 = vpop.f32.mrf.mxu0
        %v2818 = vadd.f32 0.0, %v2817
        %v2819 = vpop.f32.mrf.mxu0
        %v2820 = vadd.f32 0.0, %v2819
        %2821 = vmatmul.bf16.gmra.mxu0 %v2751
        %v2822 = vpop.f32.mrf.mxu0
        %v2823 = vadd.f32 0.0, %v2822
        %v2824 = vpop.f32.mrf.mxu0
        %v2825 = vadd.f32 0.0, %v2824
        %2826 = vdwg.mxu0
        %v2827 = vadd.f32 %v2622, %v2769
        %v2828 = vadd.f32 %v2656, %v2803
        %v2829 = vadd.f32 %v2624, %v2771
        %v2830 = vadd.f32 %v2658, %v2805
        %v2831 = vadd.f32 %v2627, %v2774
        %v2832 = vadd.f32 %v2661, %v2808
        %v2833 = vadd.f32 %v2629, %v2776
        %v2834 = vadd.f32 %v2663, %v2810
        %v2835 = vadd.f32 %v2632, %v2779
        %v2836 = vadd.f32 %v2666, %v2813
        %v2837 = vadd.f32 %v2634, %v2781
        %v2838 = vadd.f32 %v2668, %v2815
        %v2839 = vadd.f32 %v2637, %v2784
        %v2840 = vadd.f32 %v2671, %v2818
        %v2841 = vadd.f32 %v2639, %v2786
        %v2842 = vadd.f32 %v2673, %v2820
        %v2843 = vadd.f32 %v2642, %v2789
        %v2844 = vadd.f32 %v2676, %v2823
        %v2845 = vadd.f32 %v2644, %v2791
        %v2846 = vadd.f32 %v2678, %v2825
        %s2847 = scalar_lea.vmem %s4, 264
        %v2848 = vld [vmem:[%s2847] sm:$0xff]
        %v2849 = vld [vmem:[%s2847 + $0x8] sm:$0xff]
        %v2850 = vld [vmem:[%s2847 + $0x10] sm:$0xff]
        %v2851 = vld [vmem:[%s2847 + $0x18] sm:$0xff]
        %v2852 = vld [vmem:[%s2847 + $0x20] sm:$0xff]
        %v2853 = vld [vmem:[%s2847 + $0x28] sm:$0xff]
        %v2854 = vld [vmem:[%s2847 + $0x30] sm:$0xff]
        %v2855 = vld [vmem:[%s2847 + $0x38] sm:$0xff]
        %v2856 = vld [vmem:[%s2847 + $0x40] sm:$0xff]
        %v2857 = vld [vmem:[%s2847 + $0x48] sm:$0xff]
        %v2858 = vld [vmem:[%s2847 + $0x50] sm:$0x33]
        %v2860 = vunpack.c.l.b16 %v2333
        %v2861 = vpack.c.b16 %v2860, %v2693
        %v2873 = vunpack.c.l.b16 %v2848
        %v2874 = vunpack.c.h.b16 %v2848
        %v2875 = vunpack.c.l.b16 %v2849
        %v2876 = vunpack.c.h.b16 %v2849
        %v2877 = vunpack.c.l.b16 %v2850
        %v2878 = vunpack.c.h.b16 %v2850
        %v2879 = vunpack.c.l.b16 %v2851
        %v2880 = vunpack.c.h.b16 %v2851
        %v2881 = vunpack.c.l.b16 %v2852
        %v2882 = vunpack.c.h.b16 %v2852
        %v2883 = vunpack.c.l.b16 %v2853
        %v2884 = vunpack.c.h.b16 %v2853
        %v2885 = vunpack.c.l.b16 %v2854
        %v2886 = vunpack.c.h.b16 %v2854
        %v2887 = vunpack.c.l.b16 %v2855
        %v2888 = vunpack.c.h.b16 %v2855
        %v2889 = vunpack.c.l.b16 %v2856
        %v2890 = vunpack.c.h.b16 %v2856
        %v2891 = vunpack.c.l.b16 %v2857
        %v2892 = vunpack.c.h.b16 %v2857
        %v2893 = vunpack.c.l.b16 %v2858
        %v2894 = vunpack.c.h.b16 %v2858
        %v2895 = vpack.c.b16 %v2875, %v2873
        %v2896 = vpack.c.b16 %v2876, %v2874
        %v2897 = vpack.c.b16 %v2879, %v2877
        %v2898 = vpack.c.b16 %v2880, %v2878
        %v2899 = vpack.c.b16 %v2883, %v2881
        %v2900 = vpack.c.b16 %v2884, %v2882
        %v2901 = vpack.c.b16 %v2887, %v2885
        %v2902 = vpack.c.b16 %v2888, %v2886
        %v2903 = vpack.c.b16 %v2891, %v2889
        %v2904 = vpack.c.b16 %v2892, %v2890
        %v2905 = vpack.c.b16 %v2893, %v2893
        %v2906 = vpack.c.b16 %v2894, %v2894
        %v2918 = vsel %vm2438, %v2861, 0
        %v2921 = vsel %vm2454, %v2905, 0
        %v2924 = vsel %vm2454, %v2906, 0
        %2926 = vmatpush.bf16.msra.mxu0 0
        %2927 = vmatpush.bf16.msra.mxu0 0
        %2928 = vmatpush.bf16.msra.mxu0 %v2921
        %2929 = vmatpush.bf16.msra.mxu0 %v2903
        %2930 = vmatpush.bf16.msra.mxu0 %v2901
        %2931 = vmatpush.bf16.msra.mxu0 %v2899
        %2932 = vmatpush.bf16.msra.mxu0 %v2897
        %2933 = vmatpush.bf16.msra.mxu0 %v2895
        %2934 = vmatmul.bf16.gmra.mxu0 %v2443
        %v2935 = vpop.f32.mrf.mxu0
        %v2936 = vadd.f32 0.0, %v2935
        %v2937 = vpop.f32.mrf.mxu0
        %v2938 = vadd.f32 0.0, %v2937
        %2939 = vmatmul.bf16.gmra.mxu0 %v2446
        %v2940 = vpop.f32.mrf.mxu0
        %v2941 = vadd.f32 0.0, %v2940
        %v2942 = vpop.f32.mrf.mxu0
        %v2943 = vadd.f32 0.0, %v2942
        %2944 = vmatmul.bf16.gmra.mxu0 %v2449
        %v2945 = vpop.f32.mrf.mxu0
        %v2946 = vadd.f32 0.0, %v2945
        %v2947 = vpop.f32.mrf.mxu0
        %v2948 = vadd.f32 0.0, %v2947
        %2949 = vmatmul.bf16.gmra.mxu0 %v2452
        %v2950 = vpop.f32.mrf.mxu0
        %v2951 = vadd.f32 0.0, %v2950
        %v2952 = vpop.f32.mrf.mxu0
        %v2953 = vadd.f32 0.0, %v2952
        %2954 = vmatmul.bf16.gmra.mxu0 %v2918
        %v2955 = vpop.f32.mrf.mxu0
        %v2956 = vadd.f32 0.0, %v2955
        %v2957 = vpop.f32.mrf.mxu0
        %v2958 = vadd.f32 0.0, %v2957
        %2959 = vdwg.mxu0
        %2960 = vmatpush.bf16.msra.mxu0 0
        %2961 = vmatpush.bf16.msra.mxu0 0
        %2962 = vmatpush.bf16.msra.mxu0 %v2924
        %2963 = vmatpush.bf16.msra.mxu0 %v2904
        %2964 = vmatpush.bf16.msra.mxu0 %v2902
        %2965 = vmatpush.bf16.msra.mxu0 %v2900
        %2966 = vmatpush.bf16.msra.mxu0 %v2898
        %2967 = vmatpush.bf16.msra.mxu0 %v2896
        %2968 = vmatmul.bf16.gmra.mxu0 %v2443
        %v2969 = vpop.f32.mrf.mxu0
        %v2970 = vadd.f32 0.0, %v2969
        %v2971 = vpop.f32.mrf.mxu0
        %v2972 = vadd.f32 0.0, %v2971
        %2973 = vmatmul.bf16.gmra.mxu0 %v2446
        %v2974 = vpop.f32.mrf.mxu0
        %v2975 = vadd.f32 0.0, %v2974
        %v2976 = vpop.f32.mrf.mxu0
        %v2977 = vadd.f32 0.0, %v2976
        %2978 = vmatmul.bf16.gmra.mxu0 %v2449
        %v2979 = vpop.f32.mrf.mxu0
        %v2980 = vadd.f32 0.0, %v2979
        %v2981 = vpop.f32.mrf.mxu0
        %v2982 = vadd.f32 0.0, %v2981
        %2983 = vmatmul.bf16.gmra.mxu0 %v2452
        %v2984 = vpop.f32.mrf.mxu0
        %v2985 = vadd.f32 0.0, %v2984
        %v2986 = vpop.f32.mrf.mxu0
        %v2987 = vadd.f32 0.0, %v2986
        %2988 = vmatmul.bf16.gmra.mxu0 %v2918
        %v2989 = vpop.f32.mrf.mxu0
        %v2990 = vadd.f32 0.0, %v2989
        %v2991 = vpop.f32.mrf.mxu0
        %v2992 = vadd.f32 0.0, %v2991
        %2993 = vdwg.mxu0
        %v2994 = vadd.f32 %v2827, %v2936
        %v2995 = vadd.f32 %v2828, %v2970
        %v2996 = vadd.f32 %v2829, %v2938
        %v2997 = vadd.f32 %v2830, %v2972
        %v2998 = vadd.f32 %v2831, %v2941
        %v2999 = vadd.f32 %v2832, %v2975
        %v3000 = vadd.f32 %v2833, %v2943
        %v3001 = vadd.f32 %v2834, %v2977
        %v3002 = vadd.f32 %v2835, %v2946
        %v3003 = vadd.f32 %v2836, %v2980
        %v3004 = vadd.f32 %v2837, %v2948
        %v3005 = vadd.f32 %v2838, %v2982
        %v3006 = vadd.f32 %v2839, %v2951
        %v3007 = vadd.f32 %v2840, %v2985
        %v3008 = vadd.f32 %v2841, %v2953
        %v3009 = vadd.f32 %v2842, %v2987
        %v3010 = vadd.f32 %v2843, %v2956
        %v3011 = vadd.f32 %v2844, %v2990
        %v3012 = vadd.f32 %v2845, %v2958
        %v3013 = vadd.f32 %v2846, %v2992
        %s3014 = scalar_lea.vmem %s4, 352
        %v3015 = vld [vmem:[%s3014] sm:$0xff]
        %v3016 = vld [vmem:[%s3014 + $0x8] sm:$0xff]
        %v3017 = vld [vmem:[%s3014 + $0x10] sm:$0xff]
        %v3018 = vld [vmem:[%s3014 + $0x18] sm:$0xff]
        %v3019 = vld [vmem:[%s3014 + $0x20] sm:$0xff]
        %v3020 = vld [vmem:[%s3014 + $0x28] sm:$0xff]
        %v3021 = vld [vmem:[%s3014 + $0x30] sm:$0xff]
        %v3022 = vld [vmem:[%s3014 + $0x38] sm:$0xff]
        %v3023 = vld [vmem:[%s3014 + $0x40] sm:$0xff]
        %v3024 = vld [vmem:[%s3014 + $0x48] sm:$0xff]
        %v3025 = vld [vmem:[%s3014 + $0x50] sm:$0x33]
        %v3027 = vunpack.c.l.b16 %v2334
        %v3028 = vpack.c.b16 %v3027, %v2860
        %v3040 = vunpack.c.l.b16 %v3015
        %v3041 = vunpack.c.h.b16 %v3015
        %v3042 = vunpack.c.l.b16 %v3016
        %v3043 = vunpack.c.h.b16 %v3016
        %v3044 = vunpack.c.l.b16 %v3017
        %v3045 = vunpack.c.h.b16 %v3017
        %v3046 = vunpack.c.l.b16 %v3018
        %v3047 = vunpack.c.h.b16 %v3018
        %v3048 = vunpack.c.l.b16 %v3019
        %v3049 = vunpack.c.h.b16 %v3019
        %v3050 = vunpack.c.l.b16 %v3020
        %v3051 = vunpack.c.h.b16 %v3020
        %v3052 = vunpack.c.l.b16 %v3021
        %v3053 = vunpack.c.h.b16 %v3021
        %v3054 = vunpack.c.l.b16 %v3022
        %v3055 = vunpack.c.h.b16 %v3022
        %v3056 = vunpack.c.l.b16 %v3023
        %v3057 = vunpack.c.h.b16 %v3023
        %v3058 = vunpack.c.l.b16 %v3024
        %v3059 = vunpack.c.h.b16 %v3024
        %v3060 = vunpack.c.l.b16 %v3025
        %v3061 = vunpack.c.h.b16 %v3025
        %v3062 = vpack.c.b16 %v3042, %v3040
        %v3063 = vpack.c.b16 %v3043, %v3041
        %v3064 = vpack.c.b16 %v3046, %v3044
        %v3065 = vpack.c.b16 %v3047, %v3045
        %v3066 = vpack.c.b16 %v3050, %v3048
        %v3067 = vpack.c.b16 %v3051, %v3049
        %v3068 = vpack.c.b16 %v3054, %v3052
        %v3069 = vpack.c.b16 %v3055, %v3053
        %v3070 = vpack.c.b16 %v3058, %v3056
        %v3071 = vpack.c.b16 %v3059, %v3057
        %v3072 = vpack.c.b16 %v3060, %v3060
        %v3073 = vpack.c.b16 %v3061, %v3061
        %v3085 = vsel %vm2438, %v3028, 0
        %v3088 = vsel %vm2454, %v3072, 0
        %v3091 = vsel %vm2454, %v3073, 0
        %3093 = vmatpush.bf16.msra.mxu0 0
        %3094 = vmatpush.bf16.msra.mxu0 0
        %3095 = vmatpush.bf16.msra.mxu0 %v3088
        %3096 = vmatpush.bf16.msra.mxu0 %v3070
        %3097 = vmatpush.bf16.msra.mxu0 %v3068
        %3098 = vmatpush.bf16.msra.mxu0 %v3066
        %3099 = vmatpush.bf16.msra.mxu0 %v3064
        %3100 = vmatpush.bf16.msra.mxu0 %v3062
        %3101 = vmatmul.bf16.gmra.mxu0 %v2598
        %v3102 = vpop.f32.mrf.mxu0
        %v3103 = vadd.f32 0.0, %v3102
        %v3104 = vpop.f32.mrf.mxu0
        %v3105 = vadd.f32 0.0, %v3104
        %3106 = vmatmul.bf16.gmra.mxu0 %v2601
        %v3107 = vpop.f32.mrf.mxu0
        %v3108 = vadd.f32 0.0, %v3107
        %v3109 = vpop.f32.mrf.mxu0
        %v3110 = vadd.f32 0.0, %v3109
        %3111 = vmatmul.bf16.gmra.mxu0 %v2604
        %v3112 = vpop.f32.mrf.mxu0
        %v3113 = vadd.f32 0.0, %v3112
        %v3114 = vpop.f32.mrf.mxu0
        %v3115 = vadd.f32 0.0, %v3114
        %3116 = vmatmul.bf16.gmra.mxu0 %v2751
        %v3117 = vpop.f32.mrf.mxu0
        %v3118 = vadd.f32 0.0, %v3117
        %v3119 = vpop.f32.mrf.mxu0
        %v3120 = vadd.f32 0.0, %v3119
        %3121 = vmatmul.bf16.gmra.mxu0 %v3085
        %v3122 = vpop.f32.mrf.mxu0
        %v3123 = vadd.f32 0.0, %v3122
        %v3124 = vpop.f32.mrf.mxu0
        %v3125 = vadd.f32 0.0, %v3124
        %3126 = vdwg.mxu0
        %3127 = vmatpush.bf16.msra.mxu0 0
        %3128 = vmatpush.bf16.msra.mxu0 0
        %3129 = vmatpush.bf16.msra.mxu0 %v3091
        %3130 = vmatpush.bf16.msra.mxu0 %v3071
        %3131 = vmatpush.bf16.msra.mxu0 %v3069
        %3132 = vmatpush.bf16.msra.mxu0 %v3067
        %3133 = vmatpush.bf16.msra.mxu0 %v3065
        %3134 = vmatpush.bf16.msra.mxu0 %v3063
        %3135 = vmatmul.bf16.gmra.mxu0 %v2598
        %v3136 = vpop.f32.mrf.mxu0
        %v3137 = vadd.f32 0.0, %v3136
        %v3138 = vpop.f32.mrf.mxu0
        %v3139 = vadd.f32 0.0, %v3138
        %3140 = vmatmul.bf16.gmra.mxu0 %v2601
        %v3141 = vpop.f32.mrf.mxu0
        %v3142 = vadd.f32 0.0, %v3141
        %v3143 = vpop.f32.mrf.mxu0
        %v3144 = vadd.f32 0.0, %v3143
        %3145 = vmatmul.bf16.gmra.mxu0 %v2604
        %v3146 = vpop.f32.mrf.mxu0
        %v3147 = vadd.f32 0.0, %v3146
        %v3148 = vpop.f32.mrf.mxu0
        %v3149 = vadd.f32 0.0, %v3148
        %3150 = vmatmul.bf16.gmra.mxu0 %v2751
        %v3151 = vpop.f32.mrf.mxu0
        %v3152 = vadd.f32 0.0, %v3151
        %v3153 = vpop.f32.mrf.mxu0
        %v3154 = vadd.f32 0.0, %v3153
        %3155 = vmatmul.bf16.gmra.mxu0 %v3085
        %v3156 = vpop.f32.mrf.mxu0
        %v3157 = vadd.f32 0.0, %v3156
        %v3158 = vpop.f32.mrf.mxu0
        %v3159 = vadd.f32 0.0, %v3158
        %3160 = vdwg.mxu0
        %v3161 = vadd.f32 %v2994, %v3103
        %v3162 = vadd.f32 %v2995, %v3137
        %v3163 = vadd.f32 %v2996, %v3105
        %v3164 = vadd.f32 %v2997, %v3139
        %v3165 = vadd.f32 %v2998, %v3108
        %v3166 = vadd.f32 %v2999, %v3142
        %v3167 = vadd.f32 %v3000, %v3110
        %v3168 = vadd.f32 %v3001, %v3144
        %v3169 = vadd.f32 %v3002, %v3113
        %v3170 = vadd.f32 %v3003, %v3147
        %v3171 = vadd.f32 %v3004, %v3115
        %v3172 = vadd.f32 %v3005, %v3149
        %v3173 = vadd.f32 %v3006, %v3118
        %v3174 = vadd.f32 %v3007, %v3152
        %v3175 = vadd.f32 %v3008, %v3120
        %v3176 = vadd.f32 %v3009, %v3154
        %v3177 = vadd.f32 %v3010, %v3123
        %v3178 = vadd.f32 %v3011, %v3157
        %v3179 = vadd.f32 %v3012, %v3125
        %v3180 = vadd.f32 %v3013, %v3159
        %v3181 = vld [vmem:[%s5] sm:$0x3]
        %v3183 = vperm.slane %v3181, 0
        %v3184 = vperm.slane %v3181, 1
        %v3187 = vadd.f32 %v3161, %v3183
        %v3188 = vadd.f32 %v3162, %v3184
        %v3189 = vadd.f32 %v3163, %v3183
        %v3190 = vadd.f32 %v3164, %v3184
        %v3191 = vadd.f32 %v3165, %v3183
        %v3192 = vadd.f32 %v3166, %v3184
        %v3193 = vadd.f32 %v3167, %v3183
        %v3194 = vadd.f32 %v3168, %v3184
        %v3195 = vadd.f32 %v3169, %v3183
        %v3196 = vadd.f32 %v3170, %v3184
        %v3197 = vadd.f32 %v3171, %v3183
        %v3198 = vadd.f32 %v3172, %v3184
        %v3199 = vadd.f32 %v3173, %v3183
        %v3200 = vadd.f32 %v3174, %v3184
        %v3201 = vadd.f32 %v3175, %v3183
        %v3202 = vadd.f32 %v3176, %v3184
        %v3203 = vadd.f32 %v3177, %v3183
        %v3204 = vadd.f32 %v3178, %v3184
        %v3205 = vadd.f32 %v3179, %v3183
        %v3206 = vadd.f32 %v3180, %v3184
        %v3207 = vmax.f32 %v3187, 0.0
        %v3208 = vmax.f32 %v3188, 0.0
        %v3209 = vmax.f32 %v3189, 0.0
        %v3210 = vmax.f32 %v3190, 0.0
        %v3211 = vmax.f32 %v3191, 0.0
        %v3212 = vmax.f32 %v3192, 0.0
        %v3213 = vmax.f32 %v3193, 0.0
        %v3214 = vmax.f32 %v3194, 0.0
        %v3215 = vmax.f32 %v3195, 0.0
        %v3216 = vmax.f32 %v3196, 0.0
        %v3217 = vmax.f32 %v3197, 0.0
        %v3218 = vmax.f32 %v3198, 0.0
        %v3219 = vmax.f32 %v3199, 0.0
        %v3220 = vmax.f32 %v3200, 0.0
        %v3221 = vmax.f32 %v3201, 0.0
        %v3222 = vmax.f32 %v3202, 0.0
        %v3223 = vmax.f32 %v3203, 0.0
        %v3224 = vmax.f32 %v3204, 0.0
        %v3225 = vmax.f32 %v3205, 0.0
        %v3226 = vmax.f32 %v3206, 0.0
        %v3227 = vpack.c.bf16 %v3209, %v3207
        %v3228 = vpack.c.bf16 %v3210, %v3208
        %v3229 = vpack.c.bf16 %v3213, %v3211
        %v3230 = vpack.c.bf16 %v3214, %v3212
        %v3231 = vpack.c.bf16 %v3217, %v3215
        %v3232 = vpack.c.bf16 %v3218, %v3216
        %v3233 = vpack.c.bf16 %v3221, %v3219
        %v3234 = vpack.c.bf16 %v3222, %v3220
        %v3235 = vpack.c.bf16 %v3225, %v3223
        %v3236 = vpack.c.bf16 %v3226, %v3224
        %v3237 = vld [vmem:[%s6] sm:$0xf]
        %v3238 = vld [vmem:[%s6 + $0x4] sm:$0xf]
        %v3239 = vld [vmem:[%s6 + $0x8] sm:$0xf]
        %v3240 = vld [vmem:[%s6 + $0xc] sm:$0xf]
        %v3241 = vld [vmem:[%s6 + $0x10] sm:$0xf]
        %v3247 = vunpack.c.l.b16 %v3237
        %v3248 = vunpack.c.l.b16 %v3238
        %v3249 = vunpack.c.l.b16 %v3239
        %v3250 = vunpack.c.l.b16 %v3240
        %v3251 = vunpack.c.l.b16 %v3241
        %v3252 = vpack.c.b16 %v3248, %v3247
        %v3253 = vpack.c.b16 %v3250, %v3249
        %v3254 = vpack.c.b16 %v3251, %v3251
        %vm3255 = vcmask 654336
        %v3257 = vsel %vm3255, %v3252, 0
        %v3260 = vsel %vm3255, %v3253, 0
        %v3263 = vsel %vm3255, %v3254, 0
        %3265 = vmatpush.bf16.msra.mxu0 0
        %3266 = vmatpush.bf16.msra.mxu0 0
        %3267 = vmatpush.bf16.msra.mxu0 0
        %3268 = vmatpush.bf16.msra.mxu0 %v3235
        %3269 = vmatpush.bf16.msra.mxu0 %v3233
        %3270 = vmatpush.bf16.msra.mxu0 %v3231
        %3271 = vmatpush.bf16.msra.mxu0 %v3229
        %3272 = vmatpush.bf16.msra.mxu0 %v3227
        %3273 = vmatmul.bf16.gmra.mxu0 %v3257
        %v3274 = vpop.f32.mrf.mxu0
        %v3275 = vadd.f32 0.0, %v3274
        %v3276 = vpop.f32.mrf.mxu0
        %v3277 = vadd.f32 0.0, %v3276
        %3278 = vmatmul.bf16.gmra.mxu0 %v3260
        %v3279 = vpop.f32.mrf.mxu0
        %v3280 = vadd.f32 0.0, %v3279
        %v3281 = vpop.f32.mrf.mxu0
        %v3282 = vadd.f32 0.0, %v3281
        %3283 = vmatmul.bf16.gmra.mxu0 %v3263
        %v3284 = vpop.f32.mrf.mxu0
        %v3285 = vadd.f32 0.0, %v3284
        %v3286 = vpop.f32.mrf.mxu0
        %3287 = vdwg.mxu0
        %3288 = vmatpush.bf16.msra.mxu0 0
        %3289 = vmatpush.bf16.msra.mxu0 0
        %3290 = vmatpush.bf16.msra.mxu0 0
        %3291 = vmatpush.bf16.msra.mxu0 %v3236
        %3292 = vmatpush.bf16.msra.mxu0 %v3234
        %3293 = vmatpush.bf16.msra.mxu0 %v3232
        %3294 = vmatpush.bf16.msra.mxu0 %v3230
        %3295 = vmatpush.bf16.msra.mxu0 %v3228
        %3296 = vmatmul.bf16.gmra.mxu0 %v3257
        %v3297 = vpop.f32.mrf.mxu0
        %v3298 = vadd.f32 0.0, %v3297
        %v3299 = vpop.f32.mrf.mxu0
        %v3300 = vadd.f32 0.0, %v3299
        %3301 = vmatmul.bf16.gmra.mxu0 %v3260
        %v3302 = vpop.f32.mrf.mxu0
        %v3303 = vadd.f32 0.0, %v3302
        %v3304 = vpop.f32.mrf.mxu0
        %v3305 = vadd.f32 0.0, %v3304
        %3306 = vmatmul.bf16.gmra.mxu0 %v3263
        %v3307 = vpop.f32.mrf.mxu0
        %v3308 = vadd.f32 0.0, %v3307
        %v3309 = vpop.f32.mrf.mxu0
        %3310 = vdwg.mxu0
        %s3311 = scalar_lea.vmem %s6, 20
        %v3312 = vld [vmem:[%s3311] sm:$0xf]
        %v3313 = vld [vmem:[%s3311 + $0x4] sm:$0xf]
        %v3314 = vld [vmem:[%s3311 + $0x8] sm:$0xf]
        %v3315 = vld [vmem:[%s3311 + $0xc] sm:$0xf]
        %v3316 = vld [vmem:[%s3311 + $0x10] sm:$0xf]
        %v3322 = vunpack.c.l.b16 %v3312
        %v3323 = vunpack.c.l.b16 %v3313
        %v3324 = vunpack.c.l.b16 %v3314
        %v3325 = vunpack.c.l.b16 %v3315
        %v3326 = vunpack.c.l.b16 %v3316
        %v3327 = vpack.c.b16 %v3323, %v3322
        %v3328 = vpack.c.b16 %v3325, %v3324
        %v3329 = vpack.c.b16 %v3326, %v3326
        %v3331 = vsel %vm3255, %v3327, 0
        %v3334 = vsel %vm3255, %v3328, 0
        %v3337 = vsel %vm3255, %v3329, 0
        %3339 = vmatpush.bf16.msra.mxu0 0
        %3340 = vmatpush.bf16.msra.mxu0 0
        %3341 = vmatpush.bf16.msra.mxu0 0
        %3342 = vmatpush.bf16.msra.mxu0 %v3235
        %3343 = vmatpush.bf16.msra.mxu0 %v3233
        %3344 = vmatpush.bf16.msra.mxu0 %v3231
        %3345 = vmatpush.bf16.msra.mxu0 %v3229
        %3346 = vmatpush.bf16.msra.mxu0 %v3227
        %3347 = vmatmul.bf16.gmra.mxu0 %v3331
        %v3348 = vpop.f32.mrf.mxu0
        %v3349 = vadd.f32 0.0, %v3348
        %v3350 = vpop.f32.mrf.mxu0
        %v3351 = vadd.f32 0.0, %v3350
        %3352 = vmatmul.bf16.gmra.mxu0 %v3334
        %v3353 = vpop.f32.mrf.mxu0
        %v3354 = vadd.f32 0.0, %v3353
        %v3355 = vpop.f32.mrf.mxu0
        %v3356 = vadd.f32 0.0, %v3355
        %3357 = vmatmul.bf16.gmra.mxu0 %v3337
        %v3358 = vpop.f32.mrf.mxu0
        %v3359 = vadd.f32 0.0, %v3358
        %v3360 = vpop.f32.mrf.mxu0
        %3361 = vdwg.mxu0
        %3362 = vmatpush.bf16.msra.mxu0 0
        %3363 = vmatpush.bf16.msra.mxu0 0
        %3364 = vmatpush.bf16.msra.mxu0 0
        %3365 = vmatpush.bf16.msra.mxu0 %v3236
        %3366 = vmatpush.bf16.msra.mxu0 %v3234
        %3367 = vmatpush.bf16.msra.mxu0 %v3232
        %3368 = vmatpush.bf16.msra.mxu0 %v3230
        %3369 = vmatpush.bf16.msra.mxu0 %v3228
        %3370 = vmatmul.bf16.gmra.mxu0 %v3331
        %v3371 = vpop.f32.mrf.mxu0
        %v3372 = vadd.f32 0.0, %v3371
        %v3373 = vpop.f32.mrf.mxu0
        %v3374 = vadd.f32 0.0, %v3373
        %3375 = vmatmul.bf16.gmra.mxu0 %v3334
        %v3376 = vpop.f32.mrf.mxu0
        %v3377 = vadd.f32 0.0, %v3376
        %v3378 = vpop.f32.mrf.mxu0
        %v3379 = vadd.f32 0.0, %v3378
        %3380 = vmatmul.bf16.gmra.mxu0 %v3337
        %v3381 = vpop.f32.mrf.mxu0
        %v3382 = vadd.f32 0.0, %v3381
        %v3383 = vpop.f32.mrf.mxu0
        %3384 = vdwg.mxu0
        %v3385 = vmax.f32 %v3275, %v3349
        %v3386 = vmax.f32 %v3298, %v3372
        %v3387 = vmax.f32 %v3277, %v3351
        %v3388 = vmax.f32 %v3300, %v3374
        %v3389 = vmax.f32 %v3280, %v3354
        %v3390 = vmax.f32 %v3303, %v3377
        %v3391 = vmax.f32 %v3282, %v3356
        %v3392 = vmax.f32 %v3305, %v3379
        %v3393 = vmax.f32 %v3285, %v3359
        %v3394 = vmax.f32 %v3308, %v3382
        %v3395 = vpack.c.bf16 %v3387, %v3385
        %v3396 = vpack.c.bf16 %v3388, %v3386
        %v3397 = vpack.c.bf16 %v3391, %v3389
        %v3398 = vpack.c.bf16 %v3392, %v3390
        %v3399 = vpack.c.bf16 %v3393, %v3393
        %v3400 = vpack.c.bf16 %v3394, %v3394
        %v3401 = vld [vmem:[%s7] sm:$0xf]
        %v3402 = vld [vmem:[%s7 + $0x4] sm:$0xf]
        %v3403 = vld [vmem:[%s7 + $0x8] sm:$0xf]
        %v3404 = vld [vmem:[%s7 + $0xc] sm:$0xf]
        %v3405 = vld [vmem:[%s7 + $0x10] sm:$0xf]
        %v3406 = vld [vmem:[%s7 + $0x14] sm:$0xf]
        %v3407 = vld [vmem:[%s7 + $0x18] sm:$0xf]
        %v3408 = vld [vmem:[%s7 + $0x1c] sm:$0xf]
        %v3409 = vld [vmem:[%s7 + $0x20] sm:$0xf]
        %v3410 = vld [vmem:[%s7 + $0x24] sm:$0xf]
        %v3411 = vld [vmem:[%s7 + $0x28] sm:$0xf]
        %v3412 = vld [vmem:[%s7 + $0x2c] sm:$0xf]
        %v3413 = vld [vmem:[%s7 + $0x30] sm:$0xf]
        %v3414 = vld [vmem:[%s7 + $0x34] sm:$0xf]
        %v3415 = vld [vmem:[%s7 + $0x38] sm:$0xf]
        %v3416 = vld [vmem:[%s7 + $0x3c] sm:$0xf]
        %v3417 = vld [vmem:[%s7 + $0x40] sm:$0xf]
        %v3418 = vld [vmem:[%s7 + $0x44] sm:$0xf]
        %v3419 = vld [vmem:[%s7 + $0x48] sm:$0xf]
        %v3420 = vld [vmem:[%s7 + $0x4c] sm:$0xf]
        %v3441 = vunpack.c.l.b16 %v3401
        %v3442 = vunpack.c.l.b16 %v3402
        %v3443 = vunpack.c.l.b16 %v3403
        %v3444 = vunpack.c.l.b16 %v3404
        %v3445 = vunpack.c.l.b16 %v3405
        %v3446 = vunpack.c.l.b16 %v3406
        %v3447 = vunpack.c.l.b16 %v3407
        %v3448 = vunpack.c.l.b16 %v3408
        %v3449 = vunpack.c.l.b16 %v3409
        %v3450 = vunpack.c.l.b16 %v3410
        %v3451 = vunpack.c.l.b16 %v3411
        %v3452 = vunpack.c.l.b16 %v3412
        %v3453 = vunpack.c.l.b16 %v3413
        %v3454 = vunpack.c.l.b16 %v3414
        %v3455 = vunpack.c.l.b16 %v3415
        %v3456 = vunpack.c.l.b16 %v3416
        %v3457 = vunpack.c.l.b16 %v3417
        %v3458 = vunpack.c.l.b16 %v3418
        %v3459 = vunpack.c.l.b16 %v3419
        %v3460 = vunpack.c.l.b16 %v3420
        %v3461 = vpack.c.b16 %v3442, %v3441
        %v3462 = vpack.c.b16 %v3444, %v3443
        %v3463 = vpack.c.b16 %v3446, %v3445
        %v3464 = vpack.c.b16 %v3448, %v3447
        %v3465 = vpack.c.b16 %v3450, %v3449
        %v3466 = vpack.c.b16 %v3452, %v3451
        %v3467 = vpack.c.b16 %v3454, %v3453
        %v3468 = vpack.c.b16 %v3456, %v3455
        %v3469 = vpack.c.b16 %v3458, %v3457
        %v3470 = vpack.c.b16 %v3460, %v3459
        %vm3481 = vcmask 261120
        %v3483 = vsel %vm3481, %v3396, 0
        %v3486 = vsel %vm3481, %v3398, 0
        %v3489 = vsel %vm3481, %v3400, 0
        %3491 = vmatpush.bf16.msra.mxu0 %v3468
        %3492 = vmatpush.bf16.msra.mxu0 %v3467
        %3493 = vmatpush.bf16.msra.mxu0 %v3466
        %3494 = vmatpush.bf16.msra.mxu0 %v3465
        %3495 = vmatpush.bf16.msra.mxu0 %v3464
        %3496 = vmatpush.bf16.msra.mxu0 %v3463
        %3497 = vmatpush.bf16.msra.mxu0 %v3462
        %3498 = vmatpush.bf16.msra.mxu0 %v3461
        %3499 = vmatmul.bf16.gmra.mxu0 %v3395
        %v3500 = vpop.f32.mrf.mxu0
        %v3501 = vadd.f32 0.0, %v3500
        %v3502 = vpop.f32.mrf.mxu0
        %v3503 = vadd.f32 0.0, %v3502
        %3504 = vmatmul.bf16.gmra.mxu0 %v3397
        %v3505 = vpop.f32.mrf.mxu0
        %v3506 = vadd.f32 0.0, %v3505
        %v3507 = vpop.f32.mrf.mxu0
        %v3508 = vadd.f32 0.0, %v3507
        %3509 = vmatmul.bf16.gmra.mxu0 %v3399
        %v3510 = vpop.f32.mrf.mxu0
        %v3511 = vadd.f32 0.0, %v3510
        %v3512 = vpop.f32.mrf.mxu0
        %3513 = vdwg.mxu0
        %3514 = vmatpush.bf16.msra.mxu0 0
        %3515 = vmatpush.bf16.msra.mxu0 0
        %3516 = vmatpush.bf16.msra.mxu0 0
        %3517 = vmatpush.bf16.msra.mxu0 0
        %3518 = vmatpush.bf16.msra.mxu0 0
        %3519 = vmatpush.bf16.msra.mxu0 0
        %3520 = vmatpush.bf16.msra.mxu0 %v3470
        %3521 = vmatpush.bf16.msra.mxu0 %v3469
        %3522 = vmatmul.bf16.gmra.mxu0 %v3483
        %v3523 = vpop.f32.mrf.mxu0
        %v3524 = vadd.f32 %v3501, %v3523
        %v3525 = vpop.f32.mrf.mxu0
        %v3526 = vadd.f32 %v3503, %v3525
        %3527 = vmatmul.bf16.gmra.mxu0 %v3486
        %v3528 = vpop.f32.mrf.mxu0
        %v3529 = vadd.f32 %v3506, %v3528
        %v3530 = vpop.f32.mrf.mxu0
        %v3531 = vadd.f32 %v3508, %v3530
        %3532 = vmatmul.bf16.gmra.mxu0 %v3489
        %v3533 = vpop.f32.mrf.mxu0
        %v3534 = vadd.f32 %v3511, %v3533
        %v3535 = vpop.f32.mrf.mxu0
        %3536 = vdwg.mxu0
        %s3537 = scalar_lea.vmem %s7, 80
        %v3538 = vld [vmem:[%s3537] sm:$0xf]
        %v3539 = vld [vmem:[%s3537 + $0x4] sm:$0xf]
        %v3540 = vld [vmem:[%s3537 + $0x8] sm:$0xf]
        %v3541 = vld [vmem:[%s3537 + $0xc] sm:$0xf]
        %v3542 = vld [vmem:[%s3537 + $0x10] sm:$0xf]
        %v3543 = vld [vmem:[%s3537 + $0x14] sm:$0xf]
        %v3544 = vld [vmem:[%s3537 + $0x18] sm:$0xf]
        %v3545 = vld [vmem:[%s3537 + $0x1c] sm:$0xf]
        %v3546 = vld [vmem:[%s3537 + $0x20] sm:$0xf]
        %v3547 = vld [vmem:[%s3537 + $0x24] sm:$0xf]
        %v3548 = vld [vmem:[%s3537 + $0x28] sm:$0xf]
        %v3549 = vld [vmem:[%s3537 + $0x2c] sm:$0xf]
        %v3550 = vld [vmem:[%s3537 + $0x30] sm:$0xf]
        %v3551 = vld [vmem:[%s3537 + $0x34] sm:$0xf]
        %v3552 = vld [vmem:[%s3537 + $0x38] sm:$0xf]
        %v3553 = vld [vmem:[%s3537 + $0x3c] sm:$0xf]
        %v3554 = vld [vmem:[%s3537 + $0x40] sm:$0xf]
        %v3555 = vld [vmem:[%s3537 + $0x44] sm:$0xf]
        %v3556 = vld [vmem:[%s3537 + $0x48] sm:$0xf]
        %v3557 = vld [vmem:[%s3537 + $0x4c] sm:$0xf]
        %v3578 = vunpack.c.l.b16 %v3538
        %v3579 = vunpack.c.l.b16 %v3539
        %v3580 = vunpack.c.l.b16 %v3540
        %v3581 = vunpack.c.l.b16 %v3541
        %v3582 = vunpack.c.l.b16 %v3542
        %v3583 = vunpack.c.l.b16 %v3543
        %v3584 = vunpack.c.l.b16 %v3544
        %v3585 = vunpack.c.l.b16 %v3545
        %v3586 = vunpack.c.l.b16 %v3546
        %v3587 = vunpack.c.l.b16 %v3547
        %v3588 = vunpack.c.l.b16 %v3548
        %v3589 = vunpack.c.l.b16 %v3549
        %v3590 = vunpack.c.l.b16 %v3550
        %v3591 = vunpack.c.l.b16 %v3551
        %v3592 = vunpack.c.l.b16 %v3552
        %v3593 = vunpack.c.l.b16 %v3553
        %v3594 = vunpack.c.l.b16 %v3554
        %v3595 = vunpack.c.l.b16 %v3555
        %v3596 = vunpack.c.l.b16 %v3556
        %v3597 = vunpack.c.l.b16 %v3557
        %v3598 = vpack.c.b16 %v3579, %v3578
        %v3599 = vpack.c.b16 %v3581, %v3580
        %v3600 = vpack.c.b16 %v3583, %v3582
        %v3601 = vpack.c.b16 %v3585, %v3584
        %v3602 = vpack.c.b16 %v3587, %v3586
        %v3603 = vpack.c.b16 %v3589, %v3588
        %v3604 = vpack.c.b16 %v3591, %v3590
        %v3605 = vpack.c.b16 %v3593, %v3592
        %v3606 = vpack.c.b16 %v3595, %v3594
        %v3607 = vpack.c.b16 %v3597, %v3596
        %3618 = vmatpush.bf16.msra.mxu0 %v3605
        %3619 = vmatpush.bf16.msra.mxu0 %v3604
        %3620 = vmatpush.bf16.msra.mxu0 %v3603
        %3621 = vmatpush.bf16.msra.mxu0 %v3602
        %3622 = vmatpush.bf16.msra.mxu0 %v3601
        %3623 = vmatpush.bf16.msra.mxu0 %v3600
        %3624 = vmatpush.bf16.msra.mxu0 %v3599
        %3625 = vmatpush.bf16.msra.mxu0 %v3598
        %3626 = vmatmul.bf16.gmra.mxu0 %v3395
        %v3627 = vpop.f32.mrf.mxu0
        %v3628 = vadd.f32 0.0, %v3627
        %v3629 = vpop.f32.mrf.mxu0
        %v3630 = vadd.f32 0.0, %v3629
        %3631 = vmatmul.bf16.gmra.mxu0 %v3397
        %v3632 = vpop.f32.mrf.mxu0
        %v3633 = vadd.f32 0.0, %v3632
        %v3634 = vpop.f32.mrf.mxu0
        %v3635 = vadd.f32 0.0, %v3634
        %3636 = vmatmul.bf16.gmra.mxu0 %v3399
        %v3637 = vpop.f32.mrf.mxu0
        %v3638 = vadd.f32 0.0, %v3637
        %v3639 = vpop.f32.mrf.mxu0
        %3640 = vdwg.mxu0
        %3641 = vmatpush.bf16.msra.mxu0 0
        %3642 = vmatpush.bf16.msra.mxu0 0
        %3643 = vmatpush.bf16.msra.mxu0 0
        %3644 = vmatpush.bf16.msra.mxu0 0
        %3645 = vmatpush.bf16.msra.mxu0 0
        %3646 = vmatpush.bf16.msra.mxu0 0
        %3647 = vmatpush.bf16.msra.mxu0 %v3607
        %3648 = vmatpush.bf16.msra.mxu0 %v3606
        %3649 = vmatmul.bf16.gmra.mxu0 %v3483
        %v3650 = vpop.f32.mrf.mxu0
        %v3651 = vadd.f32 %v3628, %v3650
        %v3652 = vpop.f32.mrf.mxu0
        %v3653 = vadd.f32 %v3630, %v3652
        %3654 = vmatmul.bf16.gmra.mxu0 %v3486
        %v3655 = vpop.f32.mrf.mxu0
        %v3656 = vadd.f32 %v3633, %v3655
        %v3657 = vpop.f32.mrf.mxu0
        %v3658 = vadd.f32 %v3635, %v3657
        %3659 = vmatmul.bf16.gmra.mxu0 %v3489
        %v3660 = vpop.f32.mrf.mxu0
        %v3661 = vadd.f32 %v3638, %v3660
        %v3662 = vpop.f32.mrf.mxu0
        %3663 = vdwg.mxu0
        %v3664 = vmax.f32 %v3524, %v3651
        %v3665 = vmax.f32 %v3526, %v3653
        %v3666 = vmax.f32 %v3529, %v3656
        %v3667 = vmax.f32 %v3531, %v3658
        %v3668 = vmax.f32 %v3534, %v3661
        %v3669 = vpack.c.bf16 %v3664, %v3664
        %v3670 = vpack.c.bf16 %v3665, %v3665
        %v3671 = vpack.c.bf16 %v3666, %v3666
        %v3672 = vpack.c.bf16 %v3667, %v3667
        %v3673 = vpack.c.bf16 %v3668, %v3668
        %v3674 = vld [vmem:[%s8] sm:$0xf]
        %v3675 = vld [vmem:[%s8 + $0x4] sm:$0xf]
        %v3676 = vld [vmem:[%s8 + $0x8] sm:$0xf]
        %v3677 = vld [vmem:[%s8 + $0xc] sm:$0xf]
        %v3678 = vld [vmem:[%s8 + $0x10] sm:$0xf]
        %v3679 = vld [vmem:[%s8 + $0x14] sm:$0xf]
        %v3680 = vld [vmem:[%s8 + $0x18] sm:$0xf]
        %v3681 = vld [vmem:[%s8 + $0x1c] sm:$0xf]
        %v3682 = vld [vmem:[%s8 + $0x20] sm:$0xf]
        %v3683 = vld [vmem:[%s8 + $0x24] sm:$0xf]
        %s3684 = scalar_lea.vmem %s8, 40
        %v3685 = vld [vmem:[%s3684] sm:$0xf]
        %v3686 = vld [vmem:[%s3684 + $0x4] sm:$0xf]
        %v3687 = vld [vmem:[%s3684 + $0x8] sm:$0xf]
        %v3688 = vld [vmem:[%s3684 + $0xc] sm:$0xf]
        %v3689 = vld [vmem:[%s3684 + $0x10] sm:$0xf]
        %v3690 = vld [vmem:[%s3684 + $0x14] sm:$0xf]
        %v3691 = vld [vmem:[%s3684 + $0x18] sm:$0xf]
        %v3692 = vld [vmem:[%s3684 + $0x1c] sm:$0xf]
        %v3693 = vld [vmem:[%s3684 + $0x20] sm:$0xf]
        %v3694 = vld [vmem:[%s3684 + $0x24] sm:$0xf]
        %v3705 = vunpack.c.l.b16 %v3685
        %v3706 = vunpack.c.l.b16 %v3686
        %v3707 = vunpack.c.l.b16 %v3687
        %v3708 = vunpack.c.l.b16 %v3688
        %v3709 = vunpack.c.l.b16 %v3689
        %v3710 = vunpack.c.l.b16 %v3690
        %v3711 = vunpack.c.l.b16 %v3691
        %v3712 = vunpack.c.l.b16 %v3692
        %v3713 = vunpack.c.l.b16 %v3693
        %v3714 = vunpack.c.l.b16 %v3694
        %v3715 = vpack.c.b16 %v3706, %v3705
        %v3716 = vpack.c.b16 %v3708, %v3707
        %v3717 = vpack.c.b16 %v3710, %v3709
        %v3718 = vpack.c.b16 %v3712, %v3711
        %v3719 = vpack.c.b16 %v3714, %v3713
        %v3726 = vsel %vm3255, %v3670, 0
        %3728 = vmatpush.bf16.msra.mxu0 0
        %3729 = vmatpush.bf16.msra.mxu0 0
        %3730 = vmatpush.bf16.msra.mxu0 0
        %3731 = vmatpush.bf16.msra.mxu0 %v3719
        %3732 = vmatpush.bf16.msra.mxu0 %v3718
        %3733 = vmatpush.bf16.msra.mxu0 %v3717
        %3734 = vmatpush.bf16.msra.mxu0 %v3716
        %3735 = vmatpush.bf16.msra.mxu0 %v3715
        %3736 = vmatmul.bf16.gmra.mxu0 %v3726
        %v3737 = vpop.f32.mrf.mxu0
        %v3738 = vadd.f32 0.0, %v3737
        %v3739 = vpop.f32.mrf.mxu0
        %3740 = vdwg.mxu0
        %v3751 = vunpack.c.l.b16 %v3674
        %v3752 = vunpack.c.l.b16 %v3675
        %v3753 = vunpack.c.l.b16 %v3676
        %v3754 = vunpack.c.l.b16 %v3677
        %v3755 = vunpack.c.l.b16 %v3678
        %v3756 = vunpack.c.l.b16 %v3679
        %v3757 = vunpack.c.l.b16 %v3680
        %v3758 = vunpack.c.l.b16 %v3681
        %v3759 = vunpack.c.l.b16 %v3682
        %v3760 = vunpack.c.l.b16 %v3683
        %v3761 = vpack.c.b16 %v3752, %v3751
        %v3762 = vpack.c.b16 %v3754, %v3753
        %v3763 = vpack.c.b16 %v3756, %v3755
        %v3764 = vpack.c.b16 %v3758, %v3757
        %v3765 = vpack.c.b16 %v3760, %v3759
        %v3772 = vsel %vm3255, %v3669, 0
        %3774 = vmatpush.bf16.msra.mxu0 0
        %3775 = vmatpush.bf16.msra.mxu0 0
        %3776 = vmatpush.bf16.msra.mxu0 0
        %3777 = vmatpush.bf16.msra.mxu0 %v3765
        %3778 = vmatpush.bf16.msra.mxu0 %v3764
        %3779 = vmatpush.bf16.msra.mxu0 %v3763
        %3780 = vmatpush.bf16.msra.mxu0 %v3762
        %3781 = vmatpush.bf16.msra.mxu0 %v3761
        %3782 = vmatmul.bf16.gmra.mxu0 %v3772
        %v3783 = vpop.f32.mrf.mxu0
        %v3784 = vadd.f32 %v3738, %v3783
        %v3785 = vpop.f32.mrf.mxu0
        %3786 = vdwg.mxu0
        %s3787 = scalar_lea.vmem %s8, 80
        %v3788 = vld [vmem:[%s3787] sm:$0xf]
        %v3789 = vld [vmem:[%s3787 + $0x4] sm:$0xf]
        %v3790 = vld [vmem:[%s3787 + $0x8] sm:$0xf]
        %v3791 = vld [vmem:[%s3787 + $0xc] sm:$0xf]
        %v3792 = vld [vmem:[%s3787 + $0x10] sm:$0xf]
        %v3793 = vld [vmem:[%s3787 + $0x14] sm:$0xf]
        %v3794 = vld [vmem:[%s3787 + $0x18] sm:$0xf]
        %v3795 = vld [vmem:[%s3787 + $0x1c] sm:$0xf]
        %v3796 = vld [vmem:[%s3787 + $0x20] sm:$0xf]
        %v3797 = vld [vmem:[%s3787 + $0x24] sm:$0xf]
        %v3808 = vunpack.c.l.b16 %v3788
        %v3809 = vunpack.c.l.b16 %v3789
        %v3810 = vunpack.c.l.b16 %v3790
        %v3811 = vunpack.c.l.b16 %v3791
        %v3812 = vunpack.c.l.b16 %v3792
        %v3813 = vunpack.c.l.b16 %v3793
        %v3814 = vunpack.c.l.b16 %v3794
        %v3815 = vunpack.c.l.b16 %v3795
        %v3816 = vunpack.c.l.b16 %v3796
        %v3817 = vunpack.c.l.b16 %v3797
        %v3818 = vpack.c.b16 %v3809, %v3808
        %v3819 = vpack.c.b16 %v3811, %v3810
        %v3820 = vpack.c.b16 %v3813, %v3812
        %v3821 = vpack.c.b16 %v3815, %v3814
        %v3822 = vpack.c.b16 %v3817, %v3816
        %v3829 = vsel %vm3255, %v3671, 0
        %3831 = vmatpush.bf16.msra.mxu0 0
        %3832 = vmatpush.bf16.msra.mxu0 0
        %3833 = vmatpush.bf16.msra.mxu0 0
        %3834 = vmatpush.bf16.msra.mxu0 %v3822
        %3835 = vmatpush.bf16.msra.mxu0 %v3821
        %3836 = vmatpush.bf16.msra.mxu0 %v3820
        %3837 = vmatpush.bf16.msra.mxu0 %v3819
        %3838 = vmatpush.bf16.msra.mxu0 %v3818
        %3839 = vmatmul.bf16.gmra.mxu0 %v3829
        %v3840 = vpop.f32.mrf.mxu0
        %v3841 = vadd.f32 0.0, %v3840
        %v3842 = vpop.f32.mrf.mxu0
        %3843 = vdwg.mxu0
        %v3844 = vadd.f32 %v3784, %v3841
        %s3845 = scalar_lea.vmem %s8, 120
        %v3846 = vld [vmem:[%s3845] sm:$0xf]
        %v3847 = vld [vmem:[%s3845 + $0x4] sm:$0xf]
        %v3848 = vld [vmem:[%s3845 + $0x8] sm:$0xf]
        %v3849 = vld [vmem:[%s3845 + $0xc] sm:$0xf]
        %v3850 = vld [vmem:[%s3845 + $0x10] sm:$0xf]
        %v3851 = vld [vmem:[%s3845 + $0x14] sm:$0xf]
        %v3852 = vld [vmem:[%s3845 + $0x18] sm:$0xf]
        %v3853 = vld [vmem:[%s3845 + $0x1c] sm:$0xf]
        %v3854 = vld [vmem:[%s3845 + $0x20] sm:$0xf]
        %v3855 = vld [vmem:[%s3845 + $0x24] sm:$0xf]
        %v3866 = vunpack.c.l.b16 %v3846
        %v3867 = vunpack.c.l.b16 %v3847
        %v3868 = vunpack.c.l.b16 %v3848
        %v3869 = vunpack.c.l.b16 %v3849
        %v3870 = vunpack.c.l.b16 %v3850
        %v3871 = vunpack.c.l.b16 %v3851
        %v3872 = vunpack.c.l.b16 %v3852
        %v3873 = vunpack.c.l.b16 %v3853
        %v3874 = vunpack.c.l.b16 %v3854
        %v3875 = vunpack.c.l.b16 %v3855
        %v3876 = vpack.c.b16 %v3867, %v3866
        %v3877 = vpack.c.b16 %v3869, %v3868
        %v3878 = vpack.c.b16 %v3871, %v3870
        %v3879 = vpack.c.b16 %v3873, %v3872
        %v3880 = vpack.c.b16 %v3875, %v3874
        %v3887 = vsel %vm3255, %v3672, 0
        %3889 = vmatpush.bf16.msra.mxu0 0
        %3890 = vmatpush.bf16.msra.mxu0 0
        %3891 = vmatpush.bf16.msra.mxu0 0
        %3892 = vmatpush.bf16.msra.mxu0 %v3880
        %3893 = vmatpush.bf16.msra.mxu0 %v3879
        %3894 = vmatpush.bf16.msra.mxu0 %v3878
        %3895 = vmatpush.bf16.msra.mxu0 %v3877
        %3896 = vmatpush.bf16.msra.mxu0 %v3876
        %3897 = vmatmul.bf16.gmra.mxu0 %v3887
        %v3898 = vpop.f32.mrf.mxu0
        %v3899 = vadd.f32 0.0, %v3898
        %v3900 = vpop.f32.mrf.mxu0
        %3901 = vdwg.mxu0
        %v3902 = vadd.f32 %v3844, %v3899
        %s3903 = scalar_lea.vmem %s8, 160
        %v3904 = vld [vmem:[%s3903] sm:$0xf]
        %v3905 = vld [vmem:[%s3903 + $0x4] sm:$0xf]
        %v3906 = vld [vmem:[%s3903 + $0x8] sm:$0xf]
        %v3907 = vld [vmem:[%s3903 + $0xc] sm:$0xf]
        %v3908 = vld [vmem:[%s3903 + $0x10] sm:$0xf]
        %v3909 = vld [vmem:[%s3903 + $0x14] sm:$0xf]
        %v3910 = vld [vmem:[%s3903 + $0x18] sm:$0xf]
        %v3911 = vld [vmem:[%s3903 + $0x1c] sm:$0xf]
        %v3912 = vld [vmem:[%s3903 + $0x20] sm:$0xf]
        %v3913 = vld [vmem:[%s3903 + $0x24] sm:$0xf]
        %v3924 = vunpack.c.l.b16 %v3904
        %v3925 = vunpack.c.l.b16 %v3905
        %v3926 = vunpack.c.l.b16 %v3906
        %v3927 = vunpack.c.l.b16 %v3907
        %v3928 = vunpack.c.l.b16 %v3908
        %v3929 = vunpack.c.l.b16 %v3909
        %v3930 = vunpack.c.l.b16 %v3910
        %v3931 = vunpack.c.l.b16 %v3911
        %v3932 = vunpack.c.l.b16 %v3912
        %v3933 = vunpack.c.l.b16 %v3913
        %v3934 = vpack.c.b16 %v3925, %v3924
        %v3935 = vpack.c.b16 %v3927, %v3926
        %v3936 = vpack.c.b16 %v3929, %v3928
        %v3937 = vpack.c.b16 %v3931, %v3930
        %v3938 = vpack.c.b16 %v3933, %v3932
        %v3945 = vsel %vm3255, %v3673, 0
        %3947 = vmatpush.bf16.msra.mxu0 0
        %3948 = vmatpush.bf16.msra.mxu0 0
        %3949 = vmatpush.bf16.msra.mxu0 0
        %3950 = vmatpush.bf16.msra.mxu0 %v3938
        %3951 = vmatpush.bf16.msra.mxu0 %v3937
        %3952 = vmatpush.bf16.msra.mxu0 %v3936
        %3953 = vmatpush.bf16.msra.mxu0 %v3935
        %3954 = vmatpush.bf16.msra.mxu0 %v3934
        %3955 = vmatmul.bf16.gmra.mxu0 %v3945
        %v3956 = vpop.f32.mrf.mxu0
        %v3957 = vadd.f32 0.0, %v3956
        %v3958 = vpop.f32.mrf.mxu0
        %3959 = vdwg.mxu0
        %v3960 = vadd.f32 %v3902, %v3957
        %v3961 = vld [vmem:[%s9] sm:$0x1]
        %v3963 = vperm.slane %v3961, 0
        %v3965 = vadd.f32 %v3960, %v3963
        %v3966 = vmax.f32 %v3965, 0.0
        %v3967 = vpack.c.bf16 %v3966, %v3966
        %v3968 = vld [vmem:[%s10] sm:$0xf]
        %v3969 = vld [vmem:[%s10 + $0x4] sm:$0xf]
        %v3970 = vld [vmem:[%s10 + $0x8] sm:$0xf]
        %v3971 = vld [vmem:[%s10 + $0xc] sm:$0xf]
        %v3972 = vld [vmem:[%s10 + $0x10] sm:$0xf]
        %v3973 = vld [vmem:[%s10 + $0x14] sm:$0xf]
        %v3974 = vld [vmem:[%s10 + $0x18] sm:$0xf]
        %v3975 = vld [vmem:[%s10 + $0x1c] sm:$0xf]
        %v3976 = vld [vmem:[%s10 + $0x20] sm:$0xf]
        %v3977 = vld [vmem:[%s10 + $0x24] sm:$0xf]
        %v3978 = vld [vmem:[%s10 + $0x28] sm:$0xf]
        %v3979 = vld [vmem:[%s10 + $0x2c] sm:$0xf]
        %v3980 = vld [vmem:[%s10 + $0x30] sm:$0xf]
        %v3981 = vld [vmem:[%s10 + $0x34] sm:$0xf]
        %v3982 = vld [vmem:[%s10 + $0x38] sm:$0xf]
        %v3983 = vld [vmem:[%s11] sm:$0x1]
        %v3985 = vperm.slane %v3983, 0
        %v4002 = vunpack.c.l.b16 %v3968
        %v4003 = vunpack.c.l.b16 %v3969
        %v4004 = vunpack.c.l.b16 %v3970
        %v4005 = vunpack.c.l.b16 %v3971
        %v4006 = vunpack.c.l.b16 %v3972
        %v4007 = vunpack.c.l.b16 %v3973
        %v4008 = vunpack.c.l.b16 %v3974
        %v4009 = vunpack.c.l.b16 %v3975
        %v4010 = vunpack.c.l.b16 %v3976
        %v4011 = vunpack.c.l.b16 %v3977
        %v4012 = vunpack.c.l.b16 %v3978
        %v4013 = vunpack.c.l.b16 %v3979
        %v4014 = vunpack.c.l.b16 %v3980
        %v4015 = vunpack.c.l.b16 %v3981
        %v4016 = vunpack.c.l.b16 %v3982
        %v4017 = vpack.c.b16 %v4003, %v4002
        %v4018 = vpack.c.b16 %v4005, %v4004
        %v4019 = vpack.c.b16 %v4007, %v4006
        %v4020 = vpack.c.b16 %v4009, %v4008
        %v4021 = vpack.c.b16 %v4011, %v4010
        %v4022 = vpack.c.b16 %v4013, %v4012
        %v4023 = vpack.c.b16 %v4015, %v4014
        %v4024 = vpack.c.b16 %v4016, %v4016
        %vm4032 = vcmask 982016
        %v4034 = vsel %vm4032, %v3967, 0
        %v4037 = vsel %vm2039, %v4024, 0
        %4039 = vmatpush.bf16.msra.mxu0 %v4037
        %4040 = vmatpush.bf16.msra.mxu0 %v4023
        %4041 = vmatpush.bf16.msra.mxu0 %v4022
        %4042 = vmatpush.bf16.msra.mxu0 %v4021
        %4043 = vmatpush.bf16.msra.mxu0 %v4020
        %4044 = vmatpush.bf16.msra.mxu0 %v4019
        %4045 = vmatpush.bf16.msra.mxu0 %v4018
        %4046 = vmatpush.bf16.msra.mxu0 %v4017
        %4047 = vmatmul.bf16.gmra.mxu0 %v4034
        %v4048 = vpop.f32.mrf.mxu0
        %v4049 = vadd.f32 %v3985, %v4048
        %v4050 = vpop.f32.mrf.mxu0
        %4051 = vdwg.mxu0
        %v4052 = vmax.f32 %v4049, 0.0
        %v4053 = vpack.c.bf16 %v4052, %v4052
        %v4054 = vld [vmem:[%s12] sm:$0xf]
        %v4055 = vld [vmem:[%s12 + $0x4] sm:$0xf]
        %v4056 = vld [vmem:[%s12 + $0x8] sm:$0xf]
        %v4057 = vld [vmem:[%s12 + $0xc] sm:$0xf]
        %v4058 = vld [vmem:[%s12 + $0x10] sm:$0xf]
        %v4059 = vld [vmem:[%s12 + $0x14] sm:$0xf]
        %v4060 = vld [vmem:[%s12 + $0x18] sm:$0xf]
        %v4061 = vld [vmem:[%s12 + $0x1c] sm:$0xf]
        %v4062 = vld [vmem:[%s12 + $0x20] sm:$0xf]
        %v4063 = vld [vmem:[%s12 + $0x24] sm:$0xf]
        %v4064 = vld [vmem:[%s12 + $0x28] sm:$0x3]
        %v4065 = vld [vmem:[%s13] sm:$0x1]
        %v4067 = vperm.slane %v4065, 0
        %v4080 = vunpack.c.l.b16 %v4054
        %v4081 = vunpack.c.l.b16 %v4055
        %v4082 = vunpack.c.l.b16 %v4056
        %v4083 = vunpack.c.l.b16 %v4057
        %v4084 = vunpack.c.l.b16 %v4058
        %v4085 = vunpack.c.l.b16 %v4059
        %v4086 = vunpack.c.l.b16 %v4060
        %v4087 = vunpack.c.l.b16 %v4061
        %v4088 = vunpack.c.l.b16 %v4062
        %v4089 = vunpack.c.l.b16 %v4063
        %v4090 = vunpack.c.l.b16 %v4064
        %v4091 = vpack.c.b16 %v4081, %v4080
        %v4092 = vpack.c.b16 %v4083, %v4082
        %v4093 = vpack.c.b16 %v4085, %v4084
        %v4094 = vpack.c.b16 %v4087, %v4086
        %v4095 = vpack.c.b16 %v4089, %v4088
        %v4096 = vpack.c.b16 %v4090, %v4090
        %v4103 = vsel %vm2438, %v4053, 0
        %v4106 = vsel %vm2454, %v4096, 0
        %4108 = vmatpush.bf16.msra.mxu0 0
        %4109 = vmatpush.bf16.msra.mxu0 0
        %4110 = vmatpush.bf16.msra.mxu0 %v4106
        %4111 = vmatpush.bf16.msra.mxu0 %v4095
        %4112 = vmatpush.bf16.msra.mxu0 %v4094
        %4113 = vmatpush.bf16.msra.mxu0 %v4093
        %4114 = vmatpush.bf16.msra.mxu0 %v4092
        %4115 = vmatpush.bf16.msra.mxu0 %v4091
        %4116 = vmatmul.bf16.gmra.mxu0 %v4103
        %v4117 = vpop.f32.mrf.mxu0
        %v4118 = vadd.f32 %v4067, %v4117
        %v4119 = vpop.f32.mrf.mxu0
        %4120 = vdwg.mxu0
        %4121 = vst [vmem:[%s463] sm:$0xff] %v4118
        %s4122 = sand.u32 %s335, 1
        %s4123 = scalar_lea.sflag [#allocation3], %s4122
        %s4124 = sand.u32 %s335, 1
        %s4125 = smul.addr %s4124, 8
        %s4126 = scalar_lea.vmem [#allocation2], %s4125
        // Predicated region
        $region77: #{net_forward.1} parent=75 // pred_check
          %p4127 = pneg %p345
        $region78: #{net_forward.1} parent=75 // pred_check_branch
          %4129 = sbr.rel (%p4127) target = $region80
        $region79: #{net_forward.1} parent=75 // pred_region
          %4131 = vsyncadd %s4123, 0
          %s4132 = smul.addr %s28, 8
          %s4133 = scalar_lea.hbm %s14, %s4132
          %s4135 = sshll.u32 %s4126, 4
          %s4136 = int_to_ptr.vmem [resolvable:$true] %s4135
          %s4137 = sshll.u32 %s4133, 4
          %s4138 = int_to_ptr.hbm [resolvable:$true] %s4137
          %4140 = dma.vmem_to_hbm [thread:$0]  %s4136, 128, %s4138, %s4123
        $region80: #{net_forward.1} parent=75 // pred_fallthru
          _
      $region76: #{net_forward.1} parent=5 // pred_fallthru
        _
      %p4141 = scmp.le.s32.totalorder 2, %s23
      // Predicated region
      $region81: #{net_forward.1} parent=5 // pred_check
        %p4142 = pneg %p4141
      $region82: #{net_forward.1} parent=5 // pred_check_branch
        %4144 = sbr.rel (%p4142) target = $region84
      $region83: #{net_forward.1} parent=5 // pred_region
        %s4145 = ssub.s32 %s23, 2
        // Predicated region
        $region85: #{net_forward.1} parent=83 // pred_check
          %p4146 = pneg %p351
        $region86: #{net_forward.1} parent=83 // pred_check_branch
          %4148 = sbr.rel (%p4146) target = $region88
        $region87: #{net_forward.1} parent=83 // pred_region
          %s4149 = sand.u32 %s336, 1
          %s4150 = scalar_lea.sflag [#allocation3], %s4149
          %s4151 = sand.u32 %s336, 1
          %s4152 = smul.addr %s4151, 8
          %s4153 = scalar_lea.vmem [#allocation2], %s4152
          %4155 = dma.done %s4150, 128
        $region88: #{net_forward.1} parent=83 // pred_fallthru
          _
      $region84: #{net_forward.1} parent=5 // pred_fallthru
        _
    $region6: #{net_forward.1} parent=1 // loop_footer
      %s27 = sadd.s32 1, %s23
    $region7: #{net_forward.1} parent=1 // loop_footer_branch
      %22 = sbr.rel target = $region3
    $region8: #{net_forward.1} parent=1 // loop_exit
      _
    %4156 = vsyncpa [#allocation3], 1
    %s4157 = scalar_lea.sflag [#allocation3], 1
    %4158 = vsyncpa %s4157, 1

</llo_original>
